<compile_context>
chip_gen: v7x
topology: tpu7x:2x2x1
jax: 0.10.0
libtpu: 0.0.40
codegen_flags: <defaults>
</compile_context>

<pallas_src>
import functools
import math

import jax
import jax.numpy as jnp
from jax.experimental import pallas as pl
from jax.experimental.pallas import tpu as pltpu


# ----------------------------- helpers (in-kernel) -----------------------------

def _layer_norm(v, g, b, eps=1e-5):
    mu = jnp.mean(v, axis=-1, keepdims=True)
    var = jnp.mean((v - mu) ** 2, axis=-1, keepdims=True)   # biased variance (torch LN)
    return (v - mu) * jax.lax.rsqrt(var + eps) * g + b


def _gelu_exact(x):
    # torch nn.GELU() default = exact erf formulation
    return 0.5 * x * (1.0 + jax.lax.erf(x * (1.0 / math.sqrt(2.0))))


# ----------------------------- fused kernel -----------------------------

def _vit_kernel(patches_ref, wp_ref, bp_ref, cls_ref, pos_ref,
                ln1g_ref, ln1b_ref, wqkv_ref, wo_ref, bo_ref,
                ln2g_ref, ln2b_ref, w1_ref, b1_ref, w2_ref, b2_ref,
                o_ref, tok_ref, *, num_heads, batch, seq):
    """One grid step == one transformer block; tokens live in tok_ref (VMEM) across steps."""
    B, S = batch, seq
    N = S - 1
    D = tok_ref.shape[-1]
    hd = D // num_heads
    scale = D ** (-0.5)          # module scales by emb_size**-0.5 (not head_dim)
    layer = pl.program_id(0)
    f32 = jnp.float32
    bf16 = jnp.bfloat16

    # ---- depth step 0: patch embedding + cls token + positional embedding ----
    @pl.when(layer == 0)
    def _embed():
        pv = patches_ref[...]                                   # (B, N, P)
        p = pv.reshape(B * N, pv.shape[-1]).astype(bf16)
        proj = jnp.dot(p, wp_ref[...], preferred_element_type=f32) + bp_ref[...]   # (B*N, D)
        cls_row = cls_ref[...] + pos_ref[0:1, :]                # (1, D)
        pos_body = pos_ref[1:, :]                               # (N, D)
        for b in range(B):
            tok_ref[b * S:b * S + 1, :] = cls_row
            tok_ref[b * S + 1:(b + 1) * S, :] = proj[b * N:(b + 1) * N, :] + pos_body
        # embedding dropout = identity (eval mode)

    # ---- transformer encoder block (pre-computed tokens resident in VMEM) ----
    x = tok_ref[...]                                            # (B*S, D) f32

    # attention branch
    h1 = _layer_norm(x, ln1g_ref[0], ln1b_ref[0])
    qkv = jnp.dot(h1.astype(bf16), wqkv_ref[0],
                  preferred_element_type=f32)                   # (B*S, 3D), no bias
    wo = wo_ref[0]                                              # (D, D) bf16
    for b in range(B):
        rows = slice(b * S, (b + 1) * S)
        qb = qkv[rows, 0 * D:1 * D].astype(bf16)                # (S, D)
        kb = qkv[rows, 1 * D:2 * D].astype(bf16)
        vb = qkv[rows, 2 * D:3 * D].astype(bf16)
        acc = None
        for h in range(num_heads):
            cols = slice(h * hd, (h + 1) * hd)
            qh, kh, vh = qb[:, cols], kb[:, cols], vb[:, cols]  # (S, hd)
            dots = jax.lax.dot_general(qh, kh, (((1,), (1,)), ((), ())),
                                       preferred_element_type=f32) * scale   # (S, S)
            m = jnp.max(dots, axis=-1, keepdims=True)
            e = jnp.exp(dots - m)
            attn = e * pl.reciprocal(jnp.sum(e, axis=-1, keepdims=True), approx=True)
            oh = jnp.dot(attn.astype(bf16), vh, preferred_element_type=f32)  # (S, hd)
            # concat_h(o_h) @ W_out == sum_h o_h @ W_out[h*hd:(h+1)*hd, :]
            contrib = jnp.dot(oh.astype(bf16), wo[cols, :], preferred_element_type=f32)
            acc = contrib if acc is None else acc + contrib
        tok_ref[rows, :] = x[rows, :] + acc + bo_ref[0]         # residual; dropout = identity

    # feed-forward branch (batched over B*S rows)
    x2 = tok_ref[...]                                           # (B*S, D) f32
    h2 = _layer_norm(x2, ln2g_ref[0], ln2b_ref[0])
    ff = jnp.dot(h2.astype(bf16), w1_ref[0], preferred_element_type=f32) + b1_ref[0]
    ff = _gelu_exact(ff)
    ff = jnp.dot(ff.astype(bf16), w2_ref[0], preferred_element_type=f32) + b2_ref[0]
    x3 = x2 + ff                                                # residual; dropout = identity
    tok_ref[...] = x3

    # ---- last depth step: emit the cls token for every batch element ----
    @pl.when(layer == pl.num_programs(0) - 1)
    def _final():
        for b in range(B):
            o_ref[b:b + 1, :] = x3[b * S:b * S + 1, :]          # to_latent = Identity


# ----------------------------- wrappers -----------------------------

def extract_patches(x, patch):
    """einops: 'b c (h p1) (w p2) -> b (h w) (p1 p2 c)'   (pure-JAX glue)."""
    b, c, H, W = x.shape
    h, w = H // patch, W // patch
    x = x.reshape(b, c, h, patch, w, patch)
    x = jnp.transpose(x, (0, 2, 4, 3, 5, 1))          # b h w p1 p2 c
    return x.reshape(b, h * w, patch * patch * c)


@functools.partial(jax.jit, static_argnames=("patch", "num_heads"))
def vit_forward(x, params, *, patch, num_heads):
    patches = extract_patches(x, patch)                # (B, N, p*p*c)
    B, N, P = patches.shape
    D = params["w_patch"].shape[1]
    S = N + 1
    depth = params["w_qkv"].shape[0]

    kernel = functools.partial(_vit_kernel, num_heads=num_heads, batch=B, seq=S)

    def shared_spec(a):
        nd = a.ndim
        return pl.BlockSpec(a.shape, lambda d, _nd=nd: (0,) * _nd)

    def layer_spec(a):
        return pl.BlockSpec((1,) + a.shape[1:], lambda d: (d, 0, 0))

    shared_args = [patches, params["w_patch"], params["b_patch"],
                   params["cls"], params["pos"]]
    layer_args = [params[k] for k in ("ln1_g", "ln1_b", "w_qkv", "w_out", "b_out",
                                      "ln2_g", "ln2_b", "w1", "b1", "w2", "b2")]

    return pl.pallas_call(
        kernel,
        out_shape=jax.ShapeDtypeStruct((B, D), jnp.float32),
        grid=(depth,),
        in_specs=[shared_spec(a) for a in shared_args] + [layer_spec(a) for a in layer_args],
        out_specs=pl.BlockSpec((B, D), lambda d: (0, 0)),
        scratch_shapes=[pltpu.VMEM((B * S, D), jnp.float32)],   # tokens resident across depth
        compiler_params=pltpu.CompilerParams(dimension_semantics=("arbitrary",)),
    )(*shared_args, *layer_args)
    # (linear_head exists in __init__ but is unused by forward, so it is not applied)


# ----------------------------- parameter init -----------------------------

def init_params(key, *, in_channels, patch, emb, depth, expansion, num_patches):
    P = patch * patch * in_channels
    E = expansion * emb
    ks = jax.random.split(key, 7)
    wdt = jnp.bfloat16   # MXU operand dtype (accumulation stays f32 in-kernel)

    def rnd(k, shape):
        return 0.02 * jax.random.normal(k, shape, jnp.float32)

    return {
        "w_patch": rnd(ks[0], (P, emb)).astype(wdt),
        "b_patch": jnp.zeros((1, emb), jnp.float32),
        # torch shapes are (1,1,emb) / (1,num_patches+1,emb); stored flattened here
        "cls": rnd(ks[1], (1, emb)),
        "pos": rnd(ks[2], (num_patches + 1, emb)),
        # per-layer weights stacked along a leading DEPTH axis
        "ln1_g": jnp.ones((depth, 1, emb), jnp.float32),
        "ln1_b": jnp.zeros((depth, 1, emb), jnp.float32),
        "w_qkv": rnd(ks[3], (depth, emb, 3 * emb)).astype(wdt),
        "w_out": rnd(ks[4], (depth, emb, emb)).astype(wdt),
        "b_out": jnp.zeros((depth, 1, emb), jnp.float32),
        "ln2_g": jnp.ones((depth, 1, emb), jnp.float32),
        "ln2_b": jnp.zeros((depth, 1, emb), jnp.float32),
        "w1": rnd(ks[5], (depth, emb, E)).astype(wdt),
        "b1": jnp.zeros((depth, 1, E), jnp.float32),
        "w2": rnd(ks[6], (depth, E, emb)).astype(wdt),
        "b2": jnp.zeros((depth, 1, emb), jnp.float32),
    }


# ----------------------------- main ----------------------------------------

if __name__ == "__main__":
    # small config consistent with the module: image 16x16, patch 4 -> 16 patches (+cls = 17)
    IMAGE, PATCH, C = 16, 4, 3
    EMB, DEPTH, HEADS, EXP = 64, 2, 4, 4
    B = 2
    NUM_PATCHES = (IMAGE // PATCH) ** 2

    key = jax.random.PRNGKey(0)
    kp, kx = jax.random.split(key)
    params = init_params(kp, in_channels=C, patch=PATCH, emb=EMB,
                         depth=DEPTH, expansion=EXP, num_patches=NUM_PATCHES)
    x = jax.random.normal(kx, (B, C, IMAGE, IMAGE), jnp.float32)

    out = vit_forward(x, params, patch=PATCH, num_heads=HEADS)
    out = jax.block_until_ready(out)
    assert out.shape == (B, EMB), out.shape
    print("KERNEL_OK")
</pallas_src>

<mosaic_0001>
module attributes {stable_mosaic.version = 11 : i64} {
  func.func @_vit_kernel(%arg0: i32, %arg1: memref<2x16x48xf32, #tpu.memory_space<vmem>>, %arg2: memref<48x64xbf16, #tpu.memory_space<vmem>>, %arg3: memref<1x64xf32, #tpu.memory_space<vmem>>, %arg4: memref<1x64xf32, #tpu.memory_space<vmem>>, %arg5: memref<17x64xf32, #tpu.memory_space<vmem>>, %arg6: memref<1x1x64xf32, #tpu.memory_space<vmem>>, %arg7: memref<1x1x64xf32, #tpu.memory_space<vmem>>, %arg8: memref<1x64x192xbf16, #tpu.memory_space<vmem>>, %arg9: memref<1x64x64xbf16, #tpu.memory_space<vmem>>, %arg10: memref<1x1x64xf32, #tpu.memory_space<vmem>>, %arg11: memref<1x1x64xf32, #tpu.memory_space<vmem>>, %arg12: memref<1x1x64xf32, #tpu.memory_space<vmem>>, %arg13: memref<1x64x256xbf16, #tpu.memory_space<vmem>>, %arg14: memref<1x1x256xf32, #tpu.memory_space<vmem>>, %arg15: memref<1x256x64xbf16, #tpu.memory_space<vmem>>, %arg16: memref<1x1x64xf32, #tpu.memory_space<vmem>>, %arg17: memref<2x64xf32, #tpu.memory_space<vmem>>, %arg18: memref<34x64xf32, #tpu.memory_space<vmem>>) attributes {dimension_semantics = [#tpu.dimension_semantics<arbitrary>], iteration_bounds = array<i64: 2>, scalar_prefetch = 0 : i64, scratch_operands = 1 : i64, tpu.core_type = #tpu.core_type<tc>, window_params = [{pipeline_mode = #tpu.pipeline_mode<synchronous>, transform_indices = @transform_0, window_bounds = array<i64: 2, 16, 48>}, {pipeline_mode = #tpu.pipeline_mode<synchronous>, transform_indices = @transform_1, window_bounds = array<i64: 48, 64>}, {pipeline_mode = #tpu.pipeline_mode<synchronous>, transform_indices = @transform_2, window_bounds = array<i64: 1, 64>}, {pipeline_mode = #tpu.pipeline_mode<synchronous>, transform_indices = @transform_3, window_bounds = array<i64: 1, 64>}, {pipeline_mode = #tpu.pipeline_mode<synchronous>, transform_indices = @transform_4, window_bounds = array<i64: 17, 64>}, {transform_indices = @transform_5, window_bounds = array<i64: 1, 1, 64>}, {transform_indices = @transform_6, window_bounds = array<i64: 1, 1, 64>}, {transform_indices = @transform_7, window_bounds = array<i64: 1, 64, 192>}, {transform_indices = @transform_8, window_bounds = array<i64: 1, 64, 64>}, {transform_indices = @transform_9, window_bounds = array<i64: 1, 1, 64>}, {transform_indices = @transform_10, window_bounds = array<i64: 1, 1, 64>}, {transform_indices = @transform_11, window_bounds = array<i64: 1, 1, 64>}, {transform_indices = @transform_12, window_bounds = array<i64: 1, 64, 256>}, {transform_indices = @transform_13, window_bounds = array<i64: 1, 1, 256>}, {transform_indices = @transform_14, window_bounds = array<i64: 1, 256, 64>}, {transform_indices = @transform_15, window_bounds = array<i64: 1, 1, 64>}, {pipeline_mode = #tpu.pipeline_mode<synchronous>, transform_indices = @transform_16, window_bounds = array<i64: 2, 64>}]} {
    %c0_i32 = arith.constant 0 : i32
    %0 = arith.cmpi eq, %arg0, %c0_i32 : i32
    %1 = arith.extui %0 : i1 to i32
    %c0_i32_0 = arith.constant 0 : i32
    %2 = arith.cmpi ne, %1, %c0_i32_0 : i32
    scf.if %2 {
      %c0_109 = arith.constant 0 : index
      %c0_110 = arith.constant 0 : index
      %c0_111 = arith.constant 0 : index
      %292 = vector.load %arg1[%c0_109, %c0_110, %c0_111] : memref<2x16x48xf32, #tpu.memory_space<vmem>>, vector<2x16x48xf32>
      %293 = vector.shape_cast %292 : vector<2x16x48xf32> to vector<32x48xf32>
      %294 = arith.truncf %293 : vector<32x48xf32> to vector<32x48xbf16>
      %c0_112 = arith.constant 0 : index
      %c0_113 = arith.constant 0 : index
      %295 = vector.load %arg2[%c0_112, %c0_113] : memref<48x64xbf16, #tpu.memory_space<vmem>>, vector<48x64xbf16>
      %cst_114 = arith.constant dense<0.000000e+00> : vector<32x64xf32>
      %296 = tpu.matmul %294, %295, %cst_114 {dimension_numbers = #tpu.dot_dimension_numbers<[1], [0], [0], [1], [0, 0, 1, 1], [], []>} : vector<32x48xbf16>, vector<48x64xbf16>, vector<32x64xf32> -> vector<32x64xf32>
      %c0_115 = arith.constant 0 : index
      %c0_116 = arith.constant 0 : index
      %297 = vector.load %arg3[%c0_115, %c0_116] : memref<1x64xf32, #tpu.memory_space<vmem>>, vector<1x64xf32>
      %298 = vector.broadcast %297 : vector<1x64xf32> to vector<32x64xf32>
      %299 = arith.addf %296, %298 : vector<32x64xf32>
      %c0_117 = arith.constant 0 : index
      %c0_118 = arith.constant 0 : index
      %300 = vector.load %arg4[%c0_117, %c0_118] : memref<1x64xf32, #tpu.memory_space<vmem>>, vector<1x64xf32>
      %c0_119 = arith.constant 0 : index
      %c0_120 = arith.constant 0 : index
      %301 = vector.load %arg5[%c0_119, %c0_120] : memref<17x64xf32, #tpu.memory_space<vmem>>, vector<1x64xf32>
      %302 = arith.addf %300, %301 : vector<1x64xf32>
      %c1 = arith.constant 1 : index
      %c0_121 = arith.constant 0 : index
      %303 = vector.load %arg5[%c1, %c0_121] : memref<17x64xf32, #tpu.memory_space<vmem>>, vector<16x64xf32>
      %c0_122 = arith.constant 0 : index
      %c0_123 = arith.constant 0 : index
      %304 = vector.load %arg18[%c0_122, %c0_123] : memref<34x64xf32, #tpu.memory_space<vmem>>, vector<1x64xf32>
      tpu.vector_store %arg18[%c0_122, %c0_123], %302 {strides = array<i32>} : memref<34x64xf32, #tpu.memory_space<vmem>>, vector<1x64xf32>,
      %305 = vector.extract_strided_slice %299 {offsets = [0, 0], sizes = [16, 64], strides = [1, 1]} : vector<32x64xf32> to vector<16x64xf32>
      %306 = arith.addf %305, %303 : vector<16x64xf32>
      %c1_124 = arith.constant 1 : index
      %c0_125 = arith.constant 0 : index
      %307 = vector.load %arg18[%c1_124, %c0_125] : memref<34x64xf32, #tpu.memory_space<vmem>>, vector<16x64xf32>
      tpu.vector_store %arg18[%c1_124, %c0_125], %306 {strides = array<i32>} : memref<34x64xf32, #tpu.memory_space<vmem>>, vector<16x64xf32>,
      %c17_126 = arith.constant 17 : index
      %c0_127 = arith.constant 0 : index
      %308 = vector.load %arg18[%c17_126, %c0_127] : memref<34x64xf32, #tpu.memory_space<vmem>>, vector<1x64xf32>
      tpu.vector_store %arg18[%c17_126, %c0_127], %302 {strides = array<i32>} : memref<34x64xf32, #tpu.memory_space<vmem>>, vector<1x64xf32>,
      %309 = vector.extract_strided_slice %299 {offsets = [16, 0], sizes = [16, 64], strides = [1, 1]} : vector<32x64xf32> to vector<16x64xf32>
      %310 = arith.addf %309, %303 : vector<16x64xf32>
      %c18 = arith.constant 18 : index
      %c0_128 = arith.constant 0 : index
      %311 = vector.load %arg18[%c18, %c0_128] : memref<34x64xf32, #tpu.memory_space<vmem>>, vector<16x64xf32>
      tpu.vector_store %arg18[%c18, %c0_128], %310 {strides = array<i32>} : memref<34x64xf32, #tpu.memory_space<vmem>>, vector<16x64xf32>,
    } else {
    }
    %c0 = arith.constant 0 : index
    %c0_1 = arith.constant 0 : index
    %3 = vector.load %arg18[%c0, %c0_1] : memref<34x64xf32, #tpu.memory_space<vmem>>, vector<34x64xf32>
    %c0_2 = arith.constant 0 : index
    %c0_3 = arith.constant 0 : index
    %c0_4 = arith.constant 0 : index
    %4 = vector.load %arg6[%c0_2, %c0_3, %c0_4] : memref<1x1x64xf32, #tpu.memory_space<vmem>>, vector<1x1x64xf32>
    %5 = vector.shape_cast %4 : vector<1x1x64xf32> to vector<1x64xf32>
    %c0_5 = arith.constant 0 : index
    %c0_6 = arith.constant 0 : index
    %c0_7 = arith.constant 0 : index
    %6 = vector.load %arg7[%c0_5, %c0_6, %c0_7] : memref<1x1x64xf32, #tpu.memory_space<vmem>>, vector<1x1x64xf32>
    %7 = vector.shape_cast %6 : vector<1x1x64xf32> to vector<1x64xf32>
    %cst = arith.constant dense<0.000000e+00> : vector<34xf32>
    %8 = vector.multi_reduction <add>, %3, %cst [1] : vector<34x64xf32> to vector<34xf32>
    %9 = vector.shape_cast %8 : vector<34xf32> to vector<34x1xf32>
    %cst_8 = arith.constant 6.400000e+01 : f32
    %10 = vector.broadcast %cst_8 : f32 to vector<34x1xf32>
    %11 = arith.divf %9, %10 : vector<34x1xf32>
    %12 = vector.broadcast %11 : vector<34x1xf32> to vector<34x64xf32>
    %13 = arith.subf %3, %12 : vector<34x64xf32>
    %14 = arith.mulf %13, %13 : vector<34x64xf32>
    %cst_9 = arith.constant dense<0.000000e+00> : vector<34xf32>
    %15 = vector.multi_reduction <add>, %14, %cst_9 [1] : vector<34x64xf32> to vector<34xf32>
    %16 = vector.shape_cast %15 : vector<34xf32> to vector<34x1xf32>
    %cst_10 = arith.constant 6.400000e+01 : f32
    %17 = vector.broadcast %cst_10 : f32 to vector<34x1xf32>
    %18 = arith.divf %16, %17 : vector<34x1xf32>
    %19 = vector.broadcast %11 : vector<34x1xf32> to vector<34x64xf32>
    %20 = arith.subf %3, %19 : vector<34x64xf32>
    %cst_11 = arith.constant 9.99999974E-6 : f32
    %21 = vector.broadcast %cst_11 : f32 to vector<34x1xf32>
    %22 = arith.addf %18, %21 : vector<34x1xf32>
    %23 = math.rsqrt %22 : vector<34x1xf32>
    %24 = vector.broadcast %23 : vector<34x1xf32> to vector<34x64xf32>
    %25 = arith.mulf %20, %24 : vector<34x64xf32>
    %26 = vector.broadcast %5 : vector<1x64xf32> to vector<34x64xf32>
    %27 = arith.mulf %25, %26 : vector<34x64xf32>
    %28 = vector.broadcast %7 : vector<1x64xf32> to vector<34x64xf32>
    %29 = arith.addf %27, %28 : vector<34x64xf32>
    %30 = arith.truncf %29 : vector<34x64xf32> to vector<34x64xbf16>
    %c0_12 = arith.constant 0 : index
    %c0_13 = arith.constant 0 : index
    %c0_14 = arith.constant 0 : index
    %31 = vector.load %arg8[%c0_12, %c0_13, %c0_14] : memref<1x64x192xbf16, #tpu.memory_space<vmem>>, vector<1x64x192xbf16>
    %32 = vector.shape_cast %31 : vector<1x64x192xbf16> to vector<64x192xbf16>
    %cst_15 = arith.constant dense<0.000000e+00> : vector<34x192xf32>
    %33 = tpu.matmul %30, %32, %cst_15 {dimension_numbers = #tpu.dot_dimension_numbers<[1], [0], [0], [1], [0, 0, 1, 1], [], []>} : vector<34x64xbf16>, vector<64x192xbf16>, vector<34x192xf32> -> vector<34x192xf32>
    %c0_16 = arith.constant 0 : index
    %c0_17 = arith.constant 0 : index
    %c0_18 = arith.constant 0 : index
    %34 = vector.load %arg9[%c0_16, %c0_17, %c0_18] : memref<1x64x64xbf16, #tpu.memory_space<vmem>>, vector<1x64x64xbf16>
    %35 = vector.shape_cast %34 : vector<1x64x64xbf16> to vector<64x64xbf16>
    %36 = vector.extract_strided_slice %33 {offsets = [0, 0], sizes = [17, 64], strides = [1, 1]} : vector<34x192xf32> to vector<17x64xf32>
    %37 = arith.truncf %36 : vector<17x64xf32> to vector<17x64xbf16>
    %38 = vector.extract_strided_slice %33 {offsets = [0, 64], sizes = [17, 64], strides = [1, 1]} : vector<34x192xf32> to vector<17x64xf32>
    %39 = arith.truncf %38 : vector<17x64xf32> to vector<17x64xbf16>
    %40 = vector.extract_strided_slice %33 {offsets = [0, 128], sizes = [17, 64], strides = [1, 1]} : vector<34x192xf32> to vector<17x64xf32>
    %41 = arith.truncf %40 : vector<17x64xf32> to vector<17x64xbf16>
    %42 = vector.extract_strided_slice %37 {offsets = [0, 0], sizes = [17, 16], strides = [1, 1]} : vector<17x64xbf16> to vector<17x16xbf16>
    %43 = vector.extract_strided_slice %39 {offsets = [0, 0], sizes = [17, 16], strides = [1, 1]} : vector<17x64xbf16> to vector<17x16xbf16>
    %44 = vector.extract_strided_slice %41 {offsets = [0, 0], sizes = [17, 16], strides = [1, 1]} : vector<17x64xbf16> to vector<17x16xbf16>
    %cst_19 = arith.constant dense<0.000000e+00> : vector<17x17xf32>
    %45 = tpu.matmul %42, %43, %cst_19 {dimension_numbers = #tpu.dot_dimension_numbers<[1], [1], [0], [0], [0, 0, 1, 0], [], []>} : vector<17x16xbf16>, vector<17x16xbf16>, vector<17x17xf32> -> vector<17x17xf32>
    %cst_20 = arith.constant 1.250000e-01 : f32
    %46 = vector.broadcast %cst_20 : f32 to vector<17x17xf32>
    %47 = arith.mulf %45, %46 : vector<17x17xf32>
    %cst_21 = arith.constant dense<0xFF800000> : vector<17xf32>
    %48 = vector.multi_reduction <maximumf>, %47, %cst_21 [1] : vector<17x17xf32> to vector<17xf32>
    %49 = vector.shape_cast %48 : vector<17xf32> to vector<17x1xf32>
    %50 = vector.broadcast %49 : vector<17x1xf32> to vector<17x17xf32>
    %51 = arith.subf %47, %50 : vector<17x17xf32>
    %52 = math.exp %51 : vector<17x17xf32>
    %cst_22 = arith.constant dense<0.000000e+00> : vector<17xf32>
    %53 = vector.multi_reduction <add>, %52, %cst_22 [1] : vector<17x17xf32> to vector<17xf32>
    %54 = vector.shape_cast %53 : vector<17xf32> to vector<17x1xf32>
    %55 = tpu.reciprocal %54 {approx = true} : vector<17x1xf32> -> vector<17x1xf32>
    %56 = vector.broadcast %55 : vector<17x1xf32> to vector<17x17xf32>
    %57 = arith.mulf %52, %56 : vector<17x17xf32>
    %58 = arith.truncf %57 : vector<17x17xf32> to vector<17x17xbf16>
    %cst_23 = arith.constant dense<0.000000e+00> : vector<17x16xf32>
    %59 = tpu.matmul %58, %44, %cst_23 {dimension_numbers = #tpu.dot_dimension_numbers<[1], [0], [0], [1], [0, 0, 1, 1], [], []>} : vector<17x17xbf16>, vector<17x16xbf16>, vector<17x16xf32> -> vector<17x16xf32>
    %60 = arith.truncf %59 : vector<17x16xf32> to vector<17x16xbf16>
    %61 = vector.extract_strided_slice %35 {offsets = [0, 0], sizes = [16, 64], strides = [1, 1]} : vector<64x64xbf16> to vector<16x64xbf16>
    %cst_24 = arith.constant dense<0.000000e+00> : vector<17x64xf32>
    %62 = tpu.matmul %60, %61, %cst_24 {dimension_numbers = #tpu.dot_dimension_numbers<[1], [0], [0], [1], [0, 0, 1, 1], [], []>} : vector<17x16xbf16>, vector<16x64xbf16>, vector<17x64xf32> -> vector<17x64xf32>
    %63 = vector.extract_strided_slice %37 {offsets = [0, 16], sizes = [17, 16], strides = [1, 1]} : vector<17x64xbf16> to vector<17x16xbf16>
    %64 = vector.extract_strided_slice %39 {offsets = [0, 16], sizes = [17, 16], strides = [1, 1]} : vector<17x64xbf16> to vector<17x16xbf16>
    %65 = vector.extract_strided_slice %41 {offsets = [0, 16], sizes = [17, 16], strides = [1, 1]} : vector<17x64xbf16> to vector<17x16xbf16>
    %cst_25 = arith.constant dense<0.000000e+00> : vector<17x17xf32>
    %66 = tpu.matmul %63, %64, %cst_25 {dimension_numbers = #tpu.dot_dimension_numbers<[1], [1], [0], [0], [0, 0, 1, 0], [], []>} : vector<17x16xbf16>, vector<17x16xbf16>, vector<17x17xf32> -> vector<17x17xf32>
    %cst_26 = arith.constant 1.250000e-01 : f32
    %67 = vector.broadcast %cst_26 : f32 to vector<17x17xf32>
    %68 = arith.mulf %66, %67 : vector<17x17xf32>
    %cst_27 = arith.constant dense<0xFF800000> : vector<17xf32>
    %69 = vector.multi_reduction <maximumf>, %68, %cst_27 [1] : vector<17x17xf32> to vector<17xf32>
    %70 = vector.shape_cast %69 : vector<17xf32> to vector<17x1xf32>
    %71 = vector.broadcast %70 : vector<17x1xf32> to vector<17x17xf32>
    %72 = arith.subf %68, %71 : vector<17x17xf32>
    %73 = math.exp %72 : vector<17x17xf32>
    %cst_28 = arith.constant dense<0.000000e+00> : vector<17xf32>
    %74 = vector.multi_reduction <add>, %73, %cst_28 [1] : vector<17x17xf32> to vector<17xf32>
    %75 = vector.shape_cast %74 : vector<17xf32> to vector<17x1xf32>
    %76 = tpu.reciprocal %75 {approx = true} : vector<17x1xf32> -> vector<17x1xf32>
    %77 = vector.broadcast %76 : vector<17x1xf32> to vector<17x17xf32>
    %78 = arith.mulf %73, %77 : vector<17x17xf32>
    %79 = arith.truncf %78 : vector<17x17xf32> to vector<17x17xbf16>
    %cst_29 = arith.constant dense<0.000000e+00> : vector<17x16xf32>
    %80 = tpu.matmul %79, %65, %cst_29 {dimension_numbers = #tpu.dot_dimension_numbers<[1], [0], [0], [1], [0, 0, 1, 1], [], []>} : vector<17x17xbf16>, vector<17x16xbf16>, vector<17x16xf32> -> vector<17x16xf32>
    %81 = arith.truncf %80 : vector<17x16xf32> to vector<17x16xbf16>
    %82 = vector.extract_strided_slice %35 {offsets = [16, 0], sizes = [16, 64], strides = [1, 1]} : vector<64x64xbf16> to vector<16x64xbf16>
    %cst_30 = arith.constant dense<0.000000e+00> : vector<17x64xf32>
    %83 = tpu.matmul %81, %82, %cst_30 {dimension_numbers = #tpu.dot_dimension_numbers<[1], [0], [0], [1], [0, 0, 1, 1], [], []>} : vector<17x16xbf16>, vector<16x64xbf16>, vector<17x64xf32> -> vector<17x64xf32>
    %84 = arith.addf %62, %83 : vector<17x64xf32>
    %85 = vector.extract_strided_slice %37 {offsets = [0, 32], sizes = [17, 16], strides = [1, 1]} : vector<17x64xbf16> to vector<17x16xbf16>
    %86 = vector.extract_strided_slice %39 {offsets = [0, 32], sizes = [17, 16], strides = [1, 1]} : vector<17x64xbf16> to vector<17x16xbf16>
    %87 = vector.extract_strided_slice %41 {offsets = [0, 32], sizes = [17, 16], strides = [1, 1]} : vector<17x64xbf16> to vector<17x16xbf16>
    %cst_31 = arith.constant dense<0.000000e+00> : vector<17x17xf32>
    %88 = tpu.matmul %85, %86, %cst_31 {dimension_numbers = #tpu.dot_dimension_numbers<[1], [1], [0], [0], [0, 0, 1, 0], [], []>} : vector<17x16xbf16>, vector<17x16xbf16>, vector<17x17xf32> -> vector<17x17xf32>
    %cst_32 = arith.constant 1.250000e-01 : f32
    %89 = vector.broadcast %cst_32 : f32 to vector<17x17xf32>
    %90 = arith.mulf %88, %89 : vector<17x17xf32>
    %cst_33 = arith.constant dense<0xFF800000> : vector<17xf32>
    %91 = vector.multi_reduction <maximumf>, %90, %cst_33 [1] : vector<17x17xf32> to vector<17xf32>
    %92 = vector.shape_cast %91 : vector<17xf32> to vector<17x1xf32>
    %93 = vector.broadcast %92 : vector<17x1xf32> to vector<17x17xf32>
    %94 = arith.subf %90, %93 : vector<17x17xf32>
    %95 = math.exp %94 : vector<17x17xf32>
    %cst_34 = arith.constant dense<0.000000e+00> : vector<17xf32>
    %96 = vector.multi_reduction <add>, %95, %cst_34 [1] : vector<17x17xf32> to vector<17xf32>
    %97 = vector.shape_cast %96 : vector<17xf32> to vector<17x1xf32>
    %98 = tpu.reciprocal %97 {approx = true} : vector<17x1xf32> -> vector<17x1xf32>
    %99 = vector.broadcast %98 : vector<17x1xf32> to vector<17x17xf32>
    %100 = arith.mulf %95, %99 : vector<17x17xf32>
    %101 = arith.truncf %100 : vector<17x17xf32> to vector<17x17xbf16>
    %cst_35 = arith.constant dense<0.000000e+00> : vector<17x16xf32>
    %102 = tpu.matmul %101, %87, %cst_35 {dimension_numbers = #tpu.dot_dimension_numbers<[1], [0], [0], [1], [0, 0, 1, 1], [], []>} : vector<17x17xbf16>, vector<17x16xbf16>, vector<17x16xf32> -> vector<17x16xf32>
    %103 = arith.truncf %102 : vector<17x16xf32> to vector<17x16xbf16>
    %104 = vector.extract_strided_slice %35 {offsets = [32, 0], sizes = [16, 64], strides = [1, 1]} : vector<64x64xbf16> to vector<16x64xbf16>
    %cst_36 = arith.constant dense<0.000000e+00> : vector<17x64xf32>
    %105 = tpu.matmul %103, %104, %cst_36 {dimension_numbers = #tpu.dot_dimension_numbers<[1], [0], [0], [1], [0, 0, 1, 1], [], []>} : vector<17x16xbf16>, vector<16x64xbf16>, vector<17x64xf32> -> vector<17x64xf32>
    %106 = arith.addf %84, %105 : vector<17x64xf32>
    %107 = vector.extract_strided_slice %37 {offsets = [0, 48], sizes = [17, 16], strides = [1, 1]} : vector<17x64xbf16> to vector<17x16xbf16>
    %108 = vector.extract_strided_slice %39 {offsets = [0, 48], sizes = [17, 16], strides = [1, 1]} : vector<17x64xbf16> to vector<17x16xbf16>
    %109 = vector.extract_strided_slice %41 {offsets = [0, 48], sizes = [17, 16], strides = [1, 1]} : vector<17x64xbf16> to vector<17x16xbf16>
    %cst_37 = arith.constant dense<0.000000e+00> : vector<17x17xf32>
    %110 = tpu.matmul %107, %108, %cst_37 {dimension_numbers = #tpu.dot_dimension_numbers<[1], [1], [0], [0], [0, 0, 1, 0], [], []>} : vector<17x16xbf16>, vector<17x16xbf16>, vector<17x17xf32> -> vector<17x17xf32>
    %cst_38 = arith.constant 1.250000e-01 : f32
    %111 = vector.broadcast %cst_38 : f32 to vector<17x17xf32>
    %112 = arith.mulf %110, %111 : vector<17x17xf32>
    %cst_39 = arith.constant dense<0xFF800000> : vector<17xf32>
    %113 = vector.multi_reduction <maximumf>, %112, %cst_39 [1] : vector<17x17xf32> to vector<17xf32>
    %114 = vector.shape_cast %113 : vector<17xf32> to vector<17x1xf32>
    %115 = vector.broadcast %114 : vector<17x1xf32> to vector<17x17xf32>
    %116 = arith.subf %112, %115 : vector<17x17xf32>
    %117 = math.exp %116 : vector<17x17xf32>
    %cst_40 = arith.constant dense<0.000000e+00> : vector<17xf32>
    %118 = vector.multi_reduction <add>, %117, %cst_40 [1] : vector<17x17xf32> to vector<17xf32>
    %119 = vector.shape_cast %118 : vector<17xf32> to vector<17x1xf32>
    %120 = tpu.reciprocal %119 {approx = true} : vector<17x1xf32> -> vector<17x1xf32>
    %121 = vector.broadcast %120 : vector<17x1xf32> to vector<17x17xf32>
    %122 = arith.mulf %117, %121 : vector<17x17xf32>
    %123 = arith.truncf %122 : vector<17x17xf32> to vector<17x17xbf16>
    %cst_41 = arith.constant dense<0.000000e+00> : vector<17x16xf32>
    %124 = tpu.matmul %123, %109, %cst_41 {dimension_numbers = #tpu.dot_dimension_numbers<[1], [0], [0], [1], [0, 0, 1, 1], [], []>} : vector<17x17xbf16>, vector<17x16xbf16>, vector<17x16xf32> -> vector<17x16xf32>
    %125 = arith.truncf %124 : vector<17x16xf32> to vector<17x16xbf16>
    %126 = vector.extract_strided_slice %35 {offsets = [48, 0], sizes = [16, 64], strides = [1, 1]} : vector<64x64xbf16> to vector<16x64xbf16>
    %cst_42 = arith.constant dense<0.000000e+00> : vector<17x64xf32>
    %127 = tpu.matmul %125, %126, %cst_42 {dimension_numbers = #tpu.dot_dimension_numbers<[1], [0], [0], [1], [0, 0, 1, 1], [], []>} : vector<17x16xbf16>, vector<16x64xbf16>, vector<17x64xf32> -> vector<17x64xf32>
    %128 = arith.addf %106, %127 : vector<17x64xf32>
    %129 = vector.extract_strided_slice %3 {offsets = [0, 0], sizes = [17, 64], strides = [1, 1]} : vector<34x64xf32> to vector<17x64xf32>
    %130 = arith.addf %129, %128 : vector<17x64xf32>
    %c0_43 = arith.constant 0 : index
    %c0_44 = arith.constant 0 : index
    %c0_45 = arith.constant 0 : index
    %131 = vector.load %arg10[%c0_43, %c0_44, %c0_45] : memref<1x1x64xf32, #tpu.memory_space<vmem>>, vector<1x1x64xf32>
    %132 = vector.shape_cast %131 : vector<1x1x64xf32> to vector<1x64xf32>
    %133 = vector.broadcast %132 : vector<1x64xf32> to vector<17x64xf32>
    %134 = arith.addf %130, %133 : vector<17x64xf32>
    %c0_46 = arith.constant 0 : index
    %c0_47 = arith.constant 0 : index
    %135 = vector.load %arg18[%c0_46, %c0_47] : memref<34x64xf32, #tpu.memory_space<vmem>>, vector<17x64xf32>
    tpu.vector_store %arg18[%c0_46, %c0_47], %134 {strides = array<i32>} : memref<34x64xf32, #tpu.memory_space<vmem>>, vector<17x64xf32>,
    %136 = vector.extract_strided_slice %33 {offsets = [17, 0], sizes = [17, 64], strides = [1, 1]} : vector<34x192xf32> to vector<17x64xf32>
    %137 = arith.truncf %136 : vector<17x64xf32> to vector<17x64xbf16>
    %138 = vector.extract_strided_slice %33 {offsets = [17, 64], sizes = [17, 64], strides = [1, 1]} : vector<34x192xf32> to vector<17x64xf32>
    %139 = arith.truncf %138 : vector<17x64xf32> to vector<17x64xbf16>
    %140 = vector.extract_strided_slice %33 {offsets = [17, 128], sizes = [17, 64], strides = [1, 1]} : vector<34x192xf32> to vector<17x64xf32>
    %141 = arith.truncf %140 : vector<17x64xf32> to vector<17x64xbf16>
    %142 = vector.extract_strided_slice %137 {offsets = [0, 0], sizes = [17, 16], strides = [1, 1]} : vector<17x64xbf16> to vector<17x16xbf16>
    %143 = vector.extract_strided_slice %139 {offsets = [0, 0], sizes = [17, 16], strides = [1, 1]} : vector<17x64xbf16> to vector<17x16xbf16>
    %144 = vector.extract_strided_slice %141 {offsets = [0, 0], sizes = [17, 16], strides = [1, 1]} : vector<17x64xbf16> to vector<17x16xbf16>
    %cst_48 = arith.constant dense<0.000000e+00> : vector<17x17xf32>
    %145 = tpu.matmul %142, %143, %cst_48 {dimension_numbers = #tpu.dot_dimension_numbers<[1], [1], [0], [0], [0, 0, 1, 0], [], []>} : vector<17x16xbf16>, vector<17x16xbf16>, vector<17x17xf32> -> vector<17x17xf32>
    %cst_49 = arith.constant 1.250000e-01 : f32
    %146 = vector.broadcast %cst_49 : f32 to vector<17x17xf32>
    %147 = arith.mulf %145, %146 : vector<17x17xf32>
    %cst_50 = arith.constant dense<0xFF800000> : vector<17xf32>
    %148 = vector.multi_reduction <maximumf>, %147, %cst_50 [1] : vector<17x17xf32> to vector<17xf32>
    %149 = vector.shape_cast %148 : vector<17xf32> to vector<17x1xf32>
    %150 = vector.broadcast %149 : vector<17x1xf32> to vector<17x17xf32>
    %151 = arith.subf %147, %150 : vector<17x17xf32>
    %152 = math.exp %151 : vector<17x17xf32>
    %cst_51 = arith.constant dense<0.000000e+00> : vector<17xf32>
    %153 = vector.multi_reduction <add>, %152, %cst_51 [1] : vector<17x17xf32> to vector<17xf32>
    %154 = vector.shape_cast %153 : vector<17xf32> to vector<17x1xf32>
    %155 = tpu.reciprocal %154 {approx = true} : vector<17x1xf32> -> vector<17x1xf32>
    %156 = vector.broadcast %155 : vector<17x1xf32> to vector<17x17xf32>
    %157 = arith.mulf %152, %156 : vector<17x17xf32>
    %158 = arith.truncf %157 : vector<17x17xf32> to vector<17x17xbf16>
    %cst_52 = arith.constant dense<0.000000e+00> : vector<17x16xf32>
    %159 = tpu.matmul %158, %144, %cst_52 {dimension_numbers = #tpu.dot_dimension_numbers<[1], [0], [0], [1], [0, 0, 1, 1], [], []>} : vector<17x17xbf16>, vector<17x16xbf16>, vector<17x16xf32> -> vector<17x16xf32>
    %160 = arith.truncf %159 : vector<17x16xf32> to vector<17x16xbf16>
    %161 = vector.extract_strided_slice %35 {offsets = [0, 0], sizes = [16, 64], strides = [1, 1]} : vector<64x64xbf16> to vector<16x64xbf16>
    %cst_53 = arith.constant dense<0.000000e+00> : vector<17x64xf32>
    %162 = tpu.matmul %160, %161, %cst_53 {dimension_numbers = #tpu.dot_dimension_numbers<[1], [0], [0], [1], [0, 0, 1, 1], [], []>} : vector<17x16xbf16>, vector<16x64xbf16>, vector<17x64xf32> -> vector<17x64xf32>
    %163 = vector.extract_strided_slice %137 {offsets = [0, 16], sizes = [17, 16], strides = [1, 1]} : vector<17x64xbf16> to vector<17x16xbf16>
    %164 = vector.extract_strided_slice %139 {offsets = [0, 16], sizes = [17, 16], strides = [1, 1]} : vector<17x64xbf16> to vector<17x16xbf16>
    %165 = vector.extract_strided_slice %141 {offsets = [0, 16], sizes = [17, 16], strides = [1, 1]} : vector<17x64xbf16> to vector<17x16xbf16>
    %cst_54 = arith.constant dense<0.000000e+00> : vector<17x17xf32>
    %166 = tpu.matmul %163, %164, %cst_54 {dimension_numbers = #tpu.dot_dimension_numbers<[1], [1], [0], [0], [0, 0, 1, 0], [], []>} : vector<17x16xbf16>, vector<17x16xbf16>, vector<17x17xf32> -> vector<17x17xf32>
    %cst_55 = arith.constant 1.250000e-01 : f32
    %167 = vector.broadcast %cst_55 : f32 to vector<17x17xf32>
    %168 = arith.mulf %166, %167 : vector<17x17xf32>
    %cst_56 = arith.constant dense<0xFF800000> : vector<17xf32>
    %169 = vector.multi_reduction <maximumf>, %168, %cst_56 [1] : vector<17x17xf32> to vector<17xf32>
    %170 = vector.shape_cast %169 : vector<17xf32> to vector<17x1xf32>
    %171 = vector.broadcast %170 : vector<17x1xf32> to vector<17x17xf32>
    %172 = arith.subf %168, %171 : vector<17x17xf32>
    %173 = math.exp %172 : vector<17x17xf32>
    %cst_57 = arith.constant dense<0.000000e+00> : vector<17xf32>
    %174 = vector.multi_reduction <add>, %173, %cst_57 [1] : vector<17x17xf32> to vector<17xf32>
    %175 = vector.shape_cast %174 : vector<17xf32> to vector<17x1xf32>
    %176 = tpu.reciprocal %175 {approx = true} : vector<17x1xf32> -> vector<17x1xf32>
    %177 = vector.broadcast %176 : vector<17x1xf32> to vector<17x17xf32>
    %178 = arith.mulf %173, %177 : vector<17x17xf32>
    %179 = arith.truncf %178 : vector<17x17xf32> to vector<17x17xbf16>
    %cst_58 = arith.constant dense<0.000000e+00> : vector<17x16xf32>
    %180 = tpu.matmul %179, %165, %cst_58 {dimension_numbers = #tpu.dot_dimension_numbers<[1], [0], [0], [1], [0, 0, 1, 1], [], []>} : vector<17x17xbf16>, vector<17x16xbf16>, vector<17x16xf32> -> vector<17x16xf32>
    %181 = arith.truncf %180 : vector<17x16xf32> to vector<17x16xbf16>
    %182 = vector.extract_strided_slice %35 {offsets = [16, 0], sizes = [16, 64], strides = [1, 1]} : vector<64x64xbf16> to vector<16x64xbf16>
    %cst_59 = arith.constant dense<0.000000e+00> : vector<17x64xf32>
    %183 = tpu.matmul %181, %182, %cst_59 {dimension_numbers = #tpu.dot_dimension_numbers<[1], [0], [0], [1], [0, 0, 1, 1], [], []>} : vector<17x16xbf16>, vector<16x64xbf16>, vector<17x64xf32> -> vector<17x64xf32>
    %184 = arith.addf %162, %183 : vector<17x64xf32>
    %185 = vector.extract_strided_slice %137 {offsets = [0, 32], sizes = [17, 16], strides = [1, 1]} : vector<17x64xbf16> to vector<17x16xbf16>
    %186 = vector.extract_strided_slice %139 {offsets = [0, 32], sizes = [17, 16], strides = [1, 1]} : vector<17x64xbf16> to vector<17x16xbf16>
    %187 = vector.extract_strided_slice %141 {offsets = [0, 32], sizes = [17, 16], strides = [1, 1]} : vector<17x64xbf16> to vector<17x16xbf16>
    %cst_60 = arith.constant dense<0.000000e+00> : vector<17x17xf32>
    %188 = tpu.matmul %185, %186, %cst_60 {dimension_numbers = #tpu.dot_dimension_numbers<[1], [1], [0], [0], [0, 0, 1, 0], [], []>} : vector<17x16xbf16>, vector<17x16xbf16>, vector<17x17xf32> -> vector<17x17xf32>
    %cst_61 = arith.constant 1.250000e-01 : f32
    %189 = vector.broadcast %cst_61 : f32 to vector<17x17xf32>
    %190 = arith.mulf %188, %189 : vector<17x17xf32>
    %cst_62 = arith.constant dense<0xFF800000> : vector<17xf32>
    %191 = vector.multi_reduction <maximumf>, %190, %cst_62 [1] : vector<17x17xf32> to vector<17xf32>
    %192 = vector.shape_cast %191 : vector<17xf32> to vector<17x1xf32>
    %193 = vector.broadcast %192 : vector<17x1xf32> to vector<17x17xf32>
    %194 = arith.subf %190, %193 : vector<17x17xf32>
    %195 = math.exp %194 : vector<17x17xf32>
    %cst_63 = arith.constant dense<0.000000e+00> : vector<17xf32>
    %196 = vector.multi_reduction <add>, %195, %cst_63 [1] : vector<17x17xf32> to vector<17xf32>
    %197 = vector.shape_cast %196 : vector<17xf32> to vector<17x1xf32>
    %198 = tpu.reciprocal %197 {approx = true} : vector<17x1xf32> -> vector<17x1xf32>
    %199 = vector.broadcast %198 : vector<17x1xf32> to vector<17x17xf32>
    %200 = arith.mulf %195, %199 : vector<17x17xf32>
    %201 = arith.truncf %200 : vector<17x17xf32> to vector<17x17xbf16>
    %cst_64 = arith.constant dense<0.000000e+00> : vector<17x16xf32>
    %202 = tpu.matmul %201, %187, %cst_64 {dimension_numbers = #tpu.dot_dimension_numbers<[1], [0], [0], [1], [0, 0, 1, 1], [], []>} : vector<17x17xbf16>, vector<17x16xbf16>, vector<17x16xf32> -> vector<17x16xf32>
    %203 = arith.truncf %202 : vector<17x16xf32> to vector<17x16xbf16>
    %204 = vector.extract_strided_slice %35 {offsets = [32, 0], sizes = [16, 64], strides = [1, 1]} : vector<64x64xbf16> to vector<16x64xbf16>
    %cst_65 = arith.constant dense<0.000000e+00> : vector<17x64xf32>
    %205 = tpu.matmul %203, %204, %cst_65 {dimension_numbers = #tpu.dot_dimension_numbers<[1], [0], [0], [1], [0, 0, 1, 1], [], []>} : vector<17x16xbf16>, vector<16x64xbf16>, vector<17x64xf32> -> vector<17x64xf32>
    %206 = arith.addf %184, %205 : vector<17x64xf32>
    %207 = vector.extract_strided_slice %137 {offsets = [0, 48], sizes = [17, 16], strides = [1, 1]} : vector<17x64xbf16> to vector<17x16xbf16>
    %208 = vector.extract_strided_slice %139 {offsets = [0, 48], sizes = [17, 16], strides = [1, 1]} : vector<17x64xbf16> to vector<17x16xbf16>
    %209 = vector.extract_strided_slice %141 {offsets = [0, 48], sizes = [17, 16], strides = [1, 1]} : vector<17x64xbf16> to vector<17x16xbf16>
    %cst_66 = arith.constant dense<0.000000e+00> : vector<17x17xf32>
    %210 = tpu.matmul %207, %208, %cst_66 {dimension_numbers = #tpu.dot_dimension_numbers<[1], [1], [0], [0], [0, 0, 1, 0], [], []>} : vector<17x16xbf16>, vector<17x16xbf16>, vector<17x17xf32> -> vector<17x17xf32>
    %cst_67 = arith.constant 1.250000e-01 : f32
    %211 = vector.broadcast %cst_67 : f32 to vector<17x17xf32>
    %212 = arith.mulf %210, %211 : vector<17x17xf32>
    %cst_68 = arith.constant dense<0xFF800000> : vector<17xf32>
    %213 = vector.multi_reduction <maximumf>, %212, %cst_68 [1] : vector<17x17xf32> to vector<17xf32>
    %214 = vector.shape_cast %213 : vector<17xf32> to vector<17x1xf32>
    %215 = vector.broadcast %214 : vector<17x1xf32> to vector<17x17xf32>
    %216 = arith.subf %212, %215 : vector<17x17xf32>
    %217 = math.exp %216 : vector<17x17xf32>
    %cst_69 = arith.constant dense<0.000000e+00> : vector<17xf32>
    %218 = vector.multi_reduction <add>, %217, %cst_69 [1] : vector<17x17xf32> to vector<17xf32>
    %219 = vector.shape_cast %218 : vector<17xf32> to vector<17x1xf32>
    %220 = tpu.reciprocal %219 {approx = true} : vector<17x1xf32> -> vector<17x1xf32>
    %221 = vector.broadcast %220 : vector<17x1xf32> to vector<17x17xf32>
    %222 = arith.mulf %217, %221 : vector<17x17xf32>
    %223 = arith.truncf %222 : vector<17x17xf32> to vector<17x17xbf16>
    %cst_70 = arith.constant dense<0.000000e+00> : vector<17x16xf32>
    %224 = tpu.matmul %223, %209, %cst_70 {dimension_numbers = #tpu.dot_dimension_numbers<[1], [0], [0], [1], [0, 0, 1, 1], [], []>} : vector<17x17xbf16>, vector<17x16xbf16>, vector<17x16xf32> -> vector<17x16xf32>
    %225 = arith.truncf %224 : vector<17x16xf32> to vector<17x16xbf16>
    %226 = vector.extract_strided_slice %35 {offsets = [48, 0], sizes = [16, 64], strides = [1, 1]} : vector<64x64xbf16> to vector<16x64xbf16>
    %cst_71 = arith.constant dense<0.000000e+00> : vector<17x64xf32>
    %227 = tpu.matmul %225, %226, %cst_71 {dimension_numbers = #tpu.dot_dimension_numbers<[1], [0], [0], [1], [0, 0, 1, 1], [], []>} : vector<17x16xbf16>, vector<16x64xbf16>, vector<17x64xf32> -> vector<17x64xf32>
    %228 = arith.addf %206, %227 : vector<17x64xf32>
    %229 = vector.extract_strided_slice %3 {offsets = [17, 0], sizes = [17, 64], strides = [1, 1]} : vector<34x64xf32> to vector<17x64xf32>
    %230 = arith.addf %229, %228 : vector<17x64xf32>
    %c0_72 = arith.constant 0 : index
    %c0_73 = arith.constant 0 : index
    %c0_74 = arith.constant 0 : index
    %231 = vector.load %arg10[%c0_72, %c0_73, %c0_74] : memref<1x1x64xf32, #tpu.memory_space<vmem>>, vector<1x1x64xf32>
    %232 = vector.shape_cast %231 : vector<1x1x64xf32> to vector<1x64xf32>
    %233 = vector.broadcast %232 : vector<1x64xf32> to vector<17x64xf32>
    %234 = arith.addf %230, %233 : vector<17x64xf32>
    %c17 = arith.constant 17 : index
    %c0_75 = arith.constant 0 : index
    %235 = vector.load %arg18[%c17, %c0_75] : memref<34x64xf32, #tpu.memory_space<vmem>>, vector<17x64xf32>
    tpu.vector_store %arg18[%c17, %c0_75], %234 {strides = array<i32>} : memref<34x64xf32, #tpu.memory_space<vmem>>, vector<17x64xf32>,
    %c0_76 = arith.constant 0 : index
    %c0_77 = arith.constant 0 : index
    %236 = vector.load %arg18[%c0_76, %c0_77] : memref<34x64xf32, #tpu.memory_space<vmem>>, vector<34x64xf32>
    %c0_78 = arith.constant 0 : index
    %c0_79 = arith.constant 0 : index
    %c0_80 = arith.constant 0 : index
    %237 = vector.load %arg11[%c0_78, %c0_79, %c0_80] : memref<1x1x64xf32, #tpu.memory_space<vmem>>, vector<1x1x64xf32>
    %238 = vector.shape_cast %237 : vector<1x1x64xf32> to vector<1x64xf32>
    %c0_81 = arith.constant 0 : index
    %c0_82 = arith.constant 0 : index
    %c0_83 = arith.constant 0 : index
    %239 = vector.load %arg12[%c0_81, %c0_82, %c0_83] : memref<1x1x64xf32, #tpu.memory_space<vmem>>, vector<1x1x64xf32>
    %240 = vector.shape_cast %239 : vector<1x1x64xf32> to vector<1x64xf32>
    %cst_84 = arith.constant dense<0.000000e+00> : vector<34xf32>
    %241 = vector.multi_reduction <add>, %236, %cst_84 [1] : vector<34x64xf32> to vector<34xf32>
    %242 = vector.shape_cast %241 : vector<34xf32> to vector<34x1xf32>
    %cst_85 = arith.constant 6.400000e+01 : f32
    %243 = vector.broadcast %cst_85 : f32 to vector<34x1xf32>
    %244 = arith.divf %242, %243 : vector<34x1xf32>
    %245 = vector.broadcast %244 : vector<34x1xf32> to vector<34x64xf32>
    %246 = arith.subf %236, %245 : vector<34x64xf32>
    %247 = arith.mulf %246, %246 : vector<34x64xf32>
    %cst_86 = arith.constant dense<0.000000e+00> : vector<34xf32>
    %248 = vector.multi_reduction <add>, %247, %cst_86 [1] : vector<34x64xf32> to vector<34xf32>
    %249 = vector.shape_cast %248 : vector<34xf32> to vector<34x1xf32>
    %cst_87 = arith.constant 6.400000e+01 : f32
    %250 = vector.broadcast %cst_87 : f32 to vector<34x1xf32>
    %251 = arith.divf %249, %250 : vector<34x1xf32>
    %252 = vector.broadcast %244 : vector<34x1xf32> to vector<34x64xf32>
    %253 = arith.subf %236, %252 : vector<34x64xf32>
    %cst_88 = arith.constant 9.99999974E-6 : f32
    %254 = vector.broadcast %cst_88 : f32 to vector<34x1xf32>
    %255 = arith.addf %251, %254 : vector<34x1xf32>
    %256 = math.rsqrt %255 : vector<34x1xf32>
    %257 = vector.broadcast %256 : vector<34x1xf32> to vector<34x64xf32>
    %258 = arith.mulf %253, %257 : vector<34x64xf32>
    %259 = vector.broadcast %238 : vector<1x64xf32> to vector<34x64xf32>
    %260 = arith.mulf %258, %259 : vector<34x64xf32>
    %261 = vector.broadcast %240 : vector<1x64xf32> to vector<34x64xf32>
    %262 = arith.addf %260, %261 : vector<34x64xf32>
    %263 = arith.truncf %262 : vector<34x64xf32> to vector<34x64xbf16>
    %c0_89 = arith.constant 0 : index
    %c0_90 = arith.constant 0 : index
    %c0_91 = arith.constant 0 : index
    %264 = vector.load %arg13[%c0_89, %c0_90, %c0_91] : memref<1x64x256xbf16, #tpu.memory_space<vmem>>, vector<1x64x256xbf16>
    %265 = vector.shape_cast %264 : vector<1x64x256xbf16> to vector<64x256xbf16>
    %cst_92 = arith.constant dense<0.000000e+00> : vector<34x256xf32>
    %266 = tpu.matmul %263, %265, %cst_92 {dimension_numbers = #tpu.dot_dimension_numbers<[1], [0], [0], [1], [0, 0, 1, 1], [], []>} : vector<34x64xbf16>, vector<64x256xbf16>, vector<34x256xf32> -> vector<34x256xf32>
    %c0_93 = arith.constant 0 : index
    %c0_94 = arith.constant 0 : index
    %c0_95 = arith.constant 0 : index
    %267 = vector.load %arg14[%c0_93, %c0_94, %c0_95] : memref<1x1x256xf32, #tpu.memory_space<vmem>>, vector<1x1x256xf32>
    %268 = vector.shape_cast %267 : vector<1x1x256xf32> to vector<1x256xf32>
    %269 = vector.broadcast %268 : vector<1x256xf32> to vector<34x256xf32>
    %270 = arith.addf %266, %269 : vector<34x256xf32>
    %cst_96 = arith.constant 5.000000e-01 : f32
    %271 = vector.broadcast %cst_96 : f32 to vector<34x256xf32>
    %272 = arith.mulf %271, %270 : vector<34x256xf32>
    %cst_97 = arith.constant 0.707106769 : f32
    %273 = vector.broadcast %cst_97 : f32 to vector<34x256xf32>
    %274 = arith.mulf %270, %273 : vector<34x256xf32>
    %275 = math.erf %274 : vector<34x256xf32>
    %cst_98 = arith.constant 1.000000e+00 : f32
    %276 = vector.broadcast %cst_98 : f32 to vector<34x256xf32>
    %277 = arith.addf %276, %275 : vector<34x256xf32>
    %278 = arith.mulf %272, %277 : vector<34x256xf32>
    %279 = arith.truncf %278 : vector<34x256xf32> to vector<34x256xbf16>
    %c0_99 = arith.constant 0 : index
    %c0_100 = arith.constant 0 : index
    %c0_101 = arith.constant 0 : index
    %280 = vector.load %arg15[%c0_99, %c0_100, %c0_101] : memref<1x256x64xbf16, #tpu.memory_space<vmem>>, vector<1x256x64xbf16>
    %281 = vector.shape_cast %280 : vector<1x256x64xbf16> to vector<256x64xbf16>
    %cst_102 = arith.constant dense<0.000000e+00> : vector<34x64xf32>
    %282 = tpu.matmul %279, %281, %cst_102 {dimension_numbers = #tpu.dot_dimension_numbers<[1], [0], [0], [1], [0, 0, 1, 1], [], []>} : vector<34x256xbf16>, vector<256x64xbf16>, vector<34x64xf32> -> vector<34x64xf32>
    %c0_103 = arith.constant 0 : index
    %c0_104 = arith.constant 0 : index
    %c0_105 = arith.constant 0 : index
    %283 = vector.load %arg16[%c0_103, %c0_104, %c0_105] : memref<1x1x64xf32, #tpu.memory_space<vmem>>, vector<1x1x64xf32>
    %284 = vector.shape_cast %283 : vector<1x1x64xf32> to vector<1x64xf32>
    %285 = vector.broadcast %284 : vector<1x64xf32> to vector<34x64xf32>
    %286 = arith.addf %282, %285 : vector<34x64xf32>
    %287 = arith.addf %236, %286 : vector<34x64xf32>
    %c0_106 = arith.constant 0 : index
    %c0_107 = arith.constant 0 : index
    %288 = vector.load %arg18[%c0_106, %c0_107] : memref<34x64xf32, #tpu.memory_space<vmem>>, vector<34x64xf32>
    tpu.vector_store %arg18[%c0_106, %c0_107], %287 {strides = array<i32>} : memref<34x64xf32, #tpu.memory_space<vmem>>, vector<34x64xf32>,
    %c1_i32 = arith.constant 1 : i32
    %289 = arith.cmpi eq, %arg0, %c1_i32 : i32
    %290 = arith.extui %289 : i1 to i32
    %c0_i32_108 = arith.constant 0 : i32
    %291 = arith.cmpi ne, %290, %c0_i32_108 : i32
    scf.if %291 {
      %292 = vector.extract_strided_slice %287 {offsets = [0, 0], sizes = [1, 64], strides = [1, 1]} : vector<34x64xf32> to vector<1x64xf32>
      %c0_109 = arith.constant 0 : index
      %c0_110 = arith.constant 0 : index
      %293 = vector.load %arg17[%c0_109, %c0_110] : memref<2x64xf32, #tpu.memory_space<vmem>>, vector<1x64xf32>
      tpu.vector_store %arg17[%c0_109, %c0_110], %292 {strides = array<i32>} : memref<2x64xf32, #tpu.memory_space<vmem>>, vector<1x64xf32>,
      %294 = vector.extract_strided_slice %287 {offsets = [17, 0], sizes = [1, 64], strides = [1, 1]} : vector<34x64xf32> to vector<1x64xf32>
      %c1 = arith.constant 1 : index
      %c0_111 = arith.constant 0 : index
      %295 = vector.load %arg17[%c1, %c0_111] : memref<2x64xf32, #tpu.memory_space<vmem>>, vector<1x64xf32>
      tpu.vector_store %arg17[%c1, %c0_111], %294 {strides = array<i32>} : memref<2x64xf32, #tpu.memory_space<vmem>>, vector<1x64xf32>,
    } else {
    }
    return
  }
  func.func @transform_0(%arg0: i32) -> (i32, i32, i32) {
    %c0_i32 = arith.constant 0 : i32
    %c0_i32_0 = arith.constant 0 : i32
    %c0_i32_1 = arith.constant 0 : i32
    %c0_i32_2 = arith.constant 0 : i32
    return %c0_i32, %c0_i32_0, %c0_i32_1 : i32, i32, i32
  }
  func.func @transform_1(%arg0: i32) -> (i32, i32) {
    %c0_i32 = arith.constant 0 : i32
    %c0_i32_0 = arith.constant 0 : i32
    %c0_i32_1 = arith.constant 0 : i32
    return %c0_i32, %c0_i32_0 : i32, i32
  }
  func.func @transform_2(%arg0: i32) -> (i32, i32) {
    %c0_i32 = arith.constant 0 : i32
    %c0_i32_0 = arith.constant 0 : i32
    %c0_i32_1 = arith.constant 0 : i32
    return %c0_i32, %c0_i32_0 : i32, i32
  }
  func.func @transform_3(%arg0: i32) -> (i32, i32) {
    %c0_i32 = arith.constant 0 : i32
    %c0_i32_0 = arith.constant 0 : i32
    %c0_i32_1 = arith.constant 0 : i32
    return %c0_i32, %c0_i32_0 : i32, i32
  }
  func.func @transform_4(%arg0: i32) -> (i32, i32) {
    %c0_i32 = arith.constant 0 : i32
    %c0_i32_0 = arith.constant 0 : i32
    %c0_i32_1 = arith.constant 0 : i32
    return %c0_i32, %c0_i32_0 : i32, i32
  }
  func.func @transform_5(%arg0: i32) -> (i32, i32, i32) {
    %c0_i32 = arith.constant 0 : i32
    %c0_i32_0 = arith.constant 0 : i32
    %c0_i32_1 = arith.constant 0 : i32
    return %arg0, %c0_i32, %c0_i32_0 : i32, i32, i32
  }
  func.func @transform_6(%arg0: i32) -> (i32, i32, i32) {
    %c0_i32 = arith.constant 0 : i32
    %c0_i32_0 = arith.constant 0 : i32
    %c0_i32_1 = arith.constant 0 : i32
    return %arg0, %c0_i32, %c0_i32_0 : i32, i32, i32
  }
  func.func @transform_7(%arg0: i32) -> (i32, i32, i32) {
    %c0_i32 = arith.constant 0 : i32
    %c0_i32_0 = arith.constant 0 : i32
    %c0_i32_1 = arith.constant 0 : i32
    return %arg0, %c0_i32, %c0_i32_0 : i32, i32, i32
  }
  func.func @transform_8(%arg0: i32) -> (i32, i32, i32) {
    %c0_i32 = arith.constant 0 : i32
    %c0_i32_0 = arith.constant 0 : i32
    %c0_i32_1 = arith.constant 0 : i32
    return %arg0, %c0_i32, %c0_i32_0 : i32, i32, i32
  }
  func.func @transform_9(%arg0: i32) -> (i32, i32, i32) {
    %c0_i32 = arith.constant 0 : i32
    %c0_i32_0 = arith.constant 0 : i32
    %c0_i32_1 = arith.constant 0 : i32
    return %arg0, %c0_i32, %c0_i32_0 : i32, i32, i32
  }
  func.func @transform_10(%arg0: i32) -> (i32, i32, i32) {
    %c0_i32 = arith.constant 0 : i32
    %c0_i32_0 = arith.constant 0 : i32
    %c0_i32_1 = arith.constant 0 : i32
    return %arg0, %c0_i32, %c0_i32_0 : i32, i32, i32
  }
  func.func @transform_11(%arg0: i32) -> (i32, i32, i32) {
    %c0_i32 = arith.constant 0 : i32
    %c0_i32_0 = arith.constant 0 : i32
    %c0_i32_1 = arith.constant 0 : i32
    return %arg0, %c0_i32, %c0_i32_0 : i32, i32, i32
  }
  func.func @transform_12(%arg0: i32) -> (i32, i32, i32) {
    %c0_i32 = arith.constant 0 : i32
    %c0_i32_0 = arith.constant 0 : i32
    %c0_i32_1 = arith.constant 0 : i32
    return %arg0, %c0_i32, %c0_i32_0 : i32, i32, i32
  }
  func.func @transform_13(%arg0: i32) -> (i32, i32, i32) {
    %c0_i32 = arith.constant 0 : i32
    %c0_i32_0 = arith.constant 0 : i32
    %c0_i32_1 = arith.constant 0 : i32
    return %arg0, %c0_i32, %c0_i32_0 : i32, i32, i32
  }
  func.func @transform_14(%arg0: i32) -> (i32, i32, i32) {
    %c0_i32 = arith.constant 0 : i32
    %c0_i32_0 = arith.constant 0 : i32
    %c0_i32_1 = arith.constant 0 : i32
    return %arg0, %c0_i32, %c0_i32_0 : i32, i32, i32
  }
  func.func @transform_15(%arg0: i32) -> (i32, i32, i32) {
    %c0_i32 = arith.constant 0 : i32
    %c0_i32_0 = arith.constant 0 : i32
    %c0_i32_1 = arith.constant 0 : i32
    return %arg0, %c0_i32, %c0_i32_0 : i32, i32, i32
  }
  func.func @transform_16(%arg0: i32) -> (i32, i32) {
    %c0_i32 = arith.constant 0 : i32
    %c0_i32_0 = arith.constant 0 : i32
    %c0_i32_1 = arith.constant 0 : i32
    return %c0_i32, %c0_i32_0 : i32, i32
  }
}

</mosaic_0001>

<llo_original>
// kernel: vit_forward.1
$region0: #{vit_forward.1}
  #allocation0 [shape = 'u32[]', space=smem, size = 0x4, offset = 0x4, fixed_abs, tag = 'smem constant byte address 0x4 - core index']
  #allocation1 [shape = 'u32[144,128]{1,0:T(1,128)}', space=vmem, size = 0x12000, scoped, tag = 'internal scratch']
  #allocation2 [shape = 'f32[34,64]{1,0:T(8,128)}', space=vmem, size = 0x5000, scoped, tag = 'scratch operand']
  %s0 = inlined_call_operand.vmem [shape: f32[2,16,48], index: 0, kind: input, shape index: {}]
  %s1 = inlined_call_operand.vmem [shape: bf16[48,64], index: 1, kind: input, shape index: {}]
  %s2 = inlined_call_operand.vmem [shape: f32[1,64], index: 2, kind: input, shape index: {}]
  %s3 = inlined_call_operand.vmem [shape: f32[1,64], index: 3, kind: input, shape index: {}]
  %s4 = inlined_call_operand.vmem [shape: f32[17,64], index: 4, kind: input, shape index: {}]
  %s5 = inlined_call_operand.vmem [shape: f32[2,1,64], index: 5, kind: input, shape index: {}]
  %s6 = inlined_call_operand.vmem [shape: f32[2,1,64], index: 6, kind: input, shape index: {}]
  %s7 = inlined_call_operand.vmem [shape: bf16[2,64,192], index: 7, kind: input, shape index: {}]
  %s8 = inlined_call_operand.vmem [shape: bf16[2,64,64], index: 8, kind: input, shape index: {}]
  %s9 = inlined_call_operand.vmem [shape: f32[2,1,64], index: 9, kind: input, shape index: {}]
  %s10 = inlined_call_operand.vmem [shape: f32[2,1,64], index: 10, kind: input, shape index: {}]
  %s11 = inlined_call_operand.vmem [shape: f32[2,1,64], index: 11, kind: input, shape index: {}]
  %s12 = inlined_call_operand.vmem [shape: bf16[2,64,256], index: 12, kind: input, shape index: {}]
  %s13 = inlined_call_operand.vmem [shape: f32[2,1,256], index: 13, kind: input, shape index: {}]
  %s14 = inlined_call_operand.vmem [shape: bf16[2,256,64], index: 14, kind: input, shape index: {}]
  %s15 = inlined_call_operand.vmem [shape: f32[2,1,64], index: 15, kind: input, shape index: {}]
  %s16 = inlined_call_operand.hbm [shape: f32[2,64], index: 16, kind: output, shape index: {}]
  %s17 = sld [smem:[#allocation0]]
  $region105: #{vit_forward.1} parent=0
    _
  %s19 = ssub.s32 1, %s17
  %s20 = scalar_select 0, %s19, %s17
  $region1: #{vit_forward.1} parent=0
    #allocation3 [shape = 'u8[1024]{0}', space=vmem, size = 0x400, scoped, tag = 'output window, operand 0, single buffered']
    #allocation4 [shape = 's32[2]{0}', space=sflag, size = 0x8, scoped, tag = 'scoped memory for vit_forward.1']
    %21 = vsyncpa [#allocation4], 0
    loop: start=0, step=1, limit=4
    $region2: #{vit_forward.1} parent=1 // loop_pre_header
      _
    $region3: #{vit_forward.1} parent=1 // loop_header
      %s23 = sphi 0, %s27
      %p24 = scmp.ge.s32.totalorder %s23, 4
      %s31 = sphi 0, %s31
      %s33 = sphi 0, %s31
      %s34 = sphi 0, %s33
      %s48 = sphi 0, %s34
      %s52 = sphi 0, %s52
      %s54 = sphi 0, %s52
      %s55 = sphi 0, %s54
      %s69 = sphi 0, %s55
      %s73 = sphi 0, %s73
      %s75 = sphi 0, %s73
      %s76 = sphi 0, %s75
      %s90 = sphi 0, %s76
      %s94 = sphi 0, %s94
      %s96 = sphi 0, %s94
      %s97 = sphi 0, %s96
      %s111 = sphi 0, %s97
      %s115 = sphi 0, %s115
      %s117 = sphi 0, %s115
      %s118 = sphi 0, %s117
      %s132 = sphi 0, %s118
      %s138 = sphi 0, %s140
      %s141 = sphi 0, %s138
      %s142 = sphi 0, %s141
      %s158 = sphi 0, %s142
      %s164 = sphi 0, %s166
      %s167 = sphi 0, %s164
      %s168 = sphi 0, %s167
      %s184 = sphi 0, %s168
      %s190 = sphi 0, %s192
      %s193 = sphi 0, %s190
      %s194 = sphi 0, %s193
      %s210 = sphi 0, %s194
      %s216 = sphi 0, %s218
      %s219 = sphi 0, %s216
      %s220 = sphi 0, %s219
      %s236 = sphi 0, %s220
      %s242 = sphi 0, %s244
      %s245 = sphi 0, %s242
      %s246 = sphi 0, %s245
      %s262 = sphi 0, %s246
      %s268 = sphi 0, %s270
      %s271 = sphi 0, %s268
      %s272 = sphi 0, %s271
      %s288 = sphi 0, %s272
      %s294 = sphi 0, %s296
      %s297 = sphi 0, %s294
      %s298 = sphi 0, %s297
      %s314 = sphi 0, %s298
      %s320 = sphi 0, %s322
      %s323 = sphi 0, %s320
      %s324 = sphi 0, %s323
      %s340 = sphi 0, %s324
      %s346 = sphi 0, %s348
      %s349 = sphi 0, %s346
      %s350 = sphi 0, %s349
      %s366 = sphi 0, %s350
      %s372 = sphi 0, %s374
      %s375 = sphi 0, %s372
      %s376 = sphi 0, %s375
      %s392 = sphi 0, %s376
      %s398 = sphi 0, %s400
      %s401 = sphi 0, %s398
      %s402 = sphi 0, %s401
      %s418 = sphi 0, %s402
      %s422 = sphi 0, %s422
      %s424 = sphi 0, %s422
      %s425 = sphi 0, %s424
      %s439 = sphi 0, %s425
    $region4: #{vit_forward.1} parent=1 // loop_header_branch
      %26 = sbr.rel (%p24) target = $region8
    $region5: #{vit_forward.1} parent=1 // loop_body
      %s28 = ssub.s32 %s23, 1
      %s29 = ssub.s32 %s23, 2
      %s30 = sadd.s32 %s23, 1
      %s32 = sadd.s32 %s31, 1
      %p35 = scmp.eq.s32.totalorder %s23, 1
      %p36 = scmp.ne.s32.totalorder %s31, %s33
      %p37 = scmp.eq.s32.totalorder %s23, 0
      %p38 = por %p36, %p37
      %p39 = scmp.ne.s32.totalorder %s31, %s33
      %p40 = scmp.eq.s32.totalorder %s28, 1
      %p41 = por %p39, %p40
      %p42 = scmp.ne.s32.totalorder %s33, %s34
      %p43 = scmp.eq.s32.totalorder %s28, 0
      %p44 = por %p42, %p43
      %p45 = scmp.ne.s32.totalorder %s33, %s34
      %p46 = scmp.eq.s32.totalorder %s29, 1
      %p47 = por %p45, %p46
      %p49 = scmp.ne.s32.totalorder %s34, %s48
      %p50 = scmp.eq.s32.totalorder %s29, 0
      %p51 = por %p49, %p50
      %s53 = sadd.s32 %s52, 1
      %p56 = scmp.eq.s32.totalorder %s23, 1
      %p57 = scmp.ne.s32.totalorder %s52, %s54
      %p58 = scmp.eq.s32.totalorder %s23, 0
      %p59 = por %p57, %p58
      %p60 = scmp.ne.s32.totalorder %s52, %s54
      %p61 = scmp.eq.s32.totalorder %s28, 1
      %p62 = por %p60, %p61
      %p63 = scmp.ne.s32.totalorder %s54, %s55
      %p64 = scmp.eq.s32.totalorder %s28, 0
      %p65 = por %p63, %p64
      %p66 = scmp.ne.s32.totalorder %s54, %s55
      %p67 = scmp.eq.s32.totalorder %s29, 1
      %p68 = por %p66, %p67
      %p70 = scmp.ne.s32.totalorder %s55, %s69
      %p71 = scmp.eq.s32.totalorder %s29, 0
      %p72 = por %p70, %p71
      %s74 = sadd.s32 %s73, 1
      %p77 = scmp.eq.s32.totalorder %s23, 1
      %p78 = scmp.ne.s32.totalorder %s73, %s75
      %p79 = scmp.eq.s32.totalorder %s23, 0
      %p80 = por %p78, %p79
      %p81 = scmp.ne.s32.totalorder %s73, %s75
      %p82 = scmp.eq.s32.totalorder %s28, 1
      %p83 = por %p81, %p82
      %p84 = scmp.ne.s32.totalorder %s75, %s76
      %p85 = scmp.eq.s32.totalorder %s28, 0
      %p86 = por %p84, %p85
      %p87 = scmp.ne.s32.totalorder %s75, %s76
      %p88 = scmp.eq.s32.totalorder %s29, 1
      %p89 = por %p87, %p88
      %p91 = scmp.ne.s32.totalorder %s76, %s90
      %p92 = scmp.eq.s32.totalorder %s29, 0
      %p93 = por %p91, %p92
      %s95 = sadd.s32 %s94, 1
      %p98 = scmp.eq.s32.totalorder %s23, 1
      %p99 = scmp.ne.s32.totalorder %s94, %s96
      %p100 = scmp.eq.s32.totalorder %s23, 0
      %p101 = por %p99, %p100
      %p102 = scmp.ne.s32.totalorder %s94, %s96
      %p103 = scmp.eq.s32.totalorder %s28, 1
      %p104 = por %p102, %p103
      %p105 = scmp.ne.s32.totalorder %s96, %s97
      %p106 = scmp.eq.s32.totalorder %s28, 0
      %p107 = por %p105, %p106
      %p108 = scmp.ne.s32.totalorder %s96, %s97
      %p109 = scmp.eq.s32.totalorder %s29, 1
      %p110 = por %p108, %p109
      %p112 = scmp.ne.s32.totalorder %s97, %s111
      %p113 = scmp.eq.s32.totalorder %s29, 0
      %p114 = por %p112, %p113
      %s116 = sadd.s32 %s115, 1
      %p119 = scmp.eq.s32.totalorder %s23, 1
      %p120 = scmp.ne.s32.totalorder %s115, %s117
      %p121 = scmp.eq.s32.totalorder %s23, 0
      %p122 = por %p120, %p121
      %p123 = scmp.ne.s32.totalorder %s115, %s117
      %p124 = scmp.eq.s32.totalorder %s28, 1
      %p125 = por %p123, %p124
      %p126 = scmp.ne.s32.totalorder %s117, %s118
      %p127 = scmp.eq.s32.totalorder %s28, 0
      %p128 = por %p126, %p127
      %p129 = scmp.ne.s32.totalorder %s117, %s118
      %p130 = scmp.eq.s32.totalorder %s29, 1
      %p131 = por %p129, %p130
      %p133 = scmp.ne.s32.totalorder %s118, %s132
      %p134 = scmp.eq.s32.totalorder %s29, 0
      %p135 = por %p133, %p134
      %s136 = ssub.s32 %s23, %s30
      %p137 = scmp.eq.s32.totalorder %s136, 0
      %s139 = sadd.s32 %s138, 1
      %s140 = scalar_select %p137, %s138, %s139
      %p143 = pneg %p137
      %p144 = scmp.eq.s32.totalorder %s23, 1
      %p145 = por %p143, %p144
      %p146 = scmp.ne.s32.totalorder %s138, %s141
      %p147 = scmp.eq.s32.totalorder %s23, 0
      %p148 = por %p146, %p147
      %p149 = scmp.ne.s32.totalorder %s138, %s141
      %p150 = scmp.eq.s32.totalorder %s28, 1
      %p151 = por %p149, %p150
      %p152 = scmp.ne.s32.totalorder %s141, %s142
      %p153 = scmp.eq.s32.totalorder %s28, 0
      %p154 = por %p152, %p153
      %p155 = scmp.ne.s32.totalorder %s141, %s142
      %p156 = scmp.eq.s32.totalorder %s29, 1
      %p157 = por %p155, %p156
      %p159 = scmp.ne.s32.totalorder %s142, %s158
      %p160 = scmp.eq.s32.totalorder %s29, 0
      %p161 = por %p159, %p160
      %s162 = ssub.s32 %s23, %s30
      %p163 = scmp.eq.s32.totalorder %s162, 0
      %s165 = sadd.s32 %s164, 1
      %s166 = scalar_select %p163, %s164, %s165
      %p169 = pneg %p163
      %p170 = scmp.eq.s32.totalorder %s23, 1
      %p171 = por %p169, %p170
      %p172 = scmp.ne.s32.totalorder %s164, %s167
      %p173 = scmp.eq.s32.totalorder %s23, 0
      %p174 = por %p172, %p173
      %p175 = scmp.ne.s32.totalorder %s164, %s167
      %p176 = scmp.eq.s32.totalorder %s28, 1
      %p177 = por %p175, %p176
      %p178 = scmp.ne.s32.totalorder %s167, %s168
      %p179 = scmp.eq.s32.totalorder %s28, 0
      %p180 = por %p178, %p179
      %p181 = scmp.ne.s32.totalorder %s167, %s168
      %p182 = scmp.eq.s32.totalorder %s29, 1
      %p183 = por %p181, %p182
      %p185 = scmp.ne.s32.totalorder %s168, %s184
      %p186 = scmp.eq.s32.totalorder %s29, 0
      %p187 = por %p185, %p186
      %s188 = ssub.s32 %s23, %s30
      %p189 = scmp.eq.s32.totalorder %s188, 0
      %s191 = sadd.s32 %s190, 1
      %s192 = scalar_select %p189, %s190, %s191
      %p195 = pneg %p189
      %p196 = scmp.eq.s32.totalorder %s23, 1
      %p197 = por %p195, %p196
      %p198 = scmp.ne.s32.totalorder %s190, %s193
      %p199 = scmp.eq.s32.totalorder %s23, 0
      %p200 = por %p198, %p199
      %p201 = scmp.ne.s32.totalorder %s190, %s193
      %p202 = scmp.eq.s32.totalorder %s28, 1
      %p203 = por %p201, %p202
      %p204 = scmp.ne.s32.totalorder %s193, %s194
      %p205 = scmp.eq.s32.totalorder %s28, 0
      %p206 = por %p204, %p205
      %p207 = scmp.ne.s32.totalorder %s193, %s194
      %p208 = scmp.eq.s32.totalorder %s29, 1
      %p209 = por %p207, %p208
      %p211 = scmp.ne.s32.totalorder %s194, %s210
      %p212 = scmp.eq.s32.totalorder %s29, 0
      %p213 = por %p211, %p212
      %s214 = ssub.s32 %s23, %s30
      %p215 = scmp.eq.s32.totalorder %s214, 0
      %s217 = sadd.s32 %s216, 1
      %s218 = scalar_select %p215, %s216, %s217
      %p221 = pneg %p215
      %p222 = scmp.eq.s32.totalorder %s23, 1
      %p223 = por %p221, %p222
      %p224 = scmp.ne.s32.totalorder %s216, %s219
      %p225 = scmp.eq.s32.totalorder %s23, 0
      %p226 = por %p224, %p225
      %p227 = scmp.ne.s32.totalorder %s216, %s219
      %p228 = scmp.eq.s32.totalorder %s28, 1
      %p229 = por %p227, %p228
      %p230 = scmp.ne.s32.totalorder %s219, %s220
      %p231 = scmp.eq.s32.totalorder %s28, 0
      %p232 = por %p230, %p231
      %p233 = scmp.ne.s32.totalorder %s219, %s220
      %p234 = scmp.eq.s32.totalorder %s29, 1
      %p235 = por %p233, %p234
      %p237 = scmp.ne.s32.totalorder %s220, %s236
      %p238 = scmp.eq.s32.totalorder %s29, 0
      %p239 = por %p237, %p238
      %s240 = ssub.s32 %s23, %s30
      %p241 = scmp.eq.s32.totalorder %s240, 0
      %s243 = sadd.s32 %s242, 1
      %s244 = scalar_select %p241, %s242, %s243
      %p247 = pneg %p241
      %p248 = scmp.eq.s32.totalorder %s23, 1
      %p249 = por %p247, %p248
      %p250 = scmp.ne.s32.totalorder %s242, %s245
      %p251 = scmp.eq.s32.totalorder %s23, 0
      %p252 = por %p250, %p251
      %p253 = scmp.ne.s32.totalorder %s242, %s245
      %p254 = scmp.eq.s32.totalorder %s28, 1
      %p255 = por %p253, %p254
      %p256 = scmp.ne.s32.totalorder %s245, %s246
      %p257 = scmp.eq.s32.totalorder %s28, 0
      %p258 = por %p256, %p257
      %p259 = scmp.ne.s32.totalorder %s245, %s246
      %p260 = scmp.eq.s32.totalorder %s29, 1
      %p261 = por %p259, %p260
      %p263 = scmp.ne.s32.totalorder %s246, %s262
      %p264 = scmp.eq.s32.totalorder %s29, 0
      %p265 = por %p263, %p264
      %s266 = ssub.s32 %s23, %s30
      %p267 = scmp.eq.s32.totalorder %s266, 0
      %s269 = sadd.s32 %s268, 1
      %s270 = scalar_select %p267, %s268, %s269
      %p273 = pneg %p267
      %p274 = scmp.eq.s32.totalorder %s23, 1
      %p275 = por %p273, %p274
      %p276 = scmp.ne.s32.totalorder %s268, %s271
      %p277 = scmp.eq.s32.totalorder %s23, 0
      %p278 = por %p276, %p277
      %p279 = scmp.ne.s32.totalorder %s268, %s271
      %p280 = scmp.eq.s32.totalorder %s28, 1
      %p281 = por %p279, %p280
      %p282 = scmp.ne.s32.totalorder %s271, %s272
      %p283 = scmp.eq.s32.totalorder %s28, 0
      %p284 = por %p282, %p283
      %p285 = scmp.ne.s32.totalorder %s271, %s272
      %p286 = scmp.eq.s32.totalorder %s29, 1
      %p287 = por %p285, %p286
      %p289 = scmp.ne.s32.totalorder %s272, %s288
      %p290 = scmp.eq.s32.totalorder %s29, 0
      %p291 = por %p289, %p290
      %s292 = ssub.s32 %s23, %s30
      %p293 = scmp.eq.s32.totalorder %s292, 0
      %s295 = sadd.s32 %s294, 1
      %s296 = scalar_select %p293, %s294, %s295
      %p299 = pneg %p293
      %p300 = scmp.eq.s32.totalorder %s23, 1
      %p301 = por %p299, %p300
      %p302 = scmp.ne.s32.totalorder %s294, %s297
      %p303 = scmp.eq.s32.totalorder %s23, 0
      %p304 = por %p302, %p303
      %p305 = scmp.ne.s32.totalorder %s294, %s297
      %p306 = scmp.eq.s32.totalorder %s28, 1
      %p307 = por %p305, %p306
      %p308 = scmp.ne.s32.totalorder %s297, %s298
      %p309 = scmp.eq.s32.totalorder %s28, 0
      %p310 = por %p308, %p309
      %p311 = scmp.ne.s32.totalorder %s297, %s298
      %p312 = scmp.eq.s32.totalorder %s29, 1
      %p313 = por %p311, %p312
      %p315 = scmp.ne.s32.totalorder %s298, %s314
      %p316 = scmp.eq.s32.totalorder %s29, 0
      %p317 = por %p315, %p316
      %s318 = ssub.s32 %s23, %s30
      %p319 = scmp.eq.s32.totalorder %s318, 0
      %s321 = sadd.s32 %s320, 1
      %s322 = scalar_select %p319, %s320, %s321
      %p325 = pneg %p319
      %p326 = scmp.eq.s32.totalorder %s23, 1
      %p327 = por %p325, %p326
      %p328 = scmp.ne.s32.totalorder %s320, %s323
      %p329 = scmp.eq.s32.totalorder %s23, 0
      %p330 = por %p328, %p329
      %p331 = scmp.ne.s32.totalorder %s320, %s323
      %p332 = scmp.eq.s32.totalorder %s28, 1
      %p333 = por %p331, %p332
      %p334 = scmp.ne.s32.totalorder %s323, %s324
      %p335 = scmp.eq.s32.totalorder %s28, 0
      %p336 = por %p334, %p335
      %p337 = scmp.ne.s32.totalorder %s323, %s324
      %p338 = scmp.eq.s32.totalorder %s29, 1
      %p339 = por %p337, %p338
      %p341 = scmp.ne.s32.totalorder %s324, %s340
      %p342 = scmp.eq.s32.totalorder %s29, 0
      %p343 = por %p341, %p342
      %s344 = ssub.s32 %s23, %s30
      %p345 = scmp.eq.s32.totalorder %s344, 0
      %s347 = sadd.s32 %s346, 1
      %s348 = scalar_select %p345, %s346, %s347
      %p351 = pneg %p345
      %p352 = scmp.eq.s32.totalorder %s23, 1
      %p353 = por %p351, %p352
      %p354 = scmp.ne.s32.totalorder %s346, %s349
      %p355 = scmp.eq.s32.totalorder %s23, 0
      %p356 = por %p354, %p355
      %p357 = scmp.ne.s32.totalorder %s346, %s349
      %p358 = scmp.eq.s32.totalorder %s28, 1
      %p359 = por %p357, %p358
      %p360 = scmp.ne.s32.totalorder %s349, %s350
      %p361 = scmp.eq.s32.totalorder %s28, 0
      %p362 = por %p360, %p361
      %p363 = scmp.ne.s32.totalorder %s349, %s350
      %p364 = scmp.eq.s32.totalorder %s29, 1
      %p365 = por %p363, %p364
      %p367 = scmp.ne.s32.totalorder %s350, %s366
      %p368 = scmp.eq.s32.totalorder %s29, 0
      %p369 = por %p367, %p368
      %s370 = ssub.s32 %s23, %s30
      %p371 = scmp.eq.s32.totalorder %s370, 0
      %s373 = sadd.s32 %s372, 1
      %s374 = scalar_select %p371, %s372, %s373
      %p377 = pneg %p371
      %p378 = scmp.eq.s32.totalorder %s23, 1
      %p379 = por %p377, %p378
      %p380 = scmp.ne.s32.totalorder %s372, %s375
      %p381 = scmp.eq.s32.totalorder %s23, 0
      %p382 = por %p380, %p381
      %p383 = scmp.ne.s32.totalorder %s372, %s375
      %p384 = scmp.eq.s32.totalorder %s28, 1
      %p385 = por %p383, %p384
      %p386 = scmp.ne.s32.totalorder %s375, %s376
      %p387 = scmp.eq.s32.totalorder %s28, 0
      %p388 = por %p386, %p387
      %p389 = scmp.ne.s32.totalorder %s375, %s376
      %p390 = scmp.eq.s32.totalorder %s29, 1
      %p391 = por %p389, %p390
      %p393 = scmp.ne.s32.totalorder %s376, %s392
      %p394 = scmp.eq.s32.totalorder %s29, 0
      %p395 = por %p393, %p394
      %s396 = ssub.s32 %s23, %s30
      %p397 = scmp.eq.s32.totalorder %s396, 0
      %s399 = sadd.s32 %s398, 1
      %s400 = scalar_select %p397, %s398, %s399
      %p403 = pneg %p397
      %p404 = scmp.eq.s32.totalorder %s23, 1
      %p405 = por %p403, %p404
      %p406 = scmp.ne.s32.totalorder %s398, %s401
      %p407 = scmp.eq.s32.totalorder %s23, 0
      %p408 = por %p406, %p407
      %p409 = scmp.ne.s32.totalorder %s398, %s401
      %p410 = scmp.eq.s32.totalorder %s28, 1
      %p411 = por %p409, %p410
      %p412 = scmp.ne.s32.totalorder %s401, %s402
      %p413 = scmp.eq.s32.totalorder %s28, 0
      %p414 = por %p412, %p413
      %p415 = scmp.ne.s32.totalorder %s401, %s402
      %p416 = scmp.eq.s32.totalorder %s29, 1
      %p417 = por %p415, %p416
      %p419 = scmp.ne.s32.totalorder %s402, %s418
      %p420 = scmp.eq.s32.totalorder %s29, 0
      %p421 = por %p419, %p420
      %s423 = sadd.s32 %s422, 1
      %p426 = scmp.eq.s32.totalorder %s23, 1
      %p427 = scmp.ne.s32.totalorder %s422, %s424
      %p428 = scmp.eq.s32.totalorder %s23, 0
      %p429 = por %p427, %p428
      %p430 = scmp.ne.s32.totalorder %s422, %s424
      %p431 = scmp.eq.s32.totalorder %s28, 1
      %p432 = por %p430, %p431
      %p433 = scmp.ne.s32.totalorder %s424, %s425
      %p434 = scmp.eq.s32.totalorder %s28, 0
      %p435 = por %p433, %p434
      %p436 = scmp.ne.s32.totalorder %s424, %s425
      %p437 = scmp.eq.s32.totalorder %s29, 1
      %p438 = por %p436, %p437
      %p440 = scmp.ne.s32.totalorder %s425, %s439
      %p441 = scmp.eq.s32.totalorder %s29, 0
      %p442 = por %p440, %p441
      %p443 = scmp.le.s32.totalorder 1, %s23
      %p444 = scmp.lt.s32.totalorder %s23, 3
      %p445 = pnand %p443, %p444
      %p446 = pneg %p445
      // Predicated region
      $region9: #{vit_forward.1} parent=5 // pred_check
        _
      $region10: #{vit_forward.1} parent=5 // pred_check_branch
        %448 = sbr.rel (%p445) target = $region12
      $region11: #{vit_forward.1} parent=5 // pred_region
        %s449 = ssub.s32 %s23, 1
        // Predicated region
        $region13: #{vit_forward.1} parent=11 // pred_check
          %p450 = pneg %p44
        $region14: #{vit_forward.1} parent=11 // pred_check_branch
          %452 = sbr.rel (%p450) target = $region16
        $region15: #{vit_forward.1} parent=11 // pred_region
          _
        $region16: #{vit_forward.1} parent=11 // pred_fallthru
          _
        // Predicated region
        $region17: #{vit_forward.1} parent=11 // pred_check
          %p453 = pneg %p65
        $region18: #{vit_forward.1} parent=11 // pred_check_branch
          %455 = sbr.rel (%p453) target = $region20
        $region19: #{vit_forward.1} parent=11 // pred_region
          _
        $region20: #{vit_forward.1} parent=11 // pred_fallthru
          _
        // Predicated region
        $region21: #{vit_forward.1} parent=11 // pred_check
          %p456 = pneg %p86
        $region22: #{vit_forward.1} parent=11 // pred_check_branch
          %458 = sbr.rel (%p456) target = $region24
        $region23: #{vit_forward.1} parent=11 // pred_region
          _
        $region24: #{vit_forward.1} parent=11 // pred_fallthru
          _
        // Predicated region
        $region25: #{vit_forward.1} parent=11 // pred_check
          %p459 = pneg %p107
        $region26: #{vit_forward.1} parent=11 // pred_check_branch
          %461 = sbr.rel (%p459) target = $region28
        $region27: #{vit_forward.1} parent=11 // pred_region
          _
        $region28: #{vit_forward.1} parent=11 // pred_fallthru
          _
        // Predicated region
        $region29: #{vit_forward.1} parent=11 // pred_check
          %p462 = pneg %p128
        $region30: #{vit_forward.1} parent=11 // pred_check_branch
          %464 = sbr.rel (%p462) target = $region32
        $region31: #{vit_forward.1} parent=11 // pred_region
          _
        $region32: #{vit_forward.1} parent=11 // pred_fallthru
          _
      $region12: #{vit_forward.1} parent=5 // pred_fallthru
        _
      %p465 = scmp.lt.s32.totalorder %s23, 2
      // Predicated region
      $region33: #{vit_forward.1} parent=5 // pred_check
        %p466 = pneg %p465
      $region34: #{vit_forward.1} parent=5 // pred_check_branch
        %468 = sbr.rel (%p466) target = $region36
      $region35: #{vit_forward.1} parent=5 // pred_region
        // Predicated region
        $region37: #{vit_forward.1} parent=35 // pred_check
          %p469 = pneg %p148
        $region38: #{vit_forward.1} parent=35 // pred_check_branch
          %471 = sbr.rel (%p469) target = $region40
        $region39: #{vit_forward.1} parent=35 // pred_region
          %p472 = scmp.lt.s32.totalorder %s23, 1
          %s473 = scalar_select %p472, %s23, 1
          %s474 = scalar_lea.vmem %s5, %s473
        $region40: #{vit_forward.1} parent=35 // pred_fallthru
          _
        // Predicated region
        $region41: #{vit_forward.1} parent=35 // pred_check
          %p475 = pneg %p174
        $region42: #{vit_forward.1} parent=35 // pred_check_branch
          %477 = sbr.rel (%p475) target = $region44
        $region43: #{vit_forward.1} parent=35 // pred_region
          %p478 = scmp.lt.s32.totalorder %s23, 1
          %s479 = scalar_select %p478, %s23, 1
          %s480 = scalar_lea.vmem %s6, %s479
        $region44: #{vit_forward.1} parent=35 // pred_fallthru
          _
        // Predicated region
        $region45: #{vit_forward.1} parent=35 // pred_check
          %p481 = pneg %p200
        $region46: #{vit_forward.1} parent=35 // pred_check_branch
          %483 = sbr.rel (%p481) target = $region48
        $region47: #{vit_forward.1} parent=35 // pred_region
          %p484 = scmp.lt.s32.totalorder %s23, 1
          %s485 = scalar_select %p484, %s23, 1
          %s486 = smul.addr %s485, 16
          %s487 = smul.addr %s486, 4
          %s488 = scalar_lea.vmem %s7, %s487
        $region48: #{vit_forward.1} parent=35 // pred_fallthru
          _
        // Predicated region
        $region49: #{vit_forward.1} parent=35 // pred_check
          %p489 = pneg %p226
        $region50: #{vit_forward.1} parent=35 // pred_check_branch
          %491 = sbr.rel (%p489) target = $region52
        $region51: #{vit_forward.1} parent=35 // pred_region
          %p492 = scmp.lt.s32.totalorder %s23, 1
          %s493 = scalar_select %p492, %s23, 1
          %s494 = smul.addr %s493, 8
          %s495 = smul.addr %s494, 4
          %s496 = scalar_lea.vmem %s8, %s495
        $region52: #{vit_forward.1} parent=35 // pred_fallthru
          _
        // Predicated region
        $region53: #{vit_forward.1} parent=35 // pred_check
          %p497 = pneg %p252
        $region54: #{vit_forward.1} parent=35 // pred_check_branch
          %499 = sbr.rel (%p497) target = $region56
        $region55: #{vit_forward.1} parent=35 // pred_region
          %p500 = scmp.lt.s32.totalorder %s23, 1
          %s501 = scalar_select %p500, %s23, 1
          %s502 = scalar_lea.vmem %s9, %s501
        $region56: #{vit_forward.1} parent=35 // pred_fallthru
          _
        // Predicated region
        $region57: #{vit_forward.1} parent=35 // pred_check
          %p503 = pneg %p278
        $region58: #{vit_forward.1} parent=35 // pred_check_branch
          %505 = sbr.rel (%p503) target = $region60
        $region59: #{vit_forward.1} parent=35 // pred_region
          %p506 = scmp.lt.s32.totalorder %s23, 1
          %s507 = scalar_select %p506, %s23, 1
          %s508 = scalar_lea.vmem %s10, %s507
        $region60: #{vit_forward.1} parent=35 // pred_fallthru
          _
        // Predicated region
        $region61: #{vit_forward.1} parent=35 // pred_check
          %p509 = pneg %p304
        $region62: #{vit_forward.1} parent=35 // pred_check_branch
          %511 = sbr.rel (%p509) target = $region64
        $region63: #{vit_forward.1} parent=35 // pred_region
          %p512 = scmp.lt.s32.totalorder %s23, 1
          %s513 = scalar_select %p512, %s23, 1
          %s514 = scalar_lea.vmem %s11, %s513
        $region64: #{vit_forward.1} parent=35 // pred_fallthru
          _
        // Predicated region
        $region65: #{vit_forward.1} parent=35 // pred_check
          %p515 = pneg %p330
        $region66: #{vit_forward.1} parent=35 // pred_check_branch
          %517 = sbr.rel (%p515) target = $region68
        $region67: #{vit_forward.1} parent=35 // pred_region
          %p518 = scmp.lt.s32.totalorder %s23, 1
          %s519 = scalar_select %p518, %s23, 1
          %s520 = smul.addr %s519, 16
          %s521 = smul.addr %s520, 4
          %s522 = scalar_lea.vmem %s12, %s521
        $region68: #{vit_forward.1} parent=35 // pred_fallthru
          _
        // Predicated region
        $region69: #{vit_forward.1} parent=35 // pred_check
          %p523 = pneg %p356
        $region70: #{vit_forward.1} parent=35 // pred_check_branch
          %525 = sbr.rel (%p523) target = $region72
        $region71: #{vit_forward.1} parent=35 // pred_region
          %p526 = scmp.lt.s32.totalorder %s23, 1
          %s527 = scalar_select %p526, %s23, 1
          %s528 = smul.addr %s527, 2
          %s529 = scalar_lea.vmem %s13, %s528
        $region72: #{vit_forward.1} parent=35 // pred_fallthru
          _
        // Predicated region
        $region73: #{vit_forward.1} parent=35 // pred_check
          %p530 = pneg %p382
        $region74: #{vit_forward.1} parent=35 // pred_check_branch
          %532 = sbr.rel (%p530) target = $region76
        $region75: #{vit_forward.1} parent=35 // pred_region
          %p533 = scmp.lt.s32.totalorder %s23, 1
          %s534 = scalar_select %p533, %s23, 1
          %s535 = smul.addr %s534, 32
          %s536 = smul.addr %s535, 4
          %s537 = scalar_lea.vmem %s14, %s536
        $region76: #{vit_forward.1} parent=35 // pred_fallthru
          _
        // Predicated region
        $region77: #{vit_forward.1} parent=35 // pred_check
          %p538 = pneg %p408
        $region78: #{vit_forward.1} parent=35 // pred_check_branch
          %540 = sbr.rel (%p538) target = $region80
        $region79: #{vit_forward.1} parent=35 // pred_region
          %p541 = scmp.lt.s32.totalorder %s23, 1
          %s542 = scalar_select %p541, %s23, 1
          %s543 = scalar_lea.vmem %s15, %s542
        $region80: #{vit_forward.1} parent=35 // pred_fallthru
          _
      $region36: #{vit_forward.1} parent=5 // pred_fallthru
        _
      %p544 = scmp.le.s32.totalorder 1, %s23
      %p545 = scmp.lt.s32.totalorder %s23, 3
      %p546 = pnand %p544, %p545
      %p547 = pneg %p546
      // Predicated region
      $region81: #{vit_forward.1} parent=5 // pred_check
        _
      $region82: #{vit_forward.1} parent=5 // pred_check_branch
        %549 = sbr.rel (%p546) target = $region84
      $region83: #{vit_forward.1} parent=5 // pred_region
        %s550 = ssub.s32 %s23, 1
        %p551 = pneg %p44
        %p552 = pneg %p41
        %p553 = pneg %p65
        %p554 = pneg %p62
        %p555 = pneg %p86
        %p556 = pneg %p83
        %p557 = pneg %p107
        %p558 = pneg %p104
        %p559 = pneg %p128
        %p560 = pneg %p125
        %p561 = scmp.lt.s32.totalorder %s28, 1
        %s562 = scalar_select %p561, %s28, 1
        %s563 = scalar_lea.vmem %s5, %s562
        %p564 = pneg %p154
        %p565 = pneg %p151
        %p566 = scmp.lt.s32.totalorder %s28, 1
        %s567 = scalar_select %p566, %s28, 1
        %s568 = scalar_lea.vmem %s6, %s567
        %p569 = pneg %p180
        %p570 = pneg %p177
        %p571 = scmp.lt.s32.totalorder %s28, 1
        %s572 = scalar_select %p571, %s28, 1
        %s573 = smul.addr %s572, 16
        %s574 = smul.addr %s573, 4
        %s575 = scalar_lea.vmem %s7, %s574
        %p576 = pneg %p206
        %p577 = pneg %p203
        %p578 = scmp.lt.s32.totalorder %s28, 1
        %s579 = scalar_select %p578, %s28, 1
        %s580 = smul.addr %s579, 8
        %s581 = smul.addr %s580, 4
        %s582 = scalar_lea.vmem %s8, %s581
        %p583 = pneg %p232
        %p584 = pneg %p229
        %p585 = scmp.lt.s32.totalorder %s28, 1
        %s586 = scalar_select %p585, %s28, 1
        %s587 = scalar_lea.vmem %s9, %s586
        %p588 = pneg %p258
        %p589 = pneg %p255
        %p590 = scmp.lt.s32.totalorder %s28, 1
        %s591 = scalar_select %p590, %s28, 1
        %s592 = scalar_lea.vmem %s10, %s591
        %p593 = pneg %p284
        %p594 = pneg %p281
        %p595 = scmp.lt.s32.totalorder %s28, 1
        %s596 = scalar_select %p595, %s28, 1
        %s597 = scalar_lea.vmem %s11, %s596
        %p598 = pneg %p310
        %p599 = pneg %p307
        %p600 = scmp.lt.s32.totalorder %s28, 1
        %s601 = scalar_select %p600, %s28, 1
        %s602 = smul.addr %s601, 16
        %s603 = smul.addr %s602, 4
        %s604 = scalar_lea.vmem %s12, %s603
        %p605 = pneg %p336
        %p606 = pneg %p333
        %p607 = scmp.lt.s32.totalorder %s28, 1
        %s608 = scalar_select %p607, %s28, 1
        %s609 = smul.addr %s608, 2
        %s610 = scalar_lea.vmem %s13, %s609
        %p611 = pneg %p362
        %p612 = pneg %p359
        %p613 = scmp.lt.s32.totalorder %s28, 1
        %s614 = scalar_select %p613, %s28, 1
        %s615 = smul.addr %s614, 32
        %s616 = smul.addr %s615, 4
        %s617 = scalar_lea.vmem %s14, %s616
        %p618 = pneg %p388
        %p619 = pneg %p385
        %p620 = scmp.lt.s32.totalorder %s28, 1
        %s621 = scalar_select %p620, %s28, 1
        %s622 = scalar_lea.vmem %s15, %s621
        %p623 = pneg %p414
        %p624 = pneg %p411
        %p625 = pneg %p435
        %p626 = pneg %p432
        %p627 = scmp.lt.s32.totalorder %s28, 1
        %s628 = scalar_select %p627, %s28, 1
        %s629 = scalar_lea.vmem %s5, %s628
        %p630 = scmp.lt.s32.totalorder %s28, 1
        %s631 = scalar_select %p630, %s28, 1
        %s632 = scalar_lea.vmem %s6, %s631
        %p633 = scmp.lt.s32.totalorder %s28, 1
        %s634 = scalar_select %p633, %s28, 1
        %s635 = smul.addr %s634, 16
        %s636 = smul.addr %s635, 4
        %s637 = scalar_lea.vmem %s7, %s636
        %p638 = scmp.lt.s32.totalorder %s28, 1
        %s639 = scalar_select %p638, %s28, 1
        %s640 = smul.addr %s639, 8
        %s641 = smul.addr %s640, 4
        %s642 = scalar_lea.vmem %s8, %s641
        %p643 = scmp.lt.s32.totalorder %s28, 1
        %s644 = scalar_select %p643, %s28, 1
        %s645 = scalar_lea.vmem %s9, %s644
        %p646 = scmp.lt.s32.totalorder %s28, 1
        %s647 = scalar_select %p646, %s28, 1
        %s648 = scalar_lea.vmem %s10, %s647
        %p649 = scmp.lt.s32.totalorder %s28, 1
        %s650 = scalar_select %p649, %s28, 1
        %s651 = scalar_lea.vmem %s11, %s650
        %p652 = scmp.lt.s32.totalorder %s28, 1
        %s653 = scalar_select %p652, %s28, 1
        %s654 = smul.addr %s653, 16
        %s655 = smul.addr %s654, 4
        %s656 = scalar_lea.vmem %s12, %s655
        %p657 = scmp.lt.s32.totalorder %s28, 1
        %s658 = scalar_select %p657, %s28, 1
        %s659 = smul.addr %s658, 2
        %s660 = scalar_lea.vmem %s13, %s659
        %p661 = scmp.lt.s32.totalorder %s28, 1
        %s662 = scalar_select %p661, %s28, 1
        %s663 = smul.addr %s662, 32
        %s664 = smul.addr %s663, 4
        %s665 = scalar_lea.vmem %s14, %s664
        %p666 = scmp.lt.s32.totalorder %s28, 1
        %s667 = scalar_select %p666, %s28, 1
        %s668 = scalar_lea.vmem %s15, %s667
        %p670 = scmp.eq.s32.totalorder %s28, 0
        // Predicated region
        $region85: #{vit_forward.1} parent=83 // pred_check
          %p671 = pneg %p670
        $region86: #{vit_forward.1} parent=83 // pred_check_branch
          %673 = sbr.rel (%p671) target = $region88
        $region87: #{vit_forward.1} parent=83 // pred_region
          %v674 = vld [vmem:[%s0] sm:$0xff]
          %v675 = vld [vmem:[%s0 + $0x8] sm:$0xff]
          %v676 = vld [vmem:[%s0 + $0x10] sm:$0xff]
          %v677 = vld [vmem:[%s0 + $0x18] sm:$0xff]
          %v678 = vpack.c.bf16 %v675, %v674
          %v679 = vpack.c.bf16 %v677, %v676
          %v680 = vld [vmem:[%s1] sm:$0xf]
          %v681 = vld [vmem:[%s1 + $0x4] sm:$0xf]
          %v682 = vld [vmem:[%s1 + $0x8] sm:$0xf]
          %v683 = vld [vmem:[%s1 + $0xc] sm:$0xf]
          %v684 = vld [vmem:[%s1 + $0x10] sm:$0xf]
          %v685 = vld [vmem:[%s1 + $0x14] sm:$0xf]
          %v686 = vld [vmem:[%s2] sm:$0x1]
          %v688 = vlaneseq
          %v689 = vshrl.u32 %v688, 7
          %v690 = vsub.s32 0, %v689
          %v691 = vrot.slane %v686, %v690
          %v699 = vunpack.c.l.b16 %v680
          %v700 = vunpack.c.l.b16 %v681
          %v701 = vunpack.c.l.b16 %v682
          %v702 = vunpack.c.l.b16 %v683
          %v703 = vunpack.c.l.b16 %v684
          %v704 = vunpack.c.l.b16 %v685
          %v705 = vpack.c.b16 %v700, %v699
          %v706 = vpack.c.b16 %v702, %v701
          %v707 = vpack.c.b16 %v704, %v703
          %vm711 = vcmask 392192
          %v713 = vsel %vm711, %v678, 0
          %v716 = vsel %vm711, %v679, 0
          %718 = vmatprep.subr.bf16.mxu0 0
          %719 = vmatpush1.bf16.msra.mxu0 %v705
          %720 = vmatprep.subr.bf16.mxu0 0
          %721 = vmatpush1.bf16.msra.mxu0 %v706
          %722 = vmatprep.subr.bf16.mxu0 0
          %723 = vmatpush1.bf16.msra.mxu0 %v707
          %724 = vmatprep.subr.bf16.mxu0 0
          %725 = vmatpush1.bf16.msra.mxu0 0
          %726 = vmatprep.subr.bf16.mxu0 0
          %727 = vmatpush1.bf16.msra.mxu0 0
          %728 = vmatprep.subr.bf16.mxu0 0
          %729 = vmatpush1.bf16.msra.mxu0 0
          %730 = vmatprep.subr.bf16.mxu0 0
          %731 = vmatpush1.bf16.msra.mxu0 0
          %732 = vmatprep.subr.bf16.mxu0 0
          %733 = vmatpush1.bf16.msra.mxu0 0
          %734 = vmatprep.subr.bf16.mxu0 0
          %735 = vmatpush1.bf16.msra.mxu0 0
          %736 = vmatprep.subr.bf16.mxu0 0
          %737 = vmatpush1.bf16.msra.mxu0 0
          %738 = vmatprep.subr.bf16.mxu0 0
          %739 = vmatpush1.bf16.msra.mxu0 0
          %740 = vmatprep.subr.bf16.mxu0 0
          %741 = vmatpush1.bf16.msra.mxu0 0
          %742 = vmatprep.subr.bf16.mxu0 0
          %743 = vmatpush1.bf16.msra.mxu0 0
          %744 = vmatprep.subr.bf16.mxu0 0
          %745 = vmatpush1.bf16.msra.mxu0 0
          %746 = vmatprep.subr.bf16.mxu0 0
          %747 = vmatpush1.bf16.msra.mxu0 0
          %748 = vmatprep.subr.bf16.mxu0 0
          %749 = vmatpush1.bf16.msra.mxu0 0
          %750 = vmatprep.mubr.bf16.mxu0 0
          %751 = vmatmul.mubr.bf16.gmra.mrb[0].mxu0 %v713
          %v752 = vpop.f32.mrb[0].mxu0
          %v753 = vadd.f32 %v691, %v752
          %v754 = vpop.f32.mrb[0].mxu0
          %v755 = vpop.f32.mrb[0].mxu0
          %v756 = vadd.f32 %v691, %v755
          %v757 = vpop.f32.mrb[0].mxu0
          %758 = vmatprep.mubr.bf16.mxu0 0
          %759 = vmatmul.mubr.bf16.gmra.mrb[0].mxu0 %v716
          %v760 = vpop.f32.mrb[0].mxu0
          %v761 = vadd.f32 %v691, %v760
          %v762 = vpop.f32.mrb[0].mxu0
          %v763 = vpop.f32.mrb[0].mxu0
          %v764 = vadd.f32 %v691, %v763
          %v765 = vpop.f32.mrb[0].mxu0
          %766 = vdwg.mxu0
          %v767 = vld [vmem:[%s3] sm:$0x1]
          %v768 = vld [vmem:[%s4] sm:$0x1]
          %v769 = vadd.f32 %v767, %v768
          %v770 = vld [vmem:[%s4 + $0x1] sm:$0xff]
          %v771 = vld [vmem:[%s4 + $0x9] sm:$0xff]
          %vm772 = vcmask 516096
          %773 = vst.msk [vmem:[#allocation2] sm:$0x1] %vm772, %v769
          %v774 = vadd.f32 %v753, %v770
          %v775 = vadd.f32 %v756, %v771
          %vm776 = vcmask 523264
          %777 = vst.msk [vmem:[#allocation2 + $0x1] sm:$0xff] %vm776, %v774
          %778 = vst.msk [vmem:[#allocation2 + $0x9] sm:$0xff] %vm776, %v775
          %779 = vst.msk [vmem:[#allocation2 + $0x11] sm:$0x1] %vm772, %v769
          %v780 = vadd.f32 %v761, %v770
          %v781 = vadd.f32 %v764, %v771
          %782 = vst.msk [vmem:[#allocation2 + $0x12] sm:$0xff] %vm776, %v780
          %783 = vst.msk [vmem:[#allocation2 + $0x1a] sm:$0xff] %vm776, %v781
        $region88: #{vit_forward.1} parent=83 // pred_fallthru
          _
        %v784 = vld [vmem:[#allocation2] sm:$0xff]
        %v785 = vld [vmem:[#allocation2 + $0x8] sm:$0xff]
        %v786 = vld [vmem:[#allocation2 + $0x10] sm:$0xff]
        %v787 = vld [vmem:[#allocation2 + $0x18] sm:$0xff]
        %v788 = vld [vmem:[#allocation2 + $0x20] sm:$0x3]
        %v789 = vld [vmem:[%s629] sm:$0x1]
        %v790 = vld [vmem:[%s632] sm:$0x1]
        %vm791 = vcmask 523264
        %v792 = vsel %vm791, %v784, 0.0
        %793 = vadd.xlane.f32.xlu0 %v792
        %v794 = vpop.xlane.xlu0 %793
        %v795 = vsel %vm791, %v785, 0.0
        %796 = vadd.xlane.f32.xlu0 %v795
        %v797 = vpop.xlane.xlu0 %796
        %v798 = vsel %vm791, %v786, 0.0
        %799 = vadd.xlane.f32.xlu0 %v798
        %v800 = vpop.xlane.xlu0 %799
        %v801 = vsel %vm791, %v787, 0.0
        %802 = vadd.xlane.f32.xlu0 %v801
        %v803 = vpop.xlane.xlu0 %802
        %vm804 = vcmask 517120
        %v805 = vsel %vm804, %v788, 0.0
        %806 = vadd.xlane.f32.xlu0 %v805
        %v807 = vpop.xlane.xlu0 %806
        %v808 = vrcp.pop 64.0
        %v809 = vmul.f32 %v794, %v808
        %v810 = vmul.f32 %v797, %v808
        %v811 = vmul.f32 %v800, %v808
        %v812 = vmul.f32 %v803, %v808
        %v813 = vmul.f32 %v807, %v808
        %v814 = vsub.f32 %v784, %v809
        %v815 = vsub.f32 %v785, %v810
        %v816 = vsub.f32 %v786, %v811
        %v817 = vsub.f32 %v787, %v812
        %v818 = vsub.f32 %v788, %v813
        %v819 = vmul.f32 %v814, %v814
        %v820 = vmul.f32 %v815, %v815
        %v821 = vmul.f32 %v816, %v816
        %v822 = vmul.f32 %v817, %v817
        %v823 = vmul.f32 %v818, %v818
        %v824 = vsel %vm791, %v819, 0.0
        %825 = vadd.xlane.f32.xlu0 %v824
        %v826 = vpop.xlane.xlu0 %825
        %v827 = vsel %vm791, %v820, 0.0
        %828 = vadd.xlane.f32.xlu0 %v827
        %v829 = vpop.xlane.xlu0 %828
        %v830 = vsel %vm791, %v821, 0.0
        %831 = vadd.xlane.f32.xlu0 %v830
        %v832 = vpop.xlane.xlu0 %831
        %v833 = vsel %vm791, %v822, 0.0
        %834 = vadd.xlane.f32.xlu0 %v833
        %v835 = vpop.xlane.xlu0 %834
        %v836 = vsel %vm804, %v823, 0.0
        %837 = vadd.xlane.f32.xlu0 %v836
        %v838 = vpop.xlane.xlu0 %837
        %v839 = vmul.f32 %v826, %v808
        %v840 = vmul.f32 %v829, %v808
        %v841 = vmul.f32 %v832, %v808
        %v842 = vmul.f32 %v835, %v808
        %v843 = vmul.f32 %v838, %v808
        %v844 = vadd.f32 %v839, 1e-05
        %v845 = vadd.f32 %v840, 1e-05
        %v846 = vadd.f32 %v841, 1e-05
        %v847 = vadd.f32 %v842, 1e-05
        %v848 = vadd.f32 %v843, 1e-05
        %v849 = vrsqrt.pop %v844
        %v850 = vrsqrt.pop %v845
        %v851 = vrsqrt.pop %v846
        %v852 = vrsqrt.pop %v847
        %v853 = vrsqrt.pop %v848
        %v854 = vmul.f32 %v814, %v849
        %v855 = vmul.f32 %v815, %v850
        %v856 = vmul.f32 %v816, %v851
        %v857 = vmul.f32 %v817, %v852
        %v858 = vmul.f32 %v818, %v853
        %v860 = vlaneseq
        %v861 = vshrl.u32 %v860, 7
        %v862 = vsub.s32 0, %v861
        %v863 = vrot.slane %v789, %v862
        %v865 = vmul.f32 %v854, %v863
        %v866 = vmul.f32 %v855, %v863
        %v867 = vmul.f32 %v856, %v863
        %v868 = vmul.f32 %v857, %v863
        %v869 = vmul.f32 %v858, %v863
        %v871 = vlaneseq
        %v872 = vshrl.u32 %v871, 7
        %v873 = vsub.s32 0, %v872
        %v874 = vrot.slane %v790, %v873
        %v876 = vadd.f32 %v865, %v874
        %v877 = vadd.f32 %v866, %v874
        %v878 = vadd.f32 %v867, %v874
        %v879 = vadd.f32 %v868, %v874
        %v880 = vadd.f32 %v869, %v874
        %v881 = vpack.c.bf16 %v877, %v876
        %v882 = vpack.c.bf16 %v879, %v878
        %v883 = vpack.c.bf16 %v880, %v880
        %v884 = vld [vmem:[%s637] sm:$0xff]
        %v885 = vld [vmem:[%s637 + $0x8] sm:$0xff]
        %v886 = vld [vmem:[%s637 + $0x10] sm:$0xff]
        %v887 = vld [vmem:[%s637 + $0x18] sm:$0xff]
        %v888 = vld [vmem:[%s637 + $0x20] sm:$0xff]
        %v889 = vld [vmem:[%s637 + $0x28] sm:$0xff]
        %v890 = vld [vmem:[%s637 + $0x30] sm:$0xff]
        %v891 = vld [vmem:[%s637 + $0x38] sm:$0xff]
        %v900 = vunpack.c.l.b16 %v884
        %v901 = vunpack.c.h.b16 %v884
        %v902 = vunpack.c.l.b16 %v885
        %v903 = vunpack.c.h.b16 %v885
        %v904 = vunpack.c.l.b16 %v886
        %v905 = vunpack.c.h.b16 %v886
        %v906 = vunpack.c.l.b16 %v887
        %v907 = vunpack.c.h.b16 %v887
        %v908 = vunpack.c.l.b16 %v888
        %v909 = vunpack.c.h.b16 %v888
        %v910 = vunpack.c.l.b16 %v889
        %v911 = vunpack.c.h.b16 %v889
        %v912 = vunpack.c.l.b16 %v890
        %v913 = vunpack.c.h.b16 %v890
        %v914 = vunpack.c.l.b16 %v891
        %v915 = vunpack.c.h.b16 %v891
        %v916 = vpack.c.b16 %v902, %v900
        %v917 = vpack.c.b16 %v903, %v901
        %v918 = vpack.c.b16 %v906, %v904
        %v919 = vpack.c.b16 %v907, %v905
        %v920 = vpack.c.b16 %v910, %v908
        %v921 = vpack.c.b16 %v911, %v909
        %v922 = vpack.c.b16 %v914, %v912
        %v923 = vpack.c.b16 %v915, %v913
        %v933 = vsel %vm791, %v881, 0
        %v936 = vsel %vm791, %v882, 0
        %v939 = vsel %vm791, %v883, 0
        %941 = vmatprep.subr.bf16.mxu0 %v917
        %942 = vmatpush1.bf16.msra.mxu0 %v916
        %943 = vmatprep.subr.bf16.mxu0 %v919
        %944 = vmatpush1.bf16.msra.mxu0 %v918
        %945 = vmatprep.subr.bf16.mxu0 %v921
        %946 = vmatpush1.bf16.msra.mxu0 %v920
        %947 = vmatprep.subr.bf16.mxu0 %v923
        %948 = vmatpush1.bf16.msra.mxu0 %v922
        %949 = vmatprep.subr.bf16.mxu0 0
        %950 = vmatpush1.bf16.msra.mxu0 0
        %951 = vmatprep.subr.bf16.mxu0 0
        %952 = vmatpush1.bf16.msra.mxu0 0
        %953 = vmatprep.subr.bf16.mxu0 0
        %954 = vmatpush1.bf16.msra.mxu0 0
        %955 = vmatprep.subr.bf16.mxu0 0
        %956 = vmatpush1.bf16.msra.mxu0 0
        %957 = vmatprep.subr.bf16.mxu0 0
        %958 = vmatpush1.bf16.msra.mxu0 0
        %959 = vmatprep.subr.bf16.mxu0 0
        %960 = vmatpush1.bf16.msra.mxu0 0
        %961 = vmatprep.subr.bf16.mxu0 0
        %962 = vmatpush1.bf16.msra.mxu0 0
        %963 = vmatprep.subr.bf16.mxu0 0
        %964 = vmatpush1.bf16.msra.mxu0 0
        %965 = vmatprep.subr.bf16.mxu0 0
        %966 = vmatpush1.bf16.msra.mxu0 0
        %967 = vmatprep.subr.bf16.mxu0 0
        %968 = vmatpush1.bf16.msra.mxu0 0
        %969 = vmatprep.subr.bf16.mxu0 0
        %970 = vmatpush1.bf16.msra.mxu0 0
        %971 = vmatprep.subr.bf16.mxu0 0
        %972 = vmatpush1.bf16.msra.mxu0 0
        %973 = vmatprep.mubr.bf16.mxu0 0
        %974 = vmatmul.mubr.bf16.gmra.mrb[0].mxu0 %v933
        %v975 = vpop.f32.mrb[0].mxu0
        %v976 = vadd.f32 0.0, %v975
        %v977 = vpop.f32.mrb[0].mxu0
        %v978 = vadd.f32 0.0, %v977
        %v979 = vpop.f32.mrb[0].mxu0
        %v980 = vadd.f32 0.0, %v979
        %v981 = vpop.f32.mrb[0].mxu0
        %v982 = vadd.f32 0.0, %v981
        %983 = vmatprep.mubr.bf16.mxu0 0
        %984 = vmatmul.mubr.bf16.gmra.mrb[0].mxu0 %v936
        %v985 = vpop.f32.mrb[0].mxu0
        %v986 = vadd.f32 0.0, %v985
        %v987 = vpop.f32.mrb[0].mxu0
        %v988 = vadd.f32 0.0, %v987
        %v989 = vpop.f32.mrb[0].mxu0
        %v990 = vadd.f32 0.0, %v989
        %v991 = vpop.f32.mrb[0].mxu0
        %v992 = vadd.f32 0.0, %v991
        %993 = vmatprep.mubr.bf16.mxu0 0
        %994 = vmatmul.mubr.bf16.gmra.mrb[0].mxu0 %v939
        %v995 = vpop.f32.mrb[0].mxu0
        %v996 = vadd.f32 0.0, %v995
        %v997 = vpop.f32.mrb[0].mxu0
        %v998 = vadd.f32 0.0, %v997
        %v999 = vpop.f32.mrb[0].mxu0
        %v1000 = vpop.f32.mrb[0].mxu0
        %1001 = vdwg.mxu0
        %v1002 = vld [vmem:[%s642] sm:$0xf]
        %v1003 = vld [vmem:[%s642 + $0x4] sm:$0xf]
        %v1004 = vld [vmem:[%s642 + $0x8] sm:$0xf]
        %v1005 = vld [vmem:[%s642 + $0xc] sm:$0xf]
        %v1006 = vld [vmem:[%s642 + $0x10] sm:$0xf]
        %v1007 = vld [vmem:[%s642 + $0x14] sm:$0xf]
        %v1008 = vld [vmem:[%s642 + $0x18] sm:$0xf]
        %v1009 = vld [vmem:[%s642 + $0x1c] sm:$0xf]
        %v1010 = vpack.c.bf16 %v980, %v976
        %v1011 = vpack.c.bf16 %v986, %v986
        %v1012 = vpack.c.bf16 %v982, %v978
        %v1013 = vpack.c.bf16 %v988, %v988
        %1016 = vrot.lane.b32.xlu0 %v1010, 64
        %v1017 = vpop.permute.xlu0 %1016
        %1018 = vrot.lane.b32.xlu0 %v1011, 64
        %v1019 = vpop.permute.xlu0 %1018
        %vm1020 = vcmask 130048
        %v1022 = vsel %vm1020, %v1010, 0
        %v1025 = vsel %vm1020, %v1011, 0
        %v1028 = vsel %vm1020, %v1017, 0
        %v1031 = vsel %vm1020, %v1019, 0
        %1033 = vmatprep.subr.bf16.mxu0 0
        %1034 = vmatpush1.bf16.xpose.msra.mxu0 %v1028
        %1035 = vmatprep.subr.bf16.mxu0 0
        %1036 = vmatpush1.bf16.xpose.msra.mxu0 %v1031
        %1037 = vmatprep.subr.bf16.mxu0 0
        %1038 = vmatpush1.bf16.xpose.msra.mxu0 0
        %1039 = vmatprep.subr.bf16.mxu0 0
        %1040 = vmatpush1.bf16.xpose.msra.mxu0 0
        %1041 = vmatprep.subr.bf16.mxu0 0
        %1042 = vmatpush1.bf16.xpose.msra.mxu0 0
        %1043 = vmatprep.subr.bf16.mxu0 0
        %1044 = vmatpush1.bf16.xpose.msra.mxu0 0
        %1045 = vmatprep.subr.bf16.mxu0 0
        %1046 = vmatpush1.bf16.xpose.msra.mxu0 0
        %1047 = vmatprep.subr.bf16.mxu0 0
        %1048 = vmatpush1.bf16.xpose.msra.mxu0 0
        %1049 = vmatprep.subr.bf16.mxu0 0
        %1050 = vmatpush1.bf16.xpose.msra.mxu0 0
        %1051 = vmatprep.subr.bf16.mxu0 0
        %1052 = vmatpush1.bf16.xpose.msra.mxu0 0
        %1053 = vmatprep.subr.bf16.mxu0 0
        %1054 = vmatpush1.bf16.xpose.msra.mxu0 0
        %1055 = vmatprep.subr.bf16.mxu0 0
        %1056 = vmatpush1.bf16.xpose.msra.mxu0 0
        %1057 = vmatprep.subr.bf16.mxu0 0
        %1058 = vmatpush1.bf16.xpose.msra.mxu0 0
        %1059 = vmatprep.subr.bf16.mxu0 0
        %1060 = vmatpush1.bf16.xpose.msra.mxu0 0
        %1061 = vmatprep.subr.bf16.mxu0 0
        %1062 = vmatpush1.bf16.xpose.msra.mxu0 0
        %1063 = vmatprep.subr.bf16.mxu0 0
        %1064 = vmatpush1.bf16.xpose.msra.mxu0 0
        %1065 = vmatprep.mubr.bf16.mxu0 0
        %1066 = vmatmul.mubr.bf16.gmra.mrb[0].mxu0 %v1022
        %v1067 = vpop.f32.mrb[0].mxu0
        %v1068 = vadd.f32 0.0, %v1067
        %v1069 = vpop.f32.mrb[0].mxu0
        %v1070 = vpop.f32.mrb[0].mxu0
        %v1071 = vadd.f32 0.0, %v1070
        %v1072 = vpop.f32.mrb[0].mxu0
        %1073 = vmatprep.mubr.bf16.mxu0 0
        %1074 = vmatmul.mubr.bf16.gmra.mrb[0].mxu0 %v1025
        %v1075 = vpop.f32.mrb[0].mxu0
        %v1076 = vadd.f32 0.0, %v1075
        %v1077 = vpop.f32.mrb[0].mxu0
        %v1078 = vpop.f32.mrb[0].mxu0
        %v1079 = vpop.f32.mrb[0].mxu0
        %1080 = vdwg.mxu0
        %v1081 = vmul.f32 %v1068, 0.125
        %v1082 = vmul.f32 %v1071, 0.125
        %v1083 = vmul.f32 %v1076, 0.125
        %vm1084 = vcmask 138240
        %v1085 = vsel %vm1084, %v1081, -inf
        %1086 = vmax.xlane.f32.xlu0 %v1085
        %v1087 = vpop.xlane.xlu0 %1086
        %v1088 = vsel %vm1084, %v1082, -inf
        %1089 = vmax.xlane.f32.xlu0 %v1088
        %v1090 = vpop.xlane.xlu0 %1089
        %vm1091 = vcmask 131072
        %v1092 = vsel %vm1091, %v1083, -inf
        %1093 = vmax.xlane.f32.xlu0 %v1092
        %v1094 = vpop.xlane.xlu0 %1093
        %v1095 = vsub.f32 %v1081, %v1087
        %v1096 = vsub.f32 %v1082, %v1090
        %v1097 = vsub.f32 %v1083, %v1094
        %v1098 = vmul.f32 %v1095, 1.442695
        %v1099 = vpow.pop %v1098
        %v1100 = vmul.f32 %v1096, 1.442695
        %v1101 = vpow.pop %v1100
        %v1102 = vmul.f32 %v1097, 1.442695
        %v1103 = vpow.pop %v1102
        %v1104 = vsel %vm1084, %v1099, 0.0
        %1105 = vadd.xlane.f32.xlu0 %v1104
        %v1106 = vpop.xlane.xlu0 %1105
        %v1107 = vsel %vm1084, %v1101, 0.0
        %1108 = vadd.xlane.f32.xlu0 %v1107
        %v1109 = vpop.xlane.xlu0 %1108
        %v1110 = vsel %vm1091, %v1103, 0.0
        %1111 = vadd.xlane.f32.xlu0 %v1110
        %v1112 = vpop.xlane.xlu0 %1111
        %v1113 = vrcp.pop %v1106
        %v1114 = vrcp.pop %v1109
        %v1115 = vrcp.pop %v1112
        %v1116 = vmul.f32 %v1099, %v1113
        %v1117 = vmul.f32 %v1101, %v1114
        %v1118 = vmul.f32 %v1103, %v1115
        %v1119 = vpack.c.bf16 %v1117, %v1116
        %v1120 = vpack.c.bf16 %v1118, %v1118
        %v1122 = vsel %vm1084, %v1119, 0
        %v1125 = vsel %vm1084, %v1120, 0
        %vm1127 = vcmask 1040384
        %v1128 = vsel 0, 4294967295, 65535
        %v1129 = vsel %vm1127, %v1128, 0
        %v1131 = vand.u32 %v1013, %v1129
        %1133 = vmatprep.subr.bf16.mxu0 0
        %1134 = vmatpush1.bf16.msra.mxu0 %v1012
        %1135 = vmatprep.subr.bf16.mxu0 0
        %1136 = vmatpush1.bf16.msra.mxu0 %v1131
        %1137 = vmatprep.subr.bf16.mxu0 0
        %1138 = vmatpush1.bf16.msra.mxu0 0
        %1139 = vmatprep.subr.bf16.mxu0 0
        %1140 = vmatpush1.bf16.msra.mxu0 0
        %1141 = vmatprep.subr.bf16.mxu0 0
        %1142 = vmatpush1.bf16.msra.mxu0 0
        %1143 = vmatprep.subr.bf16.mxu0 0
        %1144 = vmatpush1.bf16.msra.mxu0 0
        %1145 = vmatprep.subr.bf16.mxu0 0
        %1146 = vmatpush1.bf16.msra.mxu0 0
        %1147 = vmatprep.subr.bf16.mxu0 0
        %1148 = vmatpush1.bf16.msra.mxu0 0
        %1149 = vmatprep.subr.bf16.mxu0 0
        %1150 = vmatpush1.bf16.msra.mxu0 0
        %1151 = vmatprep.subr.bf16.mxu0 0
        %1152 = vmatpush1.bf16.msra.mxu0 0
        %1153 = vmatprep.subr.bf16.mxu0 0
        %1154 = vmatpush1.bf16.msra.mxu0 0
        %1155 = vmatprep.subr.bf16.mxu0 0
        %1156 = vmatpush1.bf16.msra.mxu0 0
        %1157 = vmatprep.subr.bf16.mxu0 0
        %1158 = vmatpush1.bf16.msra.mxu0 0
        %1159 = vmatprep.subr.bf16.mxu0 0
        %1160 = vmatpush1.bf16.msra.mxu0 0
        %1161 = vmatprep.subr.bf16.mxu0 0
        %1162 = vmatpush1.bf16.msra.mxu0 0
        %1163 = vmatprep.subr.bf16.mxu0 0
        %1164 = vmatpush1.bf16.msra.mxu0 0
        %1165 = vmatprep.mubr.bf16.mxu0 0
        %1166 = vmatmul.mubr.bf16.gmra.mrb[0].mxu0 %v1122
        %v1167 = vpop.f32.mrb[0].mxu0
        %v1168 = vadd.f32 0.0, %v1167
        %v1169 = vpop.f32.mrb[0].mxu0
        %v1170 = vpop.f32.mrb[0].mxu0
        %v1171 = vadd.f32 0.0, %v1170
        %v1172 = vpop.f32.mrb[0].mxu0
        %1173 = vmatprep.mubr.bf16.mxu0 0
        %1174 = vmatmul.mubr.bf16.gmra.mrb[0].mxu0 %v1125
        %v1175 = vpop.f32.mrb[0].mxu0
        %v1176 = vadd.f32 0.0, %v1175
        %v1177 = vpop.f32.mrb[0].mxu0
        %v1178 = vpop.f32.mrb[0].mxu0
        %v1179 = vpop.f32.mrb[0].mxu0
        %1180 = vdwg.mxu0
        %v1181 = vpack.c.bf16 %v1171, %v1168
        %v1182 = vpack.c.bf16 %v1176, %v1176
        %1183 = vrot.lane.b32.xlu0 %v1010, 112
        %v1184 = vpop.permute.xlu0 %1183
        %1185 = vrot.lane.b32.xlu0 %v1011, 112
        %v1186 = vpop.permute.xlu0 %1185
        %1187 = vrot.lane.b32.xlu0 %v1010, 48
        %v1188 = vpop.permute.xlu0 %1187
        %1189 = vrot.lane.b32.xlu0 %v1011, 48
        %v1190 = vpop.permute.xlu0 %1189
        %v1192 = vsel %vm1020, %v1184, 0
        %v1195 = vsel %vm1020, %v1186, 0
        %v1198 = vsel %vm1020, %v1188, 0
        %v1201 = vsel %vm1020, %v1190, 0
        %1203 = vmatprep.subr.bf16.mxu0 0
        %1204 = vmatpush1.bf16.xpose.msra.mxu0 %v1198
        %1205 = vmatprep.subr.bf16.mxu0 0
        %1206 = vmatpush1.bf16.xpose.msra.mxu0 %v1201
        %1207 = vmatprep.subr.bf16.mxu0 0
        %1208 = vmatpush1.bf16.xpose.msra.mxu0 0
        %1209 = vmatprep.subr.bf16.mxu0 0
        %1210 = vmatpush1.bf16.xpose.msra.mxu0 0
        %1211 = vmatprep.subr.bf16.mxu0 0
        %1212 = vmatpush1.bf16.xpose.msra.mxu0 0
        %1213 = vmatprep.subr.bf16.mxu0 0
        %1214 = vmatpush1.bf16.xpose.msra.mxu0 0
        %1215 = vmatprep.subr.bf16.mxu0 0
        %1216 = vmatpush1.bf16.xpose.msra.mxu0 0
        %1217 = vmatprep.subr.bf16.mxu0 0
        %1218 = vmatpush1.bf16.xpose.msra.mxu0 0
        %1219 = vmatprep.subr.bf16.mxu0 0
        %1220 = vmatpush1.bf16.xpose.msra.mxu0 0
        %1221 = vmatprep.subr.bf16.mxu0 0
        %1222 = vmatpush1.bf16.xpose.msra.mxu0 0
        %1223 = vmatprep.subr.bf16.mxu0 0
        %1224 = vmatpush1.bf16.xpose.msra.mxu0 0
        %1225 = vmatprep.subr.bf16.mxu0 0
        %1226 = vmatpush1.bf16.xpose.msra.mxu0 0
        %1227 = vmatprep.subr.bf16.mxu0 0
        %1228 = vmatpush1.bf16.xpose.msra.mxu0 0
        %1229 = vmatprep.subr.bf16.mxu0 0
        %1230 = vmatpush1.bf16.xpose.msra.mxu0 0
        %1231 = vmatprep.subr.bf16.mxu0 0
        %1232 = vmatpush1.bf16.xpose.msra.mxu0 0
        %1233 = vmatprep.subr.bf16.mxu0 0
        %1234 = vmatpush1.bf16.xpose.msra.mxu0 0
        %1235 = vmatprep.mubr.bf16.mxu0 0
        %1236 = vmatmul.mubr.bf16.gmra.mrb[0].mxu0 %v1192
        %v1237 = vpop.f32.mrb[0].mxu0
        %v1238 = vadd.f32 0.0, %v1237
        %v1239 = vpop.f32.mrb[0].mxu0
        %v1240 = vpop.f32.mrb[0].mxu0
        %v1241 = vadd.f32 0.0, %v1240
        %v1242 = vpop.f32.mrb[0].mxu0
        %1243 = vmatprep.mubr.bf16.mxu0 0
        %1244 = vmatmul.mubr.bf16.gmra.mrb[0].mxu0 %v1195
        %v1245 = vpop.f32.mrb[0].mxu0
        %v1246 = vadd.f32 0.0, %v1245
        %v1247 = vpop.f32.mrb[0].mxu0
        %v1248 = vpop.f32.mrb[0].mxu0
        %v1249 = vpop.f32.mrb[0].mxu0
        %1250 = vdwg.mxu0
        %v1251 = vmul.f32 %v1238, 0.125
        %v1252 = vmul.f32 %v1241, 0.125
        %v1253 = vmul.f32 %v1246, 0.125
        %v1254 = vsel %vm1084, %v1251, -inf
        %1255 = vmax.xlane.f32.xlu0 %v1254
        %v1256 = vpop.xlane.xlu0 %1255
        %v1257 = vsel %vm1084, %v1252, -inf
        %1258 = vmax.xlane.f32.xlu0 %v1257
        %v1259 = vpop.xlane.xlu0 %1258
        %v1260 = vsel %vm1091, %v1253, -inf
        %1261 = vmax.xlane.f32.xlu0 %v1260
        %v1262 = vpop.xlane.xlu0 %1261
        %v1263 = vsub.f32 %v1251, %v1256
        %v1264 = vsub.f32 %v1252, %v1259
        %v1265 = vsub.f32 %v1253, %v1262
        %v1266 = vmul.f32 %v1263, 1.442695
        %v1267 = vpow.pop %v1266
        %v1268 = vmul.f32 %v1264, 1.442695
        %v1269 = vpow.pop %v1268
        %v1270 = vmul.f32 %v1265, 1.442695
        %v1271 = vpow.pop %v1270
        %v1272 = vsel %vm1084, %v1267, 0.0
        %1273 = vadd.xlane.f32.xlu0 %v1272
        %v1274 = vpop.xlane.xlu0 %1273
        %v1275 = vsel %vm1084, %v1269, 0.0
        %1276 = vadd.xlane.f32.xlu0 %v1275
        %v1277 = vpop.xlane.xlu0 %1276
        %v1278 = vsel %vm1091, %v1271, 0.0
        %1279 = vadd.xlane.f32.xlu0 %v1278
        %v1280 = vpop.xlane.xlu0 %1279
        %v1281 = vrcp.pop %v1274
        %v1282 = vrcp.pop %v1277
        %v1283 = vrcp.pop %v1280
        %v1284 = vmul.f32 %v1267, %v1281
        %v1285 = vmul.f32 %v1269, %v1282
        %v1286 = vmul.f32 %v1271, %v1283
        %v1287 = vpack.c.bf16 %v1285, %v1284
        %v1288 = vpack.c.bf16 %v1286, %v1286
        %1291 = vrot.lane.b32.xlu0 %v1012, 112
        %v1292 = vpop.permute.xlu0 %1291
        %1293 = vrot.lane.b32.xlu0 %v1013, 112
        %v1294 = vpop.permute.xlu0 %1293
        %v1297 = vsel %vm1084, %v1287, 0
        %v1300 = vsel %vm1084, %v1288, 0
        %v1303 = vand.u32 %v1294, %v1129
        %1305 = vmatprep.subr.bf16.mxu0 0
        %1306 = vmatpush1.bf16.msra.mxu0 %v1292
        %1307 = vmatprep.subr.bf16.mxu0 0
        %1308 = vmatpush1.bf16.msra.mxu0 %v1303
        %1309 = vmatprep.subr.bf16.mxu0 0
        %1310 = vmatpush1.bf16.msra.mxu0 0
        %1311 = vmatprep.subr.bf16.mxu0 0
        %1312 = vmatpush1.bf16.msra.mxu0 0
        %1313 = vmatprep.subr.bf16.mxu0 0
        %1314 = vmatpush1.bf16.msra.mxu0 0
        %1315 = vmatprep.subr.bf16.mxu0 0
        %1316 = vmatpush1.bf16.msra.mxu0 0
        %1317 = vmatprep.subr.bf16.mxu0 0
        %1318 = vmatpush1.bf16.msra.mxu0 0
        %1319 = vmatprep.subr.bf16.mxu0 0
        %1320 = vmatpush1.bf16.msra.mxu0 0
        %1321 = vmatprep.subr.bf16.mxu0 0
        %1322 = vmatpush1.bf16.msra.mxu0 0
        %1323 = vmatprep.subr.bf16.mxu0 0
        %1324 = vmatpush1.bf16.msra.mxu0 0
        %1325 = vmatprep.subr.bf16.mxu0 0
        %1326 = vmatpush1.bf16.msra.mxu0 0
        %1327 = vmatprep.subr.bf16.mxu0 0
        %1328 = vmatpush1.bf16.msra.mxu0 0
        %1329 = vmatprep.subr.bf16.mxu0 0
        %1330 = vmatpush1.bf16.msra.mxu0 0
        %1331 = vmatprep.subr.bf16.mxu0 0
        %1332 = vmatpush1.bf16.msra.mxu0 0
        %1333 = vmatprep.subr.bf16.mxu0 0
        %1334 = vmatpush1.bf16.msra.mxu0 0
        %1335 = vmatprep.subr.bf16.mxu0 0
        %1336 = vmatpush1.bf16.msra.mxu0 0
        %1337 = vmatprep.mubr.bf16.mxu0 0
        %1338 = vmatmul.mubr.bf16.gmra.mrb[0].mxu0 %v1297
        %v1339 = vpop.f32.mrb[0].mxu0
        %v1340 = vadd.f32 0.0, %v1339
        %v1341 = vpop.f32.mrb[0].mxu0
        %v1342 = vpop.f32.mrb[0].mxu0
        %v1343 = vadd.f32 0.0, %v1342
        %v1344 = vpop.f32.mrb[0].mxu0
        %1345 = vmatprep.mubr.bf16.mxu0 0
        %1346 = vmatmul.mubr.bf16.gmra.mrb[0].mxu0 %v1300
        %v1347 = vpop.f32.mrb[0].mxu0
        %v1348 = vadd.f32 0.0, %v1347
        %v1349 = vpop.f32.mrb[0].mxu0
        %v1350 = vpop.f32.mrb[0].mxu0
        %v1351 = vpop.f32.mrb[0].mxu0
        %1352 = vdwg.mxu0
        %v1353 = vpack.c.bf16 %v1343, %v1340
        %v1354 = vpack.c.bf16 %v1348, %v1348
        %v1357 = vunpack.c.l.b16 %v1004
        %v1358 = vunpack.c.l.b16 %v1005
        %v1359 = vpack.c.b16 %v1358, %v1357
        %v1362 = vsel %vm1020, %v1353, 0
        %v1365 = vsel %vm1020, %v1354, 0
        %1367 = vmatprep.subr.bf16.mxu0 0
        %1368 = vmatpush1.bf16.msra.mxu0 %v1359
        %1369 = vmatprep.subr.bf16.mxu0 0
        %1370 = vmatpush1.bf16.msra.mxu0 0
        %1371 = vmatprep.subr.bf16.mxu0 0
        %1372 = vmatpush1.bf16.msra.mxu0 0
        %1373 = vmatprep.subr.bf16.mxu0 0
        %1374 = vmatpush1.bf16.msra.mxu0 0
        %1375 = vmatprep.subr.bf16.mxu0 0
        %1376 = vmatpush1.bf16.msra.mxu0 0
        %1377 = vmatprep.subr.bf16.mxu0 0
        %1378 = vmatpush1.bf16.msra.mxu0 0
        %1379 = vmatprep.subr.bf16.mxu0 0
        %1380 = vmatpush1.bf16.msra.mxu0 0
        %1381 = vmatprep.subr.bf16.mxu0 0
        %1382 = vmatpush1.bf16.msra.mxu0 0
        %1383 = vmatprep.subr.bf16.mxu0 0
        %1384 = vmatpush1.bf16.msra.mxu0 0
        %1385 = vmatprep.subr.bf16.mxu0 0
        %1386 = vmatpush1.bf16.msra.mxu0 0
        %1387 = vmatprep.subr.bf16.mxu0 0
        %1388 = vmatpush1.bf16.msra.mxu0 0
        %1389 = vmatprep.subr.bf16.mxu0 0
        %1390 = vmatpush1.bf16.msra.mxu0 0
        %1391 = vmatprep.subr.bf16.mxu0 0
        %1392 = vmatpush1.bf16.msra.mxu0 0
        %1393 = vmatprep.subr.bf16.mxu0 0
        %1394 = vmatpush1.bf16.msra.mxu0 0
        %1395 = vmatprep.subr.bf16.mxu0 0
        %1396 = vmatpush1.bf16.msra.mxu0 0
        %1397 = vmatprep.subr.bf16.mxu0 0
        %1398 = vmatpush1.bf16.msra.mxu0 0
        %1399 = vmatprep.mubr.bf16.mxu0 0
        %1400 = vmatmul.mubr.bf16.gmra.mrb[0].mxu0 %v1362
        %v1401 = vpop.f32.mrb[0].mxu0
        %v1402 = vadd.f32 0.0, %v1401
        %v1403 = vpop.f32.mrb[0].mxu0
        %v1404 = vpop.f32.mrb[0].mxu0
        %v1405 = vadd.f32 0.0, %v1404
        %v1406 = vpop.f32.mrb[0].mxu0
        %1407 = vmatprep.mubr.bf16.mxu0 0
        %1408 = vmatmul.mubr.bf16.gmra.mrb[0].mxu0 %v1365
        %v1409 = vpop.f32.mrb[0].mxu0
        %v1410 = vadd.f32 0.0, %v1409
        %v1411 = vpop.f32.mrb[0].mxu0
        %v1412 = vpop.f32.mrb[0].mxu0
        %v1413 = vpop.f32.mrb[0].mxu0
        %1414 = vdwg.mxu0
        %v1417 = vunpack.c.l.b16 %v1002
        %v1418 = vunpack.c.l.b16 %v1003
        %v1419 = vpack.c.b16 %v1418, %v1417
        %v1422 = vsel %vm1020, %v1181, 0
        %v1425 = vsel %vm1020, %v1182, 0
        %1427 = vmatprep.subr.bf16.mxu0 0
        %1428 = vmatpush1.bf16.msra.mxu0 %v1419
        %1429 = vmatprep.subr.bf16.mxu0 0
        %1430 = vmatpush1.bf16.msra.mxu0 0
        %1431 = vmatprep.subr.bf16.mxu0 0
        %1432 = vmatpush1.bf16.msra.mxu0 0
        %1433 = vmatprep.subr.bf16.mxu0 0
        %1434 = vmatpush1.bf16.msra.mxu0 0
        %1435 = vmatprep.subr.bf16.mxu0 0
        %1436 = vmatpush1.bf16.msra.mxu0 0
        %1437 = vmatprep.subr.bf16.mxu0 0
        %1438 = vmatpush1.bf16.msra.mxu0 0
        %1439 = vmatprep.subr.bf16.mxu0 0
        %1440 = vmatpush1.bf16.msra.mxu0 0
        %1441 = vmatprep.subr.bf16.mxu0 0
        %1442 = vmatpush1.bf16.msra.mxu0 0
        %1443 = vmatprep.subr.bf16.mxu0 0
        %1444 = vmatpush1.bf16.msra.mxu0 0
        %1445 = vmatprep.subr.bf16.mxu0 0
        %1446 = vmatpush1.bf16.msra.mxu0 0
        %1447 = vmatprep.subr.bf16.mxu0 0
        %1448 = vmatpush1.bf16.msra.mxu0 0
        %1449 = vmatprep.subr.bf16.mxu0 0
        %1450 = vmatpush1.bf16.msra.mxu0 0
        %1451 = vmatprep.subr.bf16.mxu0 0
        %1452 = vmatpush1.bf16.msra.mxu0 0
        %1453 = vmatprep.subr.bf16.mxu0 0
        %1454 = vmatpush1.bf16.msra.mxu0 0
        %1455 = vmatprep.subr.bf16.mxu0 0
        %1456 = vmatpush1.bf16.msra.mxu0 0
        %1457 = vmatprep.subr.bf16.mxu0 0
        %1458 = vmatpush1.bf16.msra.mxu0 0
        %1459 = vmatprep.mubr.bf16.mxu0 0
        %1460 = vmatmul.mubr.bf16.gmra.mrb[0].mxu0 %v1422
        %v1461 = vpop.f32.mrb[0].mxu0
        %v1462 = vadd.f32 %v1402, %v1461
        %v1463 = vpop.f32.mrb[0].mxu0
        %v1464 = vpop.f32.mrb[0].mxu0
        %v1465 = vadd.f32 %v1405, %v1464
        %v1466 = vpop.f32.mrb[0].mxu0
        %1467 = vmatprep.mubr.bf16.mxu0 0
        %1468 = vmatmul.mubr.bf16.gmra.mrb[0].mxu0 %v1425
        %v1469 = vpop.f32.mrb[0].mxu0
        %v1470 = vadd.f32 %v1410, %v1469
        %v1471 = vpop.f32.mrb[0].mxu0
        %v1472 = vpop.f32.mrb[0].mxu0
        %v1473 = vpop.f32.mrb[0].mxu0
        %1474 = vdwg.mxu0
        %1475 = vrot.lane.b32.xlu0 %v1010, 96
        %v1476 = vpop.permute.xlu0 %1475
        %1477 = vrot.lane.b32.xlu0 %v1011, 96
        %v1478 = vpop.permute.xlu0 %1477
        %1479 = vrot.lane.b32.xlu0 %v1010, 32
        %v1480 = vpop.permute.xlu0 %1479
        %1481 = vrot.lane.b32.xlu0 %v1011, 32
        %v1482 = vpop.permute.xlu0 %1481
        %v1484 = vsel %vm1020, %v1476, 0
        %v1487 = vsel %vm1020, %v1478, 0
        %v1490 = vsel %vm1020, %v1480, 0
        %v1493 = vsel %vm1020, %v1482, 0
        %1495 = vmatprep.subr.bf16.mxu0 0
        %1496 = vmatpush1.bf16.xpose.msra.mxu0 %v1490
        %1497 = vmatprep.subr.bf16.mxu0 0
        %1498 = vmatpush1.bf16.xpose.msra.mxu0 %v1493
        %1499 = vmatprep.subr.bf16.mxu0 0
        %1500 = vmatpush1.bf16.xpose.msra.mxu0 0
        %1501 = vmatprep.subr.bf16.mxu0 0
        %1502 = vmatpush1.bf16.xpose.msra.mxu0 0
        %1503 = vmatprep.subr.bf16.mxu0 0
        %1504 = vmatpush1.bf16.xpose.msra.mxu0 0
        %1505 = vmatprep.subr.bf16.mxu0 0
        %1506 = vmatpush1.bf16.xpose.msra.mxu0 0
        %1507 = vmatprep.subr.bf16.mxu0 0
        %1508 = vmatpush1.bf16.xpose.msra.mxu0 0
        %1509 = vmatprep.subr.bf16.mxu0 0
        %1510 = vmatpush1.bf16.xpose.msra.mxu0 0
        %1511 = vmatprep.subr.bf16.mxu0 0
        %1512 = vmatpush1.bf16.xpose.msra.mxu0 0
        %1513 = vmatprep.subr.bf16.mxu0 0
        %1514 = vmatpush1.bf16.xpose.msra.mxu0 0
        %1515 = vmatprep.subr.bf16.mxu0 0
        %1516 = vmatpush1.bf16.xpose.msra.mxu0 0
        %1517 = vmatprep.subr.bf16.mxu0 0
        %1518 = vmatpush1.bf16.xpose.msra.mxu0 0
        %1519 = vmatprep.subr.bf16.mxu0 0
        %1520 = vmatpush1.bf16.xpose.msra.mxu0 0
        %1521 = vmatprep.subr.bf16.mxu0 0
        %1522 = vmatpush1.bf16.xpose.msra.mxu0 0
        %1523 = vmatprep.subr.bf16.mxu0 0
        %1524 = vmatpush1.bf16.xpose.msra.mxu0 0
        %1525 = vmatprep.subr.bf16.mxu0 0
        %1526 = vmatpush1.bf16.xpose.msra.mxu0 0
        %1527 = vmatprep.mubr.bf16.mxu0 0
        %1528 = vmatmul.mubr.bf16.gmra.mrb[0].mxu0 %v1484
        %v1529 = vpop.f32.mrb[0].mxu0
        %v1530 = vadd.f32 0.0, %v1529
        %v1531 = vpop.f32.mrb[0].mxu0
        %v1532 = vpop.f32.mrb[0].mxu0
        %v1533 = vadd.f32 0.0, %v1532
        %v1534 = vpop.f32.mrb[0].mxu0
        %1535 = vmatprep.mubr.bf16.mxu0 0
        %1536 = vmatmul.mubr.bf16.gmra.mrb[0].mxu0 %v1487
        %v1537 = vpop.f32.mrb[0].mxu0
        %v1538 = vadd.f32 0.0, %v1537
        %v1539 = vpop.f32.mrb[0].mxu0
        %v1540 = vpop.f32.mrb[0].mxu0
        %v1541 = vpop.f32.mrb[0].mxu0
        %1542 = vdwg.mxu0
        %v1543 = vmul.f32 %v1530, 0.125
        %v1544 = vmul.f32 %v1533, 0.125
        %v1545 = vmul.f32 %v1538, 0.125
        %v1546 = vsel %vm1084, %v1543, -inf
        %1547 = vmax.xlane.f32.xlu0 %v1546
        %v1548 = vpop.xlane.xlu0 %1547
        %v1549 = vsel %vm1084, %v1544, -inf
        %1550 = vmax.xlane.f32.xlu0 %v1549
        %v1551 = vpop.xlane.xlu0 %1550
        %v1552 = vsel %vm1091, %v1545, -inf
        %1553 = vmax.xlane.f32.xlu0 %v1552
        %v1554 = vpop.xlane.xlu0 %1553
        %v1555 = vsub.f32 %v1543, %v1548
        %v1556 = vsub.f32 %v1544, %v1551
        %v1557 = vsub.f32 %v1545, %v1554
        %v1558 = vmul.f32 %v1555, 1.442695
        %v1559 = vpow.pop %v1558
        %v1560 = vmul.f32 %v1556, 1.442695
        %v1561 = vpow.pop %v1560
        %v1562 = vmul.f32 %v1557, 1.442695
        %v1563 = vpow.pop %v1562
        %v1564 = vsel %vm1084, %v1559, 0.0
        %1565 = vadd.xlane.f32.xlu0 %v1564
        %v1566 = vpop.xlane.xlu0 %1565
        %v1567 = vsel %vm1084, %v1561, 0.0
        %1568 = vadd.xlane.f32.xlu0 %v1567
        %v1569 = vpop.xlane.xlu0 %1568
        %v1570 = vsel %vm1091, %v1563, 0.0
        %1571 = vadd.xlane.f32.xlu0 %v1570
        %v1572 = vpop.xlane.xlu0 %1571
        %v1573 = vrcp.pop %v1566
        %v1574 = vrcp.pop %v1569
        %v1575 = vrcp.pop %v1572
        %v1576 = vmul.f32 %v1559, %v1573
        %v1577 = vmul.f32 %v1561, %v1574
        %v1578 = vmul.f32 %v1563, %v1575
        %v1579 = vpack.c.bf16 %v1577, %v1576
        %v1580 = vpack.c.bf16 %v1578, %v1578
        %1581 = vrot.lane.b32.xlu0 %v1012, 96
        %v1582 = vpop.permute.xlu0 %1581
        %1583 = vrot.lane.b32.xlu0 %v1013, 96
        %v1584 = vpop.permute.xlu0 %1583
        %v1587 = vsel %vm1084, %v1579, 0
        %v1590 = vsel %vm1084, %v1580, 0
        %v1593 = vand.u32 %v1584, %v1129
        %1595 = vmatprep.subr.bf16.mxu0 0
        %1596 = vmatpush1.bf16.msra.mxu0 %v1582
        %1597 = vmatprep.subr.bf16.mxu0 0
        %1598 = vmatpush1.bf16.msra.mxu0 %v1593
        %1599 = vmatprep.subr.bf16.mxu0 0
        %1600 = vmatpush1.bf16.msra.mxu0 0
        %1601 = vmatprep.subr.bf16.mxu0 0
        %1602 = vmatpush1.bf16.msra.mxu0 0
        %1603 = vmatprep.subr.bf16.mxu0 0
        %1604 = vmatpush1.bf16.msra.mxu0 0
        %1605 = vmatprep.subr.bf16.mxu0 0
        %1606 = vmatpush1.bf16.msra.mxu0 0
        %1607 = vmatprep.subr.bf16.mxu0 0
        %1608 = vmatpush1.bf16.msra.mxu0 0
        %1609 = vmatprep.subr.bf16.mxu0 0
        %1610 = vmatpush1.bf16.msra.mxu0 0
        %1611 = vmatprep.subr.bf16.mxu0 0
        %1612 = vmatpush1.bf16.msra.mxu0 0
        %1613 = vmatprep.subr.bf16.mxu0 0
        %1614 = vmatpush1.bf16.msra.mxu0 0
        %1615 = vmatprep.subr.bf16.mxu0 0
        %1616 = vmatpush1.bf16.msra.mxu0 0
        %1617 = vmatprep.subr.bf16.mxu0 0
        %1618 = vmatpush1.bf16.msra.mxu0 0
        %1619 = vmatprep.subr.bf16.mxu0 0
        %1620 = vmatpush1.bf16.msra.mxu0 0
        %1621 = vmatprep.subr.bf16.mxu0 0
        %1622 = vmatpush1.bf16.msra.mxu0 0
        %1623 = vmatprep.subr.bf16.mxu0 0
        %1624 = vmatpush1.bf16.msra.mxu0 0
        %1625 = vmatprep.subr.bf16.mxu0 0
        %1626 = vmatpush1.bf16.msra.mxu0 0
        %1627 = vmatprep.mubr.bf16.mxu0 0
        %1628 = vmatmul.mubr.bf16.gmra.mrb[0].mxu0 %v1587
        %v1629 = vpop.f32.mrb[0].mxu0
        %v1630 = vadd.f32 0.0, %v1629
        %v1631 = vpop.f32.mrb[0].mxu0
        %v1632 = vpop.f32.mrb[0].mxu0
        %v1633 = vadd.f32 0.0, %v1632
        %v1634 = vpop.f32.mrb[0].mxu0
        %1635 = vmatprep.mubr.bf16.mxu0 0
        %1636 = vmatmul.mubr.bf16.gmra.mrb[0].mxu0 %v1590
        %v1637 = vpop.f32.mrb[0].mxu0
        %v1638 = vadd.f32 0.0, %v1637
        %v1639 = vpop.f32.mrb[0].mxu0
        %v1640 = vpop.f32.mrb[0].mxu0
        %v1641 = vpop.f32.mrb[0].mxu0
        %1642 = vdwg.mxu0
        %v1643 = vpack.c.bf16 %v1633, %v1630
        %v1644 = vpack.c.bf16 %v1638, %v1638
        %v1647 = vunpack.c.l.b16 %v1006
        %v1648 = vunpack.c.l.b16 %v1007
        %v1649 = vpack.c.b16 %v1648, %v1647
        %v1652 = vsel %vm1020, %v1643, 0
        %v1655 = vsel %vm1020, %v1644, 0
        %1657 = vmatprep.subr.bf16.mxu0 0
        %1658 = vmatpush1.bf16.msra.mxu0 %v1649
        %1659 = vmatprep.subr.bf16.mxu0 0
        %1660 = vmatpush1.bf16.msra.mxu0 0
        %1661 = vmatprep.subr.bf16.mxu0 0
        %1662 = vmatpush1.bf16.msra.mxu0 0
        %1663 = vmatprep.subr.bf16.mxu0 0
        %1664 = vmatpush1.bf16.msra.mxu0 0
        %1665 = vmatprep.subr.bf16.mxu0 0
        %1666 = vmatpush1.bf16.msra.mxu0 0
        %1667 = vmatprep.subr.bf16.mxu0 0
        %1668 = vmatpush1.bf16.msra.mxu0 0
        %1669 = vmatprep.subr.bf16.mxu0 0
        %1670 = vmatpush1.bf16.msra.mxu0 0
        %1671 = vmatprep.subr.bf16.mxu0 0
        %1672 = vmatpush1.bf16.msra.mxu0 0
        %1673 = vmatprep.subr.bf16.mxu0 0
        %1674 = vmatpush1.bf16.msra.mxu0 0
        %1675 = vmatprep.subr.bf16.mxu0 0
        %1676 = vmatpush1.bf16.msra.mxu0 0
        %1677 = vmatprep.subr.bf16.mxu0 0
        %1678 = vmatpush1.bf16.msra.mxu0 0
        %1679 = vmatprep.subr.bf16.mxu0 0
        %1680 = vmatpush1.bf16.msra.mxu0 0
        %1681 = vmatprep.subr.bf16.mxu0 0
        %1682 = vmatpush1.bf16.msra.mxu0 0
        %1683 = vmatprep.subr.bf16.mxu0 0
        %1684 = vmatpush1.bf16.msra.mxu0 0
        %1685 = vmatprep.subr.bf16.mxu0 0
        %1686 = vmatpush1.bf16.msra.mxu0 0
        %1687 = vmatprep.subr.bf16.mxu0 0
        %1688 = vmatpush1.bf16.msra.mxu0 0
        %1689 = vmatprep.mubr.bf16.mxu0 0
        %1690 = vmatmul.mubr.bf16.gmra.mrb[0].mxu0 %v1652
        %v1691 = vpop.f32.mrb[0].mxu0
        %v1692 = vadd.f32 0.0, %v1691
        %v1693 = vpop.f32.mrb[0].mxu0
        %v1694 = vpop.f32.mrb[0].mxu0
        %v1695 = vadd.f32 0.0, %v1694
        %v1696 = vpop.f32.mrb[0].mxu0
        %1697 = vmatprep.mubr.bf16.mxu0 0
        %1698 = vmatmul.mubr.bf16.gmra.mrb[0].mxu0 %v1655
        %v1699 = vpop.f32.mrb[0].mxu0
        %v1700 = vadd.f32 0.0, %v1699
        %v1701 = vpop.f32.mrb[0].mxu0
        %v1702 = vpop.f32.mrb[0].mxu0
        %v1703 = vpop.f32.mrb[0].mxu0
        %1704 = vdwg.mxu0
        %v1705 = vadd.f32 %v1462, %v1692
        %v1706 = vadd.f32 %v1465, %v1695
        %v1707 = vadd.f32 %v1470, %v1700
        %1708 = vrot.lane.b32.xlu0 %v1010, 80
        %v1709 = vpop.permute.xlu0 %1708
        %1710 = vrot.lane.b32.xlu0 %v1011, 80
        %v1711 = vpop.permute.xlu0 %1710
        %1712 = vrot.lane.b32.xlu0 %v1010, 16
        %v1713 = vpop.permute.xlu0 %1712
        %1714 = vrot.lane.b32.xlu0 %v1011, 16
        %v1715 = vpop.permute.xlu0 %1714
        %v1717 = vsel %vm1020, %v1709, 0
        %v1720 = vsel %vm1020, %v1711, 0
        %v1723 = vsel %vm1020, %v1713, 0
        %v1726 = vsel %vm1020, %v1715, 0
        %1728 = vmatprep.subr.bf16.mxu0 0
        %1729 = vmatpush1.bf16.xpose.msra.mxu0 %v1723
        %1730 = vmatprep.subr.bf16.mxu0 0
        %1731 = vmatpush1.bf16.xpose.msra.mxu0 %v1726
        %1732 = vmatprep.subr.bf16.mxu0 0
        %1733 = vmatpush1.bf16.xpose.msra.mxu0 0
        %1734 = vmatprep.subr.bf16.mxu0 0
        %1735 = vmatpush1.bf16.xpose.msra.mxu0 0
        %1736 = vmatprep.subr.bf16.mxu0 0
        %1737 = vmatpush1.bf16.xpose.msra.mxu0 0
        %1738 = vmatprep.subr.bf16.mxu0 0
        %1739 = vmatpush1.bf16.xpose.msra.mxu0 0
        %1740 = vmatprep.subr.bf16.mxu0 0
        %1741 = vmatpush1.bf16.xpose.msra.mxu0 0
        %1742 = vmatprep.subr.bf16.mxu0 0
        %1743 = vmatpush1.bf16.xpose.msra.mxu0 0
        %1744 = vmatprep.subr.bf16.mxu0 0
        %1745 = vmatpush1.bf16.xpose.msra.mxu0 0
        %1746 = vmatprep.subr.bf16.mxu0 0
        %1747 = vmatpush1.bf16.xpose.msra.mxu0 0
        %1748 = vmatprep.subr.bf16.mxu0 0
        %1749 = vmatpush1.bf16.xpose.msra.mxu0 0
        %1750 = vmatprep.subr.bf16.mxu0 0
        %1751 = vmatpush1.bf16.xpose.msra.mxu0 0
        %1752 = vmatprep.subr.bf16.mxu0 0
        %1753 = vmatpush1.bf16.xpose.msra.mxu0 0
        %1754 = vmatprep.subr.bf16.mxu0 0
        %1755 = vmatpush1.bf16.xpose.msra.mxu0 0
        %1756 = vmatprep.subr.bf16.mxu0 0
        %1757 = vmatpush1.bf16.xpose.msra.mxu0 0
        %1758 = vmatprep.subr.bf16.mxu0 0
        %1759 = vmatpush1.bf16.xpose.msra.mxu0 0
        %1760 = vmatprep.mubr.bf16.mxu0 0
        %1761 = vmatmul.mubr.bf16.gmra.mrb[0].mxu0 %v1717
        %v1762 = vpop.f32.mrb[0].mxu0
        %v1763 = vadd.f32 0.0, %v1762
        %v1764 = vpop.f32.mrb[0].mxu0
        %v1765 = vpop.f32.mrb[0].mxu0
        %v1766 = vadd.f32 0.0, %v1765
        %v1767 = vpop.f32.mrb[0].mxu0
        %1768 = vmatprep.mubr.bf16.mxu0 0
        %1769 = vmatmul.mubr.bf16.gmra.mrb[0].mxu0 %v1720
        %v1770 = vpop.f32.mrb[0].mxu0
        %v1771 = vadd.f32 0.0, %v1770
        %v1772 = vpop.f32.mrb[0].mxu0
        %v1773 = vpop.f32.mrb[0].mxu0
        %v1774 = vpop.f32.mrb[0].mxu0
        %1775 = vdwg.mxu0
        %v1776 = vmul.f32 %v1763, 0.125
        %v1777 = vmul.f32 %v1766, 0.125
        %v1778 = vmul.f32 %v1771, 0.125
        %v1779 = vsel %vm1084, %v1776, -inf
        %1780 = vmax.xlane.f32.xlu0 %v1779
        %v1781 = vpop.xlane.xlu0 %1780
        %v1782 = vsel %vm1084, %v1777, -inf
        %1783 = vmax.xlane.f32.xlu0 %v1782
        %v1784 = vpop.xlane.xlu0 %1783
        %v1785 = vsel %vm1091, %v1778, -inf
        %1786 = vmax.xlane.f32.xlu0 %v1785
        %v1787 = vpop.xlane.xlu0 %1786
        %v1788 = vsub.f32 %v1776, %v1781
        %v1789 = vsub.f32 %v1777, %v1784
        %v1790 = vsub.f32 %v1778, %v1787
        %v1791 = vmul.f32 %v1788, 1.442695
        %v1792 = vpow.pop %v1791
        %v1793 = vmul.f32 %v1789, 1.442695
        %v1794 = vpow.pop %v1793
        %v1795 = vmul.f32 %v1790, 1.442695
        %v1796 = vpow.pop %v1795
        %v1797 = vsel %vm1084, %v1792, 0.0
        %1798 = vadd.xlane.f32.xlu0 %v1797
        %v1799 = vpop.xlane.xlu0 %1798
        %v1800 = vsel %vm1084, %v1794, 0.0
        %1801 = vadd.xlane.f32.xlu0 %v1800
        %v1802 = vpop.xlane.xlu0 %1801
        %v1803 = vsel %vm1091, %v1796, 0.0
        %1804 = vadd.xlane.f32.xlu0 %v1803
        %v1805 = vpop.xlane.xlu0 %1804
        %v1806 = vrcp.pop %v1799
        %v1807 = vrcp.pop %v1802
        %v1808 = vrcp.pop %v1805
        %v1809 = vmul.f32 %v1792, %v1806
        %v1810 = vmul.f32 %v1794, %v1807
        %v1811 = vmul.f32 %v1796, %v1808
        %v1812 = vpack.c.bf16 %v1810, %v1809
        %v1813 = vpack.c.bf16 %v1811, %v1811
        %1814 = vrot.lane.b32.xlu0 %v1012, 80
        %v1815 = vpop.permute.xlu0 %1814
        %1816 = vrot.lane.b32.xlu0 %v1013, 80
        %v1817 = vpop.permute.xlu0 %1816
        %v1820 = vsel %vm1084, %v1812, 0
        %v1823 = vsel %vm1084, %v1813, 0
        %v1826 = vand.u32 %v1817, %v1129
        %1828 = vmatprep.subr.bf16.mxu0 0
        %1829 = vmatpush1.bf16.msra.mxu0 %v1815
        %1830 = vmatprep.subr.bf16.mxu0 0
        %1831 = vmatpush1.bf16.msra.mxu0 %v1826
        %1832 = vmatprep.subr.bf16.mxu0 0
        %1833 = vmatpush1.bf16.msra.mxu0 0
        %1834 = vmatprep.subr.bf16.mxu0 0
        %1835 = vmatpush1.bf16.msra.mxu0 0
        %1836 = vmatprep.subr.bf16.mxu0 0
        %1837 = vmatpush1.bf16.msra.mxu0 0
        %1838 = vmatprep.subr.bf16.mxu0 0
        %1839 = vmatpush1.bf16.msra.mxu0 0
        %1840 = vmatprep.subr.bf16.mxu0 0
        %1841 = vmatpush1.bf16.msra.mxu0 0
        %1842 = vmatprep.subr.bf16.mxu0 0
        %1843 = vmatpush1.bf16.msra.mxu0 0
        %1844 = vmatprep.subr.bf16.mxu0 0
        %1845 = vmatpush1.bf16.msra.mxu0 0
        %1846 = vmatprep.subr.bf16.mxu0 0
        %1847 = vmatpush1.bf16.msra.mxu0 0
        %1848 = vmatprep.subr.bf16.mxu0 0
        %1849 = vmatpush1.bf16.msra.mxu0 0
        %1850 = vmatprep.subr.bf16.mxu0 0
        %1851 = vmatpush1.bf16.msra.mxu0 0
        %1852 = vmatprep.subr.bf16.mxu0 0
        %1853 = vmatpush1.bf16.msra.mxu0 0
        %1854 = vmatprep.subr.bf16.mxu0 0
        %1855 = vmatpush1.bf16.msra.mxu0 0
        %1856 = vmatprep.subr.bf16.mxu0 0
        %1857 = vmatpush1.bf16.msra.mxu0 0
        %1858 = vmatprep.subr.bf16.mxu0 0
        %1859 = vmatpush1.bf16.msra.mxu0 0
        %1860 = vmatprep.mubr.bf16.mxu0 0
        %1861 = vmatmul.mubr.bf16.gmra.mrb[0].mxu0 %v1820
        %v1862 = vpop.f32.mrb[0].mxu0
        %v1863 = vadd.f32 0.0, %v1862
        %v1864 = vpop.f32.mrb[0].mxu0
        %v1865 = vpop.f32.mrb[0].mxu0
        %v1866 = vadd.f32 0.0, %v1865
        %v1867 = vpop.f32.mrb[0].mxu0
        %1868 = vmatprep.mubr.bf16.mxu0 0
        %1869 = vmatmul.mubr.bf16.gmra.mrb[0].mxu0 %v1823
        %v1870 = vpop.f32.mrb[0].mxu0
        %v1871 = vadd.f32 0.0, %v1870
        %v1872 = vpop.f32.mrb[0].mxu0
        %v1873 = vpop.f32.mrb[0].mxu0
        %v1874 = vpop.f32.mrb[0].mxu0
        %1875 = vdwg.mxu0
        %v1876 = vpack.c.bf16 %v1866, %v1863
        %v1877 = vpack.c.bf16 %v1871, %v1871
        %v1880 = vunpack.c.l.b16 %v1008
        %v1881 = vunpack.c.l.b16 %v1009
        %v1882 = vpack.c.b16 %v1881, %v1880
        %v1885 = vsel %vm1020, %v1876, 0
        %v1888 = vsel %vm1020, %v1877, 0
        %1890 = vmatprep.subr.bf16.mxu0 0
        %1891 = vmatpush1.bf16.msra.mxu0 %v1882
        %1892 = vmatprep.subr.bf16.mxu0 0
        %1893 = vmatpush1.bf16.msra.mxu0 0
        %1894 = vmatprep.subr.bf16.mxu0 0
        %1895 = vmatpush1.bf16.msra.mxu0 0
        %1896 = vmatprep.subr.bf16.mxu0 0
        %1897 = vmatpush1.bf16.msra.mxu0 0
        %1898 = vmatprep.subr.bf16.mxu0 0
        %1899 = vmatpush1.bf16.msra.mxu0 0
        %1900 = vmatprep.subr.bf16.mxu0 0
        %1901 = vmatpush1.bf16.msra.mxu0 0
        %1902 = vmatprep.subr.bf16.mxu0 0
        %1903 = vmatpush1.bf16.msra.mxu0 0
        %1904 = vmatprep.subr.bf16.mxu0 0
        %1905 = vmatpush1.bf16.msra.mxu0 0
        %1906 = vmatprep.subr.bf16.mxu0 0
        %1907 = vmatpush1.bf16.msra.mxu0 0
        %1908 = vmatprep.subr.bf16.mxu0 0
        %1909 = vmatpush1.bf16.msra.mxu0 0
        %1910 = vmatprep.subr.bf16.mxu0 0
        %1911 = vmatpush1.bf16.msra.mxu0 0
        %1912 = vmatprep.subr.bf16.mxu0 0
        %1913 = vmatpush1.bf16.msra.mxu0 0
        %1914 = vmatprep.subr.bf16.mxu0 0
        %1915 = vmatpush1.bf16.msra.mxu0 0
        %1916 = vmatprep.subr.bf16.mxu0 0
        %1917 = vmatpush1.bf16.msra.mxu0 0
        %1918 = vmatprep.subr.bf16.mxu0 0
        %1919 = vmatpush1.bf16.msra.mxu0 0
        %1920 = vmatprep.subr.bf16.mxu0 0
        %1921 = vmatpush1.bf16.msra.mxu0 0
        %1922 = vmatprep.mubr.bf16.mxu0 0
        %1923 = vmatmul.mubr.bf16.gmra.mrb[0].mxu0 %v1885
        %v1924 = vpop.f32.mrb[0].mxu0
        %v1925 = vadd.f32 0.0, %v1924
        %v1926 = vpop.f32.mrb[0].mxu0
        %v1927 = vpop.f32.mrb[0].mxu0
        %v1928 = vadd.f32 0.0, %v1927
        %v1929 = vpop.f32.mrb[0].mxu0
        %1930 = vmatprep.mubr.bf16.mxu0 0
        %1931 = vmatmul.mubr.bf16.gmra.mrb[0].mxu0 %v1888
        %v1932 = vpop.f32.mrb[0].mxu0
        %v1933 = vadd.f32 0.0, %v1932
        %v1934 = vpop.f32.mrb[0].mxu0
        %v1935 = vpop.f32.mrb[0].mxu0
        %v1936 = vpop.f32.mrb[0].mxu0
        %1937 = vdwg.mxu0
        %v1938 = vadd.f32 %v1705, %v1925
        %v1939 = vadd.f32 %v1706, %v1928
        %v1940 = vadd.f32 %v1707, %v1933
        %v1941 = vadd.f32 %v784, %v1938
        %v1942 = vadd.f32 %v785, %v1939
        %v1943 = vadd.f32 %v786, %v1940
        %v1944 = vld [vmem:[%s645] sm:$0x1]
        %v1946 = vlaneseq
        %v1947 = vshrl.u32 %v1946, 7
        %v1948 = vsub.s32 0, %v1947
        %v1949 = vrot.slane %v1944, %v1948
        %v1951 = vadd.f32 %v1941, %v1949
        %v1952 = vadd.f32 %v1942, %v1949
        %v1953 = vadd.f32 %v1943, %v1949
        %1954 = vst.msk [vmem:[#allocation2] sm:$0xff] %vm791, %v1951
        %1955 = vst.msk [vmem:[#allocation2 + $0x8] sm:$0xff] %vm791, %v1952
        %vm1956 = vcmask 516096
        %1957 = vst.msk [vmem:[#allocation2 + $0x10] sm:$0x1] %vm1956, %v1953
        %v1958 = vpack.c.bf16 %v990, %v986
        %v1959 = vpack.c.bf16 %v996, %v996
        %v1960 = vpack.c.bf16 %v992, %v988
        %v1961 = vpack.c.bf16 %v998, %v998
        %vm1962 = vsmask.f32 7424
        %v1964 = vshrl.u32 %v1958, 16
        %v1966 = vshll.u32 %v1958, 16
        %v1968 = vrot.slane %v1966, 1
        %v1969 = vor.u32 %v1964, %v1968
        %v1971 = vshll.u32 %v1959, 16
        %v1973 = vrot.slane %v1971, 1
        %v1974 = vsel %vm1962, %v1969, %v1973
        %v1975 = vshrl.u32 %v1959, 16
        %1977 = vrot.lane.b32.xlu0 %v1974, 64
        %v1978 = vpop.permute.xlu0 %1977
        %1979 = vrot.lane.b32.xlu0 %v1975, 64
        %v1980 = vpop.permute.xlu0 %1979
        %v1982 = vsel %vm1020, %v1974, 0
        %v1985 = vsel %vm1020, %v1975, 0
        %v1988 = vsel %vm1020, %v1978, 0
        %v1991 = vsel %vm1020, %v1980, 0
        %1993 = vmatprep.subr.bf16.mxu0 0
        %1994 = vmatpush1.bf16.xpose.msra.mxu0 %v1988
        %1995 = vmatprep.subr.bf16.mxu0 0
        %1996 = vmatpush1.bf16.xpose.msra.mxu0 %v1991
        %1997 = vmatprep.subr.bf16.mxu0 0
        %1998 = vmatpush1.bf16.xpose.msra.mxu0 0
        %1999 = vmatprep.subr.bf16.mxu0 0
        %2000 = vmatpush1.bf16.xpose.msra.mxu0 0
        %2001 = vmatprep.subr.bf16.mxu0 0
        %2002 = vmatpush1.bf16.xpose.msra.mxu0 0
        %2003 = vmatprep.subr.bf16.mxu0 0
        %2004 = vmatpush1.bf16.xpose.msra.mxu0 0
        %2005 = vmatprep.subr.bf16.mxu0 0
        %2006 = vmatpush1.bf16.xpose.msra.mxu0 0
        %2007 = vmatprep.subr.bf16.mxu0 0
        %2008 = vmatpush1.bf16.xpose.msra.mxu0 0
        %2009 = vmatprep.subr.bf16.mxu0 0
        %2010 = vmatpush1.bf16.xpose.msra.mxu0 0
        %2011 = vmatprep.subr.bf16.mxu0 0
        %2012 = vmatpush1.bf16.xpose.msra.mxu0 0
        %2013 = vmatprep.subr.bf16.mxu0 0
        %2014 = vmatpush1.bf16.xpose.msra.mxu0 0
        %2015 = vmatprep.subr.bf16.mxu0 0
        %2016 = vmatpush1.bf16.xpose.msra.mxu0 0
        %2017 = vmatprep.subr.bf16.mxu0 0
        %2018 = vmatpush1.bf16.xpose.msra.mxu0 0
        %2019 = vmatprep.subr.bf16.mxu0 0
        %2020 = vmatpush1.bf16.xpose.msra.mxu0 0
        %2021 = vmatprep.subr.bf16.mxu0 0
        %2022 = vmatpush1.bf16.xpose.msra.mxu0 0
        %2023 = vmatprep.subr.bf16.mxu0 0
        %2024 = vmatpush1.bf16.xpose.msra.mxu0 0
        %2025 = vmatprep.mubr.bf16.mxu0 0
        %2026 = vmatmul.mubr.bf16.gmra.mrb[0].mxu0 %v1982
        %v2027 = vpop.f32.mrb[0].mxu0
        %v2028 = vadd.f32 0.0, %v2027
        %v2029 = vpop.f32.mrb[0].mxu0
        %v2030 = vpop.f32.mrb[0].mxu0
        %v2031 = vadd.f32 0.0, %v2030
        %v2032 = vpop.f32.mrb[0].mxu0
        %2033 = vmatprep.mubr.bf16.mxu0 0
        %2034 = vmatmul.mubr.bf16.gmra.mrb[0].mxu0 %v1985
        %v2035 = vpop.f32.mrb[0].mxu0
        %v2036 = vadd.f32 0.0, %v2035
        %v2037 = vpop.f32.mrb[0].mxu0
        %v2038 = vpop.f32.mrb[0].mxu0
        %v2039 = vpop.f32.mrb[0].mxu0
        %2040 = vdwg.mxu0
        %v2041 = vmul.f32 %v2028, 0.125
        %v2042 = vmul.f32 %v2031, 0.125
        %v2043 = vmul.f32 %v2036, 0.125
        %v2044 = vsel %vm1084, %v2041, -inf
        %2045 = vmax.xlane.f32.xlu0 %v2044
        %v2046 = vpop.xlane.xlu0 %2045
        %v2047 = vsel %vm1084, %v2042, -inf
        %2048 = vmax.xlane.f32.xlu0 %v2047
        %v2049 = vpop.xlane.xlu0 %2048
        %v2050 = vsel %vm1091, %v2043, -inf
        %2051 = vmax.xlane.f32.xlu0 %v2050
        %v2052 = vpop.xlane.xlu0 %2051
        %v2053 = vsub.f32 %v2041, %v2046
        %v2054 = vsub.f32 %v2042, %v2049
        %v2055 = vsub.f32 %v2043, %v2052
        %v2056 = vmul.f32 %v2053, 1.442695
        %v2057 = vpow.pop %v2056
        %v2058 = vmul.f32 %v2054, 1.442695
        %v2059 = vpow.pop %v2058
        %v2060 = vmul.f32 %v2055, 1.442695
        %v2061 = vpow.pop %v2060
        %v2062 = vsel %vm1084, %v2057, 0.0
        %2063 = vadd.xlane.f32.xlu0 %v2062
        %v2064 = vpop.xlane.xlu0 %2063
        %v2065 = vsel %vm1084, %v2059, 0.0
        %2066 = vadd.xlane.f32.xlu0 %v2065
        %v2067 = vpop.xlane.xlu0 %2066
        %v2068 = vsel %vm1091, %v2061, 0.0
        %2069 = vadd.xlane.f32.xlu0 %v2068
        %v2070 = vpop.xlane.xlu0 %2069
        %v2071 = vrcp.pop %v2064
        %v2072 = vrcp.pop %v2067
        %v2073 = vrcp.pop %v2070
        %v2074 = vmul.f32 %v2057, %v2071
        %v2075 = vmul.f32 %v2059, %v2072
        %v2076 = vmul.f32 %v2061, %v2073
        %v2077 = vpack.c.bf16 %v2075, %v2074
        %v2078 = vpack.c.bf16 %v2076, %v2076
        %v2080 = vshrl.u32 %v1960, 16
        %v2082 = vshll.u32 %v1960, 16
        %v2084 = vrot.slane %v2082, 1
        %v2085 = vor.u32 %v2080, %v2084
        %v2087 = vshll.u32 %v1961, 16
        %v2089 = vrot.slane %v2087, 1
        %v2090 = vsel %vm1962, %v2085, %v2089
        %v2091 = vshrl.u32 %v1961, 16
        %v2095 = vsel %vm1084, %v2077, 0
        %v2098 = vsel %vm1084, %v2078, 0
        %v2101 = vand.u32 %v2091, %v1129
        %2103 = vmatprep.subr.bf16.mxu0 0
        %2104 = vmatpush1.bf16.msra.mxu0 %v2090
        %2105 = vmatprep.subr.bf16.mxu0 0
        %2106 = vmatpush1.bf16.msra.mxu0 %v2101
        %2107 = vmatprep.subr.bf16.mxu0 0
        %2108 = vmatpush1.bf16.msra.mxu0 0
        %2109 = vmatprep.subr.bf16.mxu0 0
        %2110 = vmatpush1.bf16.msra.mxu0 0
        %2111 = vmatprep.subr.bf16.mxu0 0
        %2112 = vmatpush1.bf16.msra.mxu0 0
        %2113 = vmatprep.subr.bf16.mxu0 0
        %2114 = vmatpush1.bf16.msra.mxu0 0
        %2115 = vmatprep.subr.bf16.mxu0 0
        %2116 = vmatpush1.bf16.msra.mxu0 0
        %2117 = vmatprep.subr.bf16.mxu0 0
        %2118 = vmatpush1.bf16.msra.mxu0 0
        %2119 = vmatprep.subr.bf16.mxu0 0
        %2120 = vmatpush1.bf16.msra.mxu0 0
        %2121 = vmatprep.subr.bf16.mxu0 0
        %2122 = vmatpush1.bf16.msra.mxu0 0
        %2123 = vmatprep.subr.bf16.mxu0 0
        %2124 = vmatpush1.bf16.msra.mxu0 0
        %2125 = vmatprep.subr.bf16.mxu0 0
        %2126 = vmatpush1.bf16.msra.mxu0 0
        %2127 = vmatprep.subr.bf16.mxu0 0
        %2128 = vmatpush1.bf16.msra.mxu0 0
        %2129 = vmatprep.subr.bf16.mxu0 0
        %2130 = vmatpush1.bf16.msra.mxu0 0
        %2131 = vmatprep.subr.bf16.mxu0 0
        %2132 = vmatpush1.bf16.msra.mxu0 0
        %2133 = vmatprep.subr.bf16.mxu0 0
        %2134 = vmatpush1.bf16.msra.mxu0 0
        %2135 = vmatprep.mubr.bf16.mxu0 0
        %2136 = vmatmul.mubr.bf16.gmra.mrb[0].mxu0 %v2095
        %v2137 = vpop.f32.mrb[0].mxu0
        %v2138 = vadd.f32 0.0, %v2137
        %v2139 = vpop.f32.mrb[0].mxu0
        %v2140 = vpop.f32.mrb[0].mxu0
        %v2141 = vadd.f32 0.0, %v2140
        %v2142 = vpop.f32.mrb[0].mxu0
        %2143 = vmatprep.mubr.bf16.mxu0 0
        %2144 = vmatmul.mubr.bf16.gmra.mrb[0].mxu0 %v2098
        %v2145 = vpop.f32.mrb[0].mxu0
        %v2146 = vadd.f32 0.0, %v2145
        %v2147 = vpop.f32.mrb[0].mxu0
        %v2148 = vpop.f32.mrb[0].mxu0
        %v2149 = vpop.f32.mrb[0].mxu0
        %2150 = vdwg.mxu0
        %v2151 = vpack.c.bf16 %v2141, %v2138
        %v2152 = vpack.c.bf16 %v2146, %v2146
        %2153 = vrot.lane.b32.xlu0 %v1974, 112
        %v2154 = vpop.permute.xlu0 %2153
        %2155 = vrot.lane.b32.xlu0 %v1975, 112
        %v2156 = vpop.permute.xlu0 %2155
        %2157 = vrot.lane.b32.xlu0 %v1974, 48
        %v2158 = vpop.permute.xlu0 %2157
        %2159 = vrot.lane.b32.xlu0 %v1975, 48
        %v2160 = vpop.permute.xlu0 %2159
        %v2162 = vsel %vm1020, %v2154, 0
        %v2165 = vsel %vm1020, %v2156, 0
        %v2168 = vsel %vm1020, %v2158, 0
        %v2171 = vsel %vm1020, %v2160, 0
        %2173 = vmatprep.subr.bf16.mxu0 0
        %2174 = vmatpush1.bf16.xpose.msra.mxu0 %v2168
        %2175 = vmatprep.subr.bf16.mxu0 0
        %2176 = vmatpush1.bf16.xpose.msra.mxu0 %v2171
        %2177 = vmatprep.subr.bf16.mxu0 0
        %2178 = vmatpush1.bf16.xpose.msra.mxu0 0
        %2179 = vmatprep.subr.bf16.mxu0 0
        %2180 = vmatpush1.bf16.xpose.msra.mxu0 0
        %2181 = vmatprep.subr.bf16.mxu0 0
        %2182 = vmatpush1.bf16.xpose.msra.mxu0 0
        %2183 = vmatprep.subr.bf16.mxu0 0
        %2184 = vmatpush1.bf16.xpose.msra.mxu0 0
        %2185 = vmatprep.subr.bf16.mxu0 0
        %2186 = vmatpush1.bf16.xpose.msra.mxu0 0
        %2187 = vmatprep.subr.bf16.mxu0 0
        %2188 = vmatpush1.bf16.xpose.msra.mxu0 0
        %2189 = vmatprep.subr.bf16.mxu0 0
        %2190 = vmatpush1.bf16.xpose.msra.mxu0 0
        %2191 = vmatprep.subr.bf16.mxu0 0
        %2192 = vmatpush1.bf16.xpose.msra.mxu0 0
        %2193 = vmatprep.subr.bf16.mxu0 0
        %2194 = vmatpush1.bf16.xpose.msra.mxu0 0
        %2195 = vmatprep.subr.bf16.mxu0 0
        %2196 = vmatpush1.bf16.xpose.msra.mxu0 0
        %2197 = vmatprep.subr.bf16.mxu0 0
        %2198 = vmatpush1.bf16.xpose.msra.mxu0 0
        %2199 = vmatprep.subr.bf16.mxu0 0
        %2200 = vmatpush1.bf16.xpose.msra.mxu0 0
        %2201 = vmatprep.subr.bf16.mxu0 0
        %2202 = vmatpush1.bf16.xpose.msra.mxu0 0
        %2203 = vmatprep.subr.bf16.mxu0 0
        %2204 = vmatpush1.bf16.xpose.msra.mxu0 0
        %2205 = vmatprep.mubr.bf16.mxu0 0
        %2206 = vmatmul.mubr.bf16.gmra.mrb[0].mxu0 %v2162
        %v2207 = vpop.f32.mrb[0].mxu0
        %v2208 = vadd.f32 0.0, %v2207
        %v2209 = vpop.f32.mrb[0].mxu0
        %v2210 = vpop.f32.mrb[0].mxu0
        %v2211 = vadd.f32 0.0, %v2210
        %v2212 = vpop.f32.mrb[0].mxu0
        %2213 = vmatprep.mubr.bf16.mxu0 0
        %2214 = vmatmul.mubr.bf16.gmra.mrb[0].mxu0 %v2165
        %v2215 = vpop.f32.mrb[0].mxu0
        %v2216 = vadd.f32 0.0, %v2215
        %v2217 = vpop.f32.mrb[0].mxu0
        %v2218 = vpop.f32.mrb[0].mxu0
        %v2219 = vpop.f32.mrb[0].mxu0
        %2220 = vdwg.mxu0
        %v2221 = vmul.f32 %v2208, 0.125
        %v2222 = vmul.f32 %v2211, 0.125
        %v2223 = vmul.f32 %v2216, 0.125
        %v2224 = vsel %vm1084, %v2221, -inf
        %2225 = vmax.xlane.f32.xlu0 %v2224
        %v2226 = vpop.xlane.xlu0 %2225
        %v2227 = vsel %vm1084, %v2222, -inf
        %2228 = vmax.xlane.f32.xlu0 %v2227
        %v2229 = vpop.xlane.xlu0 %2228
        %v2230 = vsel %vm1091, %v2223, -inf
        %2231 = vmax.xlane.f32.xlu0 %v2230
        %v2232 = vpop.xlane.xlu0 %2231
        %v2233 = vsub.f32 %v2221, %v2226
        %v2234 = vsub.f32 %v2222, %v2229
        %v2235 = vsub.f32 %v2223, %v2232
        %v2236 = vmul.f32 %v2233, 1.442695
        %v2237 = vpow.pop %v2236
        %v2238 = vmul.f32 %v2234, 1.442695
        %v2239 = vpow.pop %v2238
        %v2240 = vmul.f32 %v2235, 1.442695
        %v2241 = vpow.pop %v2240
        %v2242 = vsel %vm1084, %v2237, 0.0
        %2243 = vadd.xlane.f32.xlu0 %v2242
        %v2244 = vpop.xlane.xlu0 %2243
        %v2245 = vsel %vm1084, %v2239, 0.0
        %2246 = vadd.xlane.f32.xlu0 %v2245
        %v2247 = vpop.xlane.xlu0 %2246
        %v2248 = vsel %vm1091, %v2241, 0.0
        %2249 = vadd.xlane.f32.xlu0 %v2248
        %v2250 = vpop.xlane.xlu0 %2249
        %v2251 = vrcp.pop %v2244
        %v2252 = vrcp.pop %v2247
        %v2253 = vrcp.pop %v2250
        %v2254 = vmul.f32 %v2237, %v2251
        %v2255 = vmul.f32 %v2239, %v2252
        %v2256 = vmul.f32 %v2241, %v2253
        %v2257 = vpack.c.bf16 %v2255, %v2254
        %v2258 = vpack.c.bf16 %v2256, %v2256
        %2259 = vrot.lane.b32.xlu0 %v2090, 112
        %v2260 = vpop.permute.xlu0 %2259
        %2261 = vrot.lane.b32.xlu0 %v2091, 112
        %v2262 = vpop.permute.xlu0 %2261
        %v2265 = vsel %vm1084, %v2257, 0
        %v2268 = vsel %vm1084, %v2258, 0
        %v2271 = vand.u32 %v2262, %v1129
        %2273 = vmatprep.subr.bf16.mxu0 0
        %2274 = vmatpush1.bf16.msra.mxu0 %v2260
        %2275 = vmatprep.subr.bf16.mxu0 0
        %2276 = vmatpush1.bf16.msra.mxu0 %v2271
        %2277 = vmatprep.subr.bf16.mxu0 0
        %2278 = vmatpush1.bf16.msra.mxu0 0
        %2279 = vmatprep.subr.bf16.mxu0 0
        %2280 = vmatpush1.bf16.msra.mxu0 0
        %2281 = vmatprep.subr.bf16.mxu0 0
        %2282 = vmatpush1.bf16.msra.mxu0 0
        %2283 = vmatprep.subr.bf16.mxu0 0
        %2284 = vmatpush1.bf16.msra.mxu0 0
        %2285 = vmatprep.subr.bf16.mxu0 0
        %2286 = vmatpush1.bf16.msra.mxu0 0
        %2287 = vmatprep.subr.bf16.mxu0 0
        %2288 = vmatpush1.bf16.msra.mxu0 0
        %2289 = vmatprep.subr.bf16.mxu0 0
        %2290 = vmatpush1.bf16.msra.mxu0 0
        %2291 = vmatprep.subr.bf16.mxu0 0
        %2292 = vmatpush1.bf16.msra.mxu0 0
        %2293 = vmatprep.subr.bf16.mxu0 0
        %2294 = vmatpush1.bf16.msra.mxu0 0
        %2295 = vmatprep.subr.bf16.mxu0 0
        %2296 = vmatpush1.bf16.msra.mxu0 0
        %2297 = vmatprep.subr.bf16.mxu0 0
        %2298 = vmatpush1.bf16.msra.mxu0 0
        %2299 = vmatprep.subr.bf16.mxu0 0
        %2300 = vmatpush1.bf16.msra.mxu0 0
        %2301 = vmatprep.subr.bf16.mxu0 0
        %2302 = vmatpush1.bf16.msra.mxu0 0
        %2303 = vmatprep.subr.bf16.mxu0 0
        %2304 = vmatpush1.bf16.msra.mxu0 0
        %2305 = vmatprep.mubr.bf16.mxu0 0
        %2306 = vmatmul.mubr.bf16.gmra.mrb[0].mxu0 %v2265
        %v2307 = vpop.f32.mrb[0].mxu0
        %v2308 = vadd.f32 0.0, %v2307
        %v2309 = vpop.f32.mrb[0].mxu0
        %v2310 = vpop.f32.mrb[0].mxu0
        %v2311 = vadd.f32 0.0, %v2310
        %v2312 = vpop.f32.mrb[0].mxu0
        %2313 = vmatprep.mubr.bf16.mxu0 0
        %2314 = vmatmul.mubr.bf16.gmra.mrb[0].mxu0 %v2268
        %v2315 = vpop.f32.mrb[0].mxu0
        %v2316 = vadd.f32 0.0, %v2315
        %v2317 = vpop.f32.mrb[0].mxu0
        %v2318 = vpop.f32.mrb[0].mxu0
        %v2319 = vpop.f32.mrb[0].mxu0
        %2320 = vdwg.mxu0
        %v2321 = vpack.c.bf16 %v2311, %v2308
        %v2322 = vpack.c.bf16 %v2316, %v2316
        %v2324 = vsel %vm1020, %v2321, 0
        %v2327 = vsel %vm1020, %v2322, 0
        %2329 = vmatprep.subr.bf16.mxu0 0
        %2330 = vmatpush1.bf16.msra.mxu0 %v1359
        %2331 = vmatprep.subr.bf16.mxu0 0
        %2332 = vmatpush1.bf16.msra.mxu0 0
        %2333 = vmatprep.subr.bf16.mxu0 0
        %2334 = vmatpush1.bf16.msra.mxu0 0
        %2335 = vmatprep.subr.bf16.mxu0 0
        %2336 = vmatpush1.bf16.msra.mxu0 0
        %2337 = vmatprep.subr.bf16.mxu0 0
        %2338 = vmatpush1.bf16.msra.mxu0 0
        %2339 = vmatprep.subr.bf16.mxu0 0
        %2340 = vmatpush1.bf16.msra.mxu0 0
        %2341 = vmatprep.subr.bf16.mxu0 0
        %2342 = vmatpush1.bf16.msra.mxu0 0
        %2343 = vmatprep.subr.bf16.mxu0 0
        %2344 = vmatpush1.bf16.msra.mxu0 0
        %2345 = vmatprep.subr.bf16.mxu0 0
        %2346 = vmatpush1.bf16.msra.mxu0 0
        %2347 = vmatprep.subr.bf16.mxu0 0
        %2348 = vmatpush1.bf16.msra.mxu0 0
        %2349 = vmatprep.subr.bf16.mxu0 0
        %2350 = vmatpush1.bf16.msra.mxu0 0
        %2351 = vmatprep.subr.bf16.mxu0 0
        %2352 = vmatpush1.bf16.msra.mxu0 0
        %2353 = vmatprep.subr.bf16.mxu0 0
        %2354 = vmatpush1.bf16.msra.mxu0 0
        %2355 = vmatprep.subr.bf16.mxu0 0
        %2356 = vmatpush1.bf16.msra.mxu0 0
        %2357 = vmatprep.subr.bf16.mxu0 0
        %2358 = vmatpush1.bf16.msra.mxu0 0
        %2359 = vmatprep.subr.bf16.mxu0 0
        %2360 = vmatpush1.bf16.msra.mxu0 0
        %2361 = vmatprep.mubr.bf16.mxu0 0
        %2362 = vmatmul.mubr.bf16.gmra.mrb[0].mxu0 %v2324
        %v2363 = vpop.f32.mrb[0].mxu0
        %v2364 = vadd.f32 0.0, %v2363
        %v2365 = vpop.f32.mrb[0].mxu0
        %v2366 = vpop.f32.mrb[0].mxu0
        %v2367 = vadd.f32 0.0, %v2366
        %v2368 = vpop.f32.mrb[0].mxu0
        %2369 = vmatprep.mubr.bf16.mxu0 0
        %2370 = vmatmul.mubr.bf16.gmra.mrb[0].mxu0 %v2327
        %v2371 = vpop.f32.mrb[0].mxu0
        %v2372 = vadd.f32 0.0, %v2371
        %v2373 = vpop.f32.mrb[0].mxu0
        %v2374 = vpop.f32.mrb[0].mxu0
        %v2375 = vpop.f32.mrb[0].mxu0
        %2376 = vdwg.mxu0
        %v2378 = vsel %vm1020, %v2151, 0
        %v2381 = vsel %vm1020, %v2152, 0
        %2383 = vmatprep.subr.bf16.mxu0 0
        %2384 = vmatpush1.bf16.msra.mxu0 %v1419
        %2385 = vmatprep.subr.bf16.mxu0 0
        %2386 = vmatpush1.bf16.msra.mxu0 0
        %2387 = vmatprep.subr.bf16.mxu0 0
        %2388 = vmatpush1.bf16.msra.mxu0 0
        %2389 = vmatprep.subr.bf16.mxu0 0
        %2390 = vmatpush1.bf16.msra.mxu0 0
        %2391 = vmatprep.subr.bf16.mxu0 0
        %2392 = vmatpush1.bf16.msra.mxu0 0
        %2393 = vmatprep.subr.bf16.mxu0 0
        %2394 = vmatpush1.bf16.msra.mxu0 0
        %2395 = vmatprep.subr.bf16.mxu0 0
        %2396 = vmatpush1.bf16.msra.mxu0 0
        %2397 = vmatprep.subr.bf16.mxu0 0
        %2398 = vmatpush1.bf16.msra.mxu0 0
        %2399 = vmatprep.subr.bf16.mxu0 0
        %2400 = vmatpush1.bf16.msra.mxu0 0
        %2401 = vmatprep.subr.bf16.mxu0 0
        %2402 = vmatpush1.bf16.msra.mxu0 0
        %2403 = vmatprep.subr.bf16.mxu0 0
        %2404 = vmatpush1.bf16.msra.mxu0 0
        %2405 = vmatprep.subr.bf16.mxu0 0
        %2406 = vmatpush1.bf16.msra.mxu0 0
        %2407 = vmatprep.subr.bf16.mxu0 0
        %2408 = vmatpush1.bf16.msra.mxu0 0
        %2409 = vmatprep.subr.bf16.mxu0 0
        %2410 = vmatpush1.bf16.msra.mxu0 0
        %2411 = vmatprep.subr.bf16.mxu0 0
        %2412 = vmatpush1.bf16.msra.mxu0 0
        %2413 = vmatprep.subr.bf16.mxu0 0
        %2414 = vmatpush1.bf16.msra.mxu0 0
        %2415 = vmatprep.mubr.bf16.mxu0 0
        %2416 = vmatmul.mubr.bf16.gmra.mrb[0].mxu0 %v2378
        %v2417 = vpop.f32.mrb[0].mxu0
        %v2418 = vadd.f32 %v2364, %v2417
        %v2419 = vpop.f32.mrb[0].mxu0
        %v2420 = vpop.f32.mrb[0].mxu0
        %v2421 = vadd.f32 %v2367, %v2420
        %v2422 = vpop.f32.mrb[0].mxu0
        %2423 = vmatprep.mubr.bf16.mxu0 0
        %2424 = vmatmul.mubr.bf16.gmra.mrb[0].mxu0 %v2381
        %v2425 = vpop.f32.mrb[0].mxu0
        %v2426 = vadd.f32 %v2372, %v2425
        %v2427 = vpop.f32.mrb[0].mxu0
        %v2428 = vpop.f32.mrb[0].mxu0
        %v2429 = vpop.f32.mrb[0].mxu0
        %2430 = vdwg.mxu0
        %2431 = vrot.lane.b32.xlu0 %v1974, 96
        %v2432 = vpop.permute.xlu0 %2431
        %2433 = vrot.lane.b32.xlu0 %v1975, 96
        %v2434 = vpop.permute.xlu0 %2433
        %2435 = vrot.lane.b32.xlu0 %v1974, 32
        %v2436 = vpop.permute.xlu0 %2435
        %2437 = vrot.lane.b32.xlu0 %v1975, 32
        %v2438 = vpop.permute.xlu0 %2437
        %v2440 = vsel %vm1020, %v2432, 0
        %v2443 = vsel %vm1020, %v2434, 0
        %v2446 = vsel %vm1020, %v2436, 0
        %v2449 = vsel %vm1020, %v2438, 0
        %2451 = vmatprep.subr.bf16.mxu0 0
        %2452 = vmatpush1.bf16.xpose.msra.mxu0 %v2446
        %2453 = vmatprep.subr.bf16.mxu0 0
        %2454 = vmatpush1.bf16.xpose.msra.mxu0 %v2449
        %2455 = vmatprep.subr.bf16.mxu0 0
        %2456 = vmatpush1.bf16.xpose.msra.mxu0 0
        %2457 = vmatprep.subr.bf16.mxu0 0
        %2458 = vmatpush1.bf16.xpose.msra.mxu0 0
        %2459 = vmatprep.subr.bf16.mxu0 0
        %2460 = vmatpush1.bf16.xpose.msra.mxu0 0
        %2461 = vmatprep.subr.bf16.mxu0 0
        %2462 = vmatpush1.bf16.xpose.msra.mxu0 0
        %2463 = vmatprep.subr.bf16.mxu0 0
        %2464 = vmatpush1.bf16.xpose.msra.mxu0 0
        %2465 = vmatprep.subr.bf16.mxu0 0
        %2466 = vmatpush1.bf16.xpose.msra.mxu0 0
        %2467 = vmatprep.subr.bf16.mxu0 0
        %2468 = vmatpush1.bf16.xpose.msra.mxu0 0
        %2469 = vmatprep.subr.bf16.mxu0 0
        %2470 = vmatpush1.bf16.xpose.msra.mxu0 0
        %2471 = vmatprep.subr.bf16.mxu0 0
        %2472 = vmatpush1.bf16.xpose.msra.mxu0 0
        %2473 = vmatprep.subr.bf16.mxu0 0
        %2474 = vmatpush1.bf16.xpose.msra.mxu0 0
        %2475 = vmatprep.subr.bf16.mxu0 0
        %2476 = vmatpush1.bf16.xpose.msra.mxu0 0
        %2477 = vmatprep.subr.bf16.mxu0 0
        %2478 = vmatpush1.bf16.xpose.msra.mxu0 0
        %2479 = vmatprep.subr.bf16.mxu0 0
        %2480 = vmatpush1.bf16.xpose.msra.mxu0 0
        %2481 = vmatprep.subr.bf16.mxu0 0
        %2482 = vmatpush1.bf16.xpose.msra.mxu0 0
        %2483 = vmatprep.mubr.bf16.mxu0 0
        %2484 = vmatmul.mubr.bf16.gmra.mrb[0].mxu0 %v2440
        %v2485 = vpop.f32.mrb[0].mxu0
        %v2486 = vadd.f32 0.0, %v2485
        %v2487 = vpop.f32.mrb[0].mxu0
        %v2488 = vpop.f32.mrb[0].mxu0
        %v2489 = vadd.f32 0.0, %v2488
        %v2490 = vpop.f32.mrb[0].mxu0
        %2491 = vmatprep.mubr.bf16.mxu0 0
        %2492 = vmatmul.mubr.bf16.gmra.mrb[0].mxu0 %v2443
        %v2493 = vpop.f32.mrb[0].mxu0
        %v2494 = vadd.f32 0.0, %v2493
        %v2495 = vpop.f32.mrb[0].mxu0
        %v2496 = vpop.f32.mrb[0].mxu0
        %v2497 = vpop.f32.mrb[0].mxu0
        %2498 = vdwg.mxu0
        %v2499 = vmul.f32 %v2486, 0.125
        %v2500 = vmul.f32 %v2489, 0.125
        %v2501 = vmul.f32 %v2494, 0.125
        %v2502 = vsel %vm1084, %v2499, -inf
        %2503 = vmax.xlane.f32.xlu0 %v2502
        %v2504 = vpop.xlane.xlu0 %2503
        %v2505 = vsel %vm1084, %v2500, -inf
        %2506 = vmax.xlane.f32.xlu0 %v2505
        %v2507 = vpop.xlane.xlu0 %2506
        %v2508 = vsel %vm1091, %v2501, -inf
        %2509 = vmax.xlane.f32.xlu0 %v2508
        %v2510 = vpop.xlane.xlu0 %2509
        %v2511 = vsub.f32 %v2499, %v2504
        %v2512 = vsub.f32 %v2500, %v2507
        %v2513 = vsub.f32 %v2501, %v2510
        %v2514 = vmul.f32 %v2511, 1.442695
        %v2515 = vpow.pop %v2514
        %v2516 = vmul.f32 %v2512, 1.442695
        %v2517 = vpow.pop %v2516
        %v2518 = vmul.f32 %v2513, 1.442695
        %v2519 = vpow.pop %v2518
        %v2520 = vsel %vm1084, %v2515, 0.0
        %2521 = vadd.xlane.f32.xlu0 %v2520
        %v2522 = vpop.xlane.xlu0 %2521
        %v2523 = vsel %vm1084, %v2517, 0.0
        %2524 = vadd.xlane.f32.xlu0 %v2523
        %v2525 = vpop.xlane.xlu0 %2524
        %v2526 = vsel %vm1091, %v2519, 0.0
        %2527 = vadd.xlane.f32.xlu0 %v2526
        %v2528 = vpop.xlane.xlu0 %2527
        %v2529 = vrcp.pop %v2522
        %v2530 = vrcp.pop %v2525
        %v2531 = vrcp.pop %v2528
        %v2532 = vmul.f32 %v2515, %v2529
        %v2533 = vmul.f32 %v2517, %v2530
        %v2534 = vmul.f32 %v2519, %v2531
        %v2535 = vpack.c.bf16 %v2533, %v2532
        %v2536 = vpack.c.bf16 %v2534, %v2534
        %2537 = vrot.lane.b32.xlu0 %v2090, 96
        %v2538 = vpop.permute.xlu0 %2537
        %2539 = vrot.lane.b32.xlu0 %v2091, 96
        %v2540 = vpop.permute.xlu0 %2539
        %v2543 = vsel %vm1084, %v2535, 0
        %v2546 = vsel %vm1084, %v2536, 0
        %v2549 = vand.u32 %v2540, %v1129
        %2551 = vmatprep.subr.bf16.mxu0 0
        %2552 = vmatpush1.bf16.msra.mxu0 %v2538
        %2553 = vmatprep.subr.bf16.mxu0 0
        %2554 = vmatpush1.bf16.msra.mxu0 %v2549
        %2555 = vmatprep.subr.bf16.mxu0 0
        %2556 = vmatpush1.bf16.msra.mxu0 0
        %2557 = vmatprep.subr.bf16.mxu0 0
        %2558 = vmatpush1.bf16.msra.mxu0 0
        %2559 = vmatprep.subr.bf16.mxu0 0
        %2560 = vmatpush1.bf16.msra.mxu0 0
        %2561 = vmatprep.subr.bf16.mxu0 0
        %2562 = vmatpush1.bf16.msra.mxu0 0
        %2563 = vmatprep.subr.bf16.mxu0 0
        %2564 = vmatpush1.bf16.msra.mxu0 0
        %2565 = vmatprep.subr.bf16.mxu0 0
        %2566 = vmatpush1.bf16.msra.mxu0 0
        %2567 = vmatprep.subr.bf16.mxu0 0
        %2568 = vmatpush1.bf16.msra.mxu0 0
        %2569 = vmatprep.subr.bf16.mxu0 0
        %2570 = vmatpush1.bf16.msra.mxu0 0
        %2571 = vmatprep.subr.bf16.mxu0 0
        %2572 = vmatpush1.bf16.msra.mxu0 0
        %2573 = vmatprep.subr.bf16.mxu0 0
        %2574 = vmatpush1.bf16.msra.mxu0 0
        %2575 = vmatprep.subr.bf16.mxu0 0
        %2576 = vmatpush1.bf16.msra.mxu0 0
        %2577 = vmatprep.subr.bf16.mxu0 0
        %2578 = vmatpush1.bf16.msra.mxu0 0
        %2579 = vmatprep.subr.bf16.mxu0 0
        %2580 = vmatpush1.bf16.msra.mxu0 0
        %2581 = vmatprep.subr.bf16.mxu0 0
        %2582 = vmatpush1.bf16.msra.mxu0 0
        %2583 = vmatprep.mubr.bf16.mxu0 0
        %2584 = vmatmul.mubr.bf16.gmra.mrb[0].mxu0 %v2543
        %v2585 = vpop.f32.mrb[0].mxu0
        %v2586 = vadd.f32 0.0, %v2585
        %v2587 = vpop.f32.mrb[0].mxu0
        %v2588 = vpop.f32.mrb[0].mxu0
        %v2589 = vadd.f32 0.0, %v2588
        %v2590 = vpop.f32.mrb[0].mxu0
        %2591 = vmatprep.mubr.bf16.mxu0 0
        %2592 = vmatmul.mubr.bf16.gmra.mrb[0].mxu0 %v2546
        %v2593 = vpop.f32.mrb[0].mxu0
        %v2594 = vadd.f32 0.0, %v2593
        %v2595 = vpop.f32.mrb[0].mxu0
        %v2596 = vpop.f32.mrb[0].mxu0
        %v2597 = vpop.f32.mrb[0].mxu0
        %2598 = vdwg.mxu0
        %v2599 = vpack.c.bf16 %v2589, %v2586
        %v2600 = vpack.c.bf16 %v2594, %v2594
        %v2602 = vsel %vm1020, %v2599, 0
        %v2605 = vsel %vm1020, %v2600, 0
        %2607 = vmatprep.subr.bf16.mxu0 0
        %2608 = vmatpush1.bf16.msra.mxu0 %v1649
        %2609 = vmatprep.subr.bf16.mxu0 0
        %2610 = vmatpush1.bf16.msra.mxu0 0
        %2611 = vmatprep.subr.bf16.mxu0 0
        %2612 = vmatpush1.bf16.msra.mxu0 0
        %2613 = vmatprep.subr.bf16.mxu0 0
        %2614 = vmatpush1.bf16.msra.mxu0 0
        %2615 = vmatprep.subr.bf16.mxu0 0
        %2616 = vmatpush1.bf16.msra.mxu0 0
        %2617 = vmatprep.subr.bf16.mxu0 0
        %2618 = vmatpush1.bf16.msra.mxu0 0
        %2619 = vmatprep.subr.bf16.mxu0 0
        %2620 = vmatpush1.bf16.msra.mxu0 0
        %2621 = vmatprep.subr.bf16.mxu0 0
        %2622 = vmatpush1.bf16.msra.mxu0 0
        %2623 = vmatprep.subr.bf16.mxu0 0
        %2624 = vmatpush1.bf16.msra.mxu0 0
        %2625 = vmatprep.subr.bf16.mxu0 0
        %2626 = vmatpush1.bf16.msra.mxu0 0
        %2627 = vmatprep.subr.bf16.mxu0 0
        %2628 = vmatpush1.bf16.msra.mxu0 0
        %2629 = vmatprep.subr.bf16.mxu0 0
        %2630 = vmatpush1.bf16.msra.mxu0 0
        %2631 = vmatprep.subr.bf16.mxu0 0
        %2632 = vmatpush1.bf16.msra.mxu0 0
        %2633 = vmatprep.subr.bf16.mxu0 0
        %2634 = vmatpush1.bf16.msra.mxu0 0
        %2635 = vmatprep.subr.bf16.mxu0 0
        %2636 = vmatpush1.bf16.msra.mxu0 0
        %2637 = vmatprep.subr.bf16.mxu0 0
        %2638 = vmatpush1.bf16.msra.mxu0 0
        %2639 = vmatprep.mubr.bf16.mxu0 0
        %2640 = vmatmul.mubr.bf16.gmra.mrb[0].mxu0 %v2602
        %v2641 = vpop.f32.mrb[0].mxu0
        %v2642 = vadd.f32 0.0, %v2641
        %v2643 = vpop.f32.mrb[0].mxu0
        %v2644 = vpop.f32.mrb[0].mxu0
        %v2645 = vadd.f32 0.0, %v2644
        %v2646 = vpop.f32.mrb[0].mxu0
        %2647 = vmatprep.mubr.bf16.mxu0 0
        %2648 = vmatmul.mubr.bf16.gmra.mrb[0].mxu0 %v2605
        %v2649 = vpop.f32.mrb[0].mxu0
        %v2650 = vadd.f32 0.0, %v2649
        %v2651 = vpop.f32.mrb[0].mxu0
        %v2652 = vpop.f32.mrb[0].mxu0
        %v2653 = vpop.f32.mrb[0].mxu0
        %2654 = vdwg.mxu0
        %v2655 = vadd.f32 %v2418, %v2642
        %v2656 = vadd.f32 %v2421, %v2645
        %v2657 = vadd.f32 %v2426, %v2650
        %2658 = vrot.lane.b32.xlu0 %v1974, 80
        %v2659 = vpop.permute.xlu0 %2658
        %2660 = vrot.lane.b32.xlu0 %v1975, 80
        %v2661 = vpop.permute.xlu0 %2660
        %2662 = vrot.lane.b32.xlu0 %v1974, 16
        %v2663 = vpop.permute.xlu0 %2662
        %2664 = vrot.lane.b32.xlu0 %v1975, 16
        %v2665 = vpop.permute.xlu0 %2664
        %v2667 = vsel %vm1020, %v2659, 0
        %v2670 = vsel %vm1020, %v2661, 0
        %v2673 = vsel %vm1020, %v2663, 0
        %v2676 = vsel %vm1020, %v2665, 0
        %2678 = vmatprep.subr.bf16.mxu0 0
        %2679 = vmatpush1.bf16.xpose.msra.mxu0 %v2673
        %2680 = vmatprep.subr.bf16.mxu0 0
        %2681 = vmatpush1.bf16.xpose.msra.mxu0 %v2676
        %2682 = vmatprep.subr.bf16.mxu0 0
        %2683 = vmatpush1.bf16.xpose.msra.mxu0 0
        %2684 = vmatprep.subr.bf16.mxu0 0
        %2685 = vmatpush1.bf16.xpose.msra.mxu0 0
        %2686 = vmatprep.subr.bf16.mxu0 0
        %2687 = vmatpush1.bf16.xpose.msra.mxu0 0
        %2688 = vmatprep.subr.bf16.mxu0 0
        %2689 = vmatpush1.bf16.xpose.msra.mxu0 0
        %2690 = vmatprep.subr.bf16.mxu0 0
        %2691 = vmatpush1.bf16.xpose.msra.mxu0 0
        %2692 = vmatprep.subr.bf16.mxu0 0
        %2693 = vmatpush1.bf16.xpose.msra.mxu0 0
        %2694 = vmatprep.subr.bf16.mxu0 0
        %2695 = vmatpush1.bf16.xpose.msra.mxu0 0
        %2696 = vmatprep.subr.bf16.mxu0 0
        %2697 = vmatpush1.bf16.xpose.msra.mxu0 0
        %2698 = vmatprep.subr.bf16.mxu0 0
        %2699 = vmatpush1.bf16.xpose.msra.mxu0 0
        %2700 = vmatprep.subr.bf16.mxu0 0
        %2701 = vmatpush1.bf16.xpose.msra.mxu0 0
        %2702 = vmatprep.subr.bf16.mxu0 0
        %2703 = vmatpush1.bf16.xpose.msra.mxu0 0
        %2704 = vmatprep.subr.bf16.mxu0 0
        %2705 = vmatpush1.bf16.xpose.msra.mxu0 0
        %2706 = vmatprep.subr.bf16.mxu0 0
        %2707 = vmatpush1.bf16.xpose.msra.mxu0 0
        %2708 = vmatprep.subr.bf16.mxu0 0
        %2709 = vmatpush1.bf16.xpose.msra.mxu0 0
        %2710 = vmatprep.mubr.bf16.mxu0 0
        %2711 = vmatmul.mubr.bf16.gmra.mrb[0].mxu0 %v2667
        %v2712 = vpop.f32.mrb[0].mxu0
        %v2713 = vadd.f32 0.0, %v2712
        %v2714 = vpop.f32.mrb[0].mxu0
        %v2715 = vpop.f32.mrb[0].mxu0
        %v2716 = vadd.f32 0.0, %v2715
        %v2717 = vpop.f32.mrb[0].mxu0
        %2718 = vmatprep.mubr.bf16.mxu0 0
        %2719 = vmatmul.mubr.bf16.gmra.mrb[0].mxu0 %v2670
        %v2720 = vpop.f32.mrb[0].mxu0
        %v2721 = vadd.f32 0.0, %v2720
        %v2722 = vpop.f32.mrb[0].mxu0
        %v2723 = vpop.f32.mrb[0].mxu0
        %v2724 = vpop.f32.mrb[0].mxu0
        %2725 = vdwg.mxu0
        %v2726 = vmul.f32 %v2713, 0.125
        %v2727 = vmul.f32 %v2716, 0.125
        %v2728 = vmul.f32 %v2721, 0.125
        %v2729 = vsel %vm1084, %v2726, -inf
        %2730 = vmax.xlane.f32.xlu0 %v2729
        %v2731 = vpop.xlane.xlu0 %2730
        %v2732 = vsel %vm1084, %v2727, -inf
        %2733 = vmax.xlane.f32.xlu0 %v2732
        %v2734 = vpop.xlane.xlu0 %2733
        %v2735 = vsel %vm1091, %v2728, -inf
        %2736 = vmax.xlane.f32.xlu0 %v2735
        %v2737 = vpop.xlane.xlu0 %2736
        %v2738 = vsub.f32 %v2726, %v2731
        %v2739 = vsub.f32 %v2727, %v2734
        %v2740 = vsub.f32 %v2728, %v2737
        %v2741 = vmul.f32 %v2738, 1.442695
        %v2742 = vpow.pop %v2741
        %v2743 = vmul.f32 %v2739, 1.442695
        %v2744 = vpow.pop %v2743
        %v2745 = vmul.f32 %v2740, 1.442695
        %v2746 = vpow.pop %v2745
        %v2747 = vsel %vm1084, %v2742, 0.0
        %2748 = vadd.xlane.f32.xlu0 %v2747
        %v2749 = vpop.xlane.xlu0 %2748
        %v2750 = vsel %vm1084, %v2744, 0.0
        %2751 = vadd.xlane.f32.xlu0 %v2750
        %v2752 = vpop.xlane.xlu0 %2751
        %v2753 = vsel %vm1091, %v2746, 0.0
        %2754 = vadd.xlane.f32.xlu0 %v2753
        %v2755 = vpop.xlane.xlu0 %2754
        %v2756 = vrcp.pop %v2749
        %v2757 = vrcp.pop %v2752
        %v2758 = vrcp.pop %v2755
        %v2759 = vmul.f32 %v2742, %v2756
        %v2760 = vmul.f32 %v2744, %v2757
        %v2761 = vmul.f32 %v2746, %v2758
        %v2762 = vpack.c.bf16 %v2760, %v2759
        %v2763 = vpack.c.bf16 %v2761, %v2761
        %2764 = vrot.lane.b32.xlu0 %v2090, 80
        %v2765 = vpop.permute.xlu0 %2764
        %2766 = vrot.lane.b32.xlu0 %v2091, 80
        %v2767 = vpop.permute.xlu0 %2766
        %v2770 = vsel %vm1084, %v2762, 0
        %v2773 = vsel %vm1084, %v2763, 0
        %v2776 = vand.u32 %v2767, %v1129
        %2778 = vmatprep.subr.bf16.mxu0 0
        %2779 = vmatpush1.bf16.msra.mxu0 %v2765
        %2780 = vmatprep.subr.bf16.mxu0 0
        %2781 = vmatpush1.bf16.msra.mxu0 %v2776
        %2782 = vmatprep.subr.bf16.mxu0 0
        %2783 = vmatpush1.bf16.msra.mxu0 0
        %2784 = vmatprep.subr.bf16.mxu0 0
        %2785 = vmatpush1.bf16.msra.mxu0 0
        %2786 = vmatprep.subr.bf16.mxu0 0
        %2787 = vmatpush1.bf16.msra.mxu0 0
        %2788 = vmatprep.subr.bf16.mxu0 0
        %2789 = vmatpush1.bf16.msra.mxu0 0
        %2790 = vmatprep.subr.bf16.mxu0 0
        %2791 = vmatpush1.bf16.msra.mxu0 0
        %2792 = vmatprep.subr.bf16.mxu0 0
        %2793 = vmatpush1.bf16.msra.mxu0 0
        %2794 = vmatprep.subr.bf16.mxu0 0
        %2795 = vmatpush1.bf16.msra.mxu0 0
        %2796 = vmatprep.subr.bf16.mxu0 0
        %2797 = vmatpush1.bf16.msra.mxu0 0
        %2798 = vmatprep.subr.bf16.mxu0 0
        %2799 = vmatpush1.bf16.msra.mxu0 0
        %2800 = vmatprep.subr.bf16.mxu0 0
        %2801 = vmatpush1.bf16.msra.mxu0 0
        %2802 = vmatprep.subr.bf16.mxu0 0
        %2803 = vmatpush1.bf16.msra.mxu0 0
        %2804 = vmatprep.subr.bf16.mxu0 0
        %2805 = vmatpush1.bf16.msra.mxu0 0
        %2806 = vmatprep.subr.bf16.mxu0 0
        %2807 = vmatpush1.bf16.msra.mxu0 0
        %2808 = vmatprep.subr.bf16.mxu0 0
        %2809 = vmatpush1.bf16.msra.mxu0 0
        %2810 = vmatprep.mubr.bf16.mxu0 0
        %2811 = vmatmul.mubr.bf16.gmra.mrb[0].mxu0 %v2770
        %v2812 = vpop.f32.mrb[0].mxu0
        %v2813 = vadd.f32 0.0, %v2812
        %v2814 = vpop.f32.mrb[0].mxu0
        %v2815 = vpop.f32.mrb[0].mxu0
        %v2816 = vadd.f32 0.0, %v2815
        %v2817 = vpop.f32.mrb[0].mxu0
        %2818 = vmatprep.mubr.bf16.mxu0 0
        %2819 = vmatmul.mubr.bf16.gmra.mrb[0].mxu0 %v2773
        %v2820 = vpop.f32.mrb[0].mxu0
        %v2821 = vadd.f32 0.0, %v2820
        %v2822 = vpop.f32.mrb[0].mxu0
        %v2823 = vpop.f32.mrb[0].mxu0
        %v2824 = vpop.f32.mrb[0].mxu0
        %2825 = vdwg.mxu0
        %v2826 = vpack.c.bf16 %v2816, %v2813
        %v2827 = vpack.c.bf16 %v2821, %v2821
        %v2829 = vsel %vm1020, %v2826, 0
        %v2832 = vsel %vm1020, %v2827, 0
        %2834 = vmatprep.subr.bf16.mxu0 0
        %2835 = vmatpush1.bf16.msra.mxu0 %v1882
        %2836 = vmatprep.subr.bf16.mxu0 0
        %2837 = vmatpush1.bf16.msra.mxu0 0
        %2838 = vmatprep.subr.bf16.mxu0 0
        %2839 = vmatpush1.bf16.msra.mxu0 0
        %2840 = vmatprep.subr.bf16.mxu0 0
        %2841 = vmatpush1.bf16.msra.mxu0 0
        %2842 = vmatprep.subr.bf16.mxu0 0
        %2843 = vmatpush1.bf16.msra.mxu0 0
        %2844 = vmatprep.subr.bf16.mxu0 0
        %2845 = vmatpush1.bf16.msra.mxu0 0
        %2846 = vmatprep.subr.bf16.mxu0 0
        %2847 = vmatpush1.bf16.msra.mxu0 0
        %2848 = vmatprep.subr.bf16.mxu0 0
        %2849 = vmatpush1.bf16.msra.mxu0 0
        %2850 = vmatprep.subr.bf16.mxu0 0
        %2851 = vmatpush1.bf16.msra.mxu0 0
        %2852 = vmatprep.subr.bf16.mxu0 0
        %2853 = vmatpush1.bf16.msra.mxu0 0
        %2854 = vmatprep.subr.bf16.mxu0 0
        %2855 = vmatpush1.bf16.msra.mxu0 0
        %2856 = vmatprep.subr.bf16.mxu0 0
        %2857 = vmatpush1.bf16.msra.mxu0 0
        %2858 = vmatprep.subr.bf16.mxu0 0
        %2859 = vmatpush1.bf16.msra.mxu0 0
        %2860 = vmatprep.subr.bf16.mxu0 0
        %2861 = vmatpush1.bf16.msra.mxu0 0
        %2862 = vmatprep.subr.bf16.mxu0 0
        %2863 = vmatpush1.bf16.msra.mxu0 0
        %2864 = vmatprep.subr.bf16.mxu0 0
        %2865 = vmatpush1.bf16.msra.mxu0 0
        %2866 = vmatprep.mubr.bf16.mxu0 0
        %2867 = vmatmul.mubr.bf16.gmra.mrb[0].mxu0 %v2829
        %v2868 = vpop.f32.mrb[0].mxu0
        %v2869 = vadd.f32 0.0, %v2868
        %v2870 = vpop.f32.mrb[0].mxu0
        %v2871 = vpop.f32.mrb[0].mxu0
        %v2872 = vadd.f32 0.0, %v2871
        %v2873 = vpop.f32.mrb[0].mxu0
        %2874 = vmatprep.mubr.bf16.mxu0 0
        %2875 = vmatmul.mubr.bf16.gmra.mrb[0].mxu0 %v2832
        %v2876 = vpop.f32.mrb[0].mxu0
        %v2877 = vadd.f32 0.0, %v2876
        %v2878 = vpop.f32.mrb[0].mxu0
        %v2879 = vpop.f32.mrb[0].mxu0
        %v2880 = vpop.f32.mrb[0].mxu0
        %2881 = vdwg.mxu0
        %v2882 = vadd.f32 %v2655, %v2869
        %v2883 = vadd.f32 %v2656, %v2872
        %v2884 = vadd.f32 %v2657, %v2877
        %v2888 = vrot.slane %v2882, 7
        %v2889 = vrot.slane %v2883, 7
        %v2890 = vsel %vm1127, %v2888, %v2889
        %v2891 = vrot.slane %v2884, 7
        %v2892 = vsel %vm1127, %v2889, %v2891
        %v2896 = vadd.f32 %v786, %v2888
        %v2897 = vadd.f32 %v787, %v2890
        %v2898 = vadd.f32 %v788, %v2892
        %v2899 = vld [vmem:[%s645] sm:$0x1]
        %v2901 = vlaneseq
        %v2902 = vshrl.u32 %v2901, 7
        %v2903 = vsub.s32 0, %v2902
        %v2904 = vrot.slane %v2899, %v2903
        %v2906 = vadd.f32 %v2896, %v2904
        %v2907 = vadd.f32 %v2897, %v2904
        %v2908 = vadd.f32 %v2898, %v2904
        %vm2909 = vcmask 523265
        %2910 = vst.msk [vmem:[#allocation2 + $0x10] sm:$0xfe] %vm2909, %v2906
        %2911 = vst.msk [vmem:[#allocation2 + $0x18] sm:$0xff] %vm791, %v2907
        %2912 = vst.msk [vmem:[#allocation2 + $0x20] sm:$0x3] %vm804, %v2908
        %v2913 = vld [vmem:[#allocation2] sm:$0xff]
        %v2914 = vld [vmem:[#allocation2 + $0x8] sm:$0xff]
        %v2915 = vld [vmem:[#allocation2 + $0x10] sm:$0xff]
        %v2916 = vld [vmem:[#allocation2 + $0x18] sm:$0xff]
        %v2917 = vld [vmem:[#allocation2 + $0x20] sm:$0x3]
        %v2918 = vld [vmem:[%s648] sm:$0x1]
        %v2919 = vld [vmem:[%s651] sm:$0x1]
        %v2920 = vsel %vm791, %v2913, 0.0
        %2921 = vadd.xlane.f32.xlu0 %v2920
        %v2922 = vpop.xlane.xlu0 %2921
        %v2923 = vsel %vm791, %v2914, 0.0
        %2924 = vadd.xlane.f32.xlu0 %v2923
        %v2925 = vpop.xlane.xlu0 %2924
        %v2926 = vsel %vm791, %v2915, 0.0
        %2927 = vadd.xlane.f32.xlu0 %v2926
        %v2928 = vpop.xlane.xlu0 %2927
        %v2929 = vsel %vm791, %v2916, 0.0
        %2930 = vadd.xlane.f32.xlu0 %v2929
        %v2931 = vpop.xlane.xlu0 %2930
        %v2932 = vsel %vm804, %v2917, 0.0
        %2933 = vadd.xlane.f32.xlu0 %v2932
        %v2934 = vpop.xlane.xlu0 %2933
        %v2935 = vmul.f32 %v2922, %v808
        %v2936 = vmul.f32 %v2925, %v808
        %v2937 = vmul.f32 %v2928, %v808
        %v2938 = vmul.f32 %v2931, %v808
        %v2939 = vmul.f32 %v2934, %v808
        %v2940 = vsub.f32 %v2913, %v2935
        %v2941 = vsub.f32 %v2914, %v2936
        %v2942 = vsub.f32 %v2915, %v2937
        %v2943 = vsub.f32 %v2916, %v2938
        %v2944 = vsub.f32 %v2917, %v2939
        %v2945 = vmul.f32 %v2940, %v2940
        %v2946 = vmul.f32 %v2941, %v2941
        %v2947 = vmul.f32 %v2942, %v2942
        %v2948 = vmul.f32 %v2943, %v2943
        %v2949 = vmul.f32 %v2944, %v2944
        %v2950 = vsel %vm791, %v2945, 0.0
        %2951 = vadd.xlane.f32.xlu0 %v2950
        %v2952 = vpop.xlane.xlu0 %2951
        %v2953 = vsel %vm791, %v2946, 0.0
        %2954 = vadd.xlane.f32.xlu0 %v2953
        %v2955 = vpop.xlane.xlu0 %2954
        %v2956 = vsel %vm791, %v2947, 0.0
        %2957 = vadd.xlane.f32.xlu0 %v2956
        %v2958 = vpop.xlane.xlu0 %2957
        %v2959 = vsel %vm791, %v2948, 0.0
        %2960 = vadd.xlane.f32.xlu0 %v2959
        %v2961 = vpop.xlane.xlu0 %2960
        %v2962 = vsel %vm804, %v2949, 0.0
        %2963 = vadd.xlane.f32.xlu0 %v2962
        %v2964 = vpop.xlane.xlu0 %2963
        %v2965 = vmul.f32 %v2952, %v808
        %v2966 = vmul.f32 %v2955, %v808
        %v2967 = vmul.f32 %v2958, %v808
        %v2968 = vmul.f32 %v2961, %v808
        %v2969 = vmul.f32 %v2964, %v808
        %v2970 = vadd.f32 %v2965, 1e-05
        %v2971 = vadd.f32 %v2966, 1e-05
        %v2972 = vadd.f32 %v2967, 1e-05
        %v2973 = vadd.f32 %v2968, 1e-05
        %v2974 = vadd.f32 %v2969, 1e-05
        %v2975 = vrsqrt.pop %v2970
        %v2976 = vrsqrt.pop %v2971
        %v2977 = vrsqrt.pop %v2972
        %v2978 = vrsqrt.pop %v2973
        %v2979 = vrsqrt.pop %v2974
        %v2980 = vmul.f32 %v2940, %v2975
        %v2981 = vmul.f32 %v2941, %v2976
        %v2982 = vmul.f32 %v2942, %v2977
        %v2983 = vmul.f32 %v2943, %v2978
        %v2984 = vmul.f32 %v2944, %v2979
        %v2986 = vlaneseq
        %v2987 = vshrl.u32 %v2986, 7
        %v2988 = vsub.s32 0, %v2987
        %v2989 = vrot.slane %v2918, %v2988
        %v2991 = vmul.f32 %v2980, %v2989
        %v2992 = vmul.f32 %v2981, %v2989
        %v2993 = vmul.f32 %v2982, %v2989
        %v2994 = vmul.f32 %v2983, %v2989
        %v2995 = vmul.f32 %v2984, %v2989
        %v2997 = vlaneseq
        %v2998 = vshrl.u32 %v2997, 7
        %v2999 = vsub.s32 0, %v2998
        %v3000 = vrot.slane %v2919, %v2999
        %v3002 = vadd.f32 %v2991, %v3000
        %v3003 = vadd.f32 %v2992, %v3000
        %v3004 = vadd.f32 %v2993, %v3000
        %v3005 = vadd.f32 %v2994, %v3000
        %v3006 = vadd.f32 %v2995, %v3000
        %v3007 = vpack.c.bf16 %v3003, %v3002
        %v3008 = vpack.c.bf16 %v3005, %v3004
        %v3009 = vpack.c.bf16 %v3006, %v3006
        %v3010 = vld [vmem:[%s656] sm:$0xff]
        %v3011 = vld [vmem:[%s656 + $0x8] sm:$0xff]
        %v3012 = vld [vmem:[%s656 + $0x10] sm:$0xff]
        %v3013 = vld [vmem:[%s656 + $0x18] sm:$0xff]
        %v3014 = vld [vmem:[%s656 + $0x20] sm:$0xff]
        %v3015 = vld [vmem:[%s656 + $0x28] sm:$0xff]
        %v3016 = vld [vmem:[%s656 + $0x30] sm:$0xff]
        %v3017 = vld [vmem:[%s656 + $0x38] sm:$0xff]
        %v3018 = vld [vmem:[%s660] sm:$0x3]
        %v3020 = vlaneseq
        %v3021 = vshrl.u32 %v3020, 7
        %v3022 = vsub.s32 0, %v3021
        %v3023 = vrot.slane %v3018, %v3022
        %v3024 = vlaneseq
        %v3025 = vshrl.u32 %v3024, 7
        %v3026 = vsub.s32 1, %v3025
        %v3027 = vrot.slane %v3018, %v3026
        %v3038 = vunpack.c.l.b16 %v3010
        %v3039 = vunpack.c.h.b16 %v3010
        %v3040 = vunpack.c.l.b16 %v3011
        %v3041 = vunpack.c.h.b16 %v3011
        %v3042 = vunpack.c.l.b16 %v3012
        %v3043 = vunpack.c.h.b16 %v3012
        %v3044 = vunpack.c.l.b16 %v3013
        %v3045 = vunpack.c.h.b16 %v3013
        %v3046 = vunpack.c.l.b16 %v3014
        %v3047 = vunpack.c.h.b16 %v3014
        %v3048 = vunpack.c.l.b16 %v3015
        %v3049 = vunpack.c.h.b16 %v3015
        %v3050 = vunpack.c.l.b16 %v3016
        %v3051 = vunpack.c.h.b16 %v3016
        %v3052 = vunpack.c.l.b16 %v3017
        %v3053 = vunpack.c.h.b16 %v3017
        %v3054 = vpack.c.b16 %v3040, %v3038
        %v3055 = vpack.c.b16 %v3041, %v3039
        %v3056 = vpack.c.b16 %v3044, %v3042
        %v3057 = vpack.c.b16 %v3045, %v3043
        %v3058 = vpack.c.b16 %v3048, %v3046
        %v3059 = vpack.c.b16 %v3049, %v3047
        %v3060 = vpack.c.b16 %v3052, %v3050
        %v3061 = vpack.c.b16 %v3053, %v3051
        %v3071 = vsel %vm791, %v3007, 0
        %v3074 = vsel %vm791, %v3008, 0
        %v3077 = vsel %vm791, %v3009, 0
        %3079 = vmatprep.subr.bf16.mxu0 %v3055
        %3080 = vmatpush1.bf16.msra.mxu0 %v3054
        %3081 = vmatprep.subr.bf16.mxu0 %v3057
        %3082 = vmatpush1.bf16.msra.mxu0 %v3056
        %3083 = vmatprep.subr.bf16.mxu0 %v3059
        %3084 = vmatpush1.bf16.msra.mxu0 %v3058
        %3085 = vmatprep.subr.bf16.mxu0 %v3061
        %3086 = vmatpush1.bf16.msra.mxu0 %v3060
        %3087 = vmatprep.subr.bf16.mxu0 0
        %3088 = vmatpush1.bf16.msra.mxu0 0
        %3089 = vmatprep.subr.bf16.mxu0 0
        %3090 = vmatpush1.bf16.msra.mxu0 0
        %3091 = vmatprep.subr.bf16.mxu0 0
        %3092 = vmatpush1.bf16.msra.mxu0 0
        %3093 = vmatprep.subr.bf16.mxu0 0
        %3094 = vmatpush1.bf16.msra.mxu0 0
        %3095 = vmatprep.subr.bf16.mxu0 0
        %3096 = vmatpush1.bf16.msra.mxu0 0
        %3097 = vmatprep.subr.bf16.mxu0 0
        %3098 = vmatpush1.bf16.msra.mxu0 0
        %3099 = vmatprep.subr.bf16.mxu0 0
        %3100 = vmatpush1.bf16.msra.mxu0 0
        %3101 = vmatprep.subr.bf16.mxu0 0
        %3102 = vmatpush1.bf16.msra.mxu0 0
        %3103 = vmatprep.subr.bf16.mxu0 0
        %3104 = vmatpush1.bf16.msra.mxu0 0
        %3105 = vmatprep.subr.bf16.mxu0 0
        %3106 = vmatpush1.bf16.msra.mxu0 0
        %3107 = vmatprep.subr.bf16.mxu0 0
        %3108 = vmatpush1.bf16.msra.mxu0 0
        %3109 = vmatprep.subr.bf16.mxu0 0
        %3110 = vmatpush1.bf16.msra.mxu0 0
        %3111 = vmatprep.mubr.bf16.mxu0 0
        %3112 = vmatmul.mubr.bf16.gmra.mrb[0].mxu0 %v3071
        %v3113 = vpop.f32.mrb[0].mxu0
        %v3114 = vadd.f32 %v3023, %v3113
        %v3115 = vpop.f32.mrb[0].mxu0
        %v3116 = vadd.f32 %v3027, %v3115
        %v3117 = vpop.f32.mrb[0].mxu0
        %v3118 = vadd.f32 %v3023, %v3117
        %v3119 = vpop.f32.mrb[0].mxu0
        %v3120 = vadd.f32 %v3027, %v3119
        %3121 = vmatprep.mubr.bf16.mxu0 0
        %3122 = vmatmul.mubr.bf16.gmra.mrb[0].mxu0 %v3074
        %v3123 = vpop.f32.mrb[0].mxu0
        %v3124 = vadd.f32 %v3023, %v3123
        %v3125 = vpop.f32.mrb[0].mxu0
        %v3126 = vadd.f32 %v3027, %v3125
        %v3127 = vpop.f32.mrb[0].mxu0
        %v3128 = vadd.f32 %v3023, %v3127
        %v3129 = vpop.f32.mrb[0].mxu0
        %v3130 = vadd.f32 %v3027, %v3129
        %3131 = vmatprep.mubr.bf16.mxu0 0
        %3132 = vmatmul.mubr.bf16.gmra.mrb[0].mxu0 %v3077
        %v3133 = vpop.f32.mrb[0].mxu0
        %v3134 = vadd.f32 %v3023, %v3133
        %v3135 = vpop.f32.mrb[0].mxu0
        %v3136 = vadd.f32 %v3027, %v3135
        %v3137 = vpop.f32.mrb[0].mxu0
        %v3138 = vpop.f32.mrb[0].mxu0
        %3139 = vdwg.mxu0
        %v3140 = vmul.f32 %v3114, 0.5
        %v3141 = vmul.f32 %v3116, 0.5
        %v3142 = vmul.f32 %v3118, 0.5
        %v3143 = vmul.f32 %v3120, 0.5
        %v3144 = vmul.f32 %v3124, 0.5
        %v3145 = vmul.f32 %v3126, 0.5
        %v3146 = vmul.f32 %v3128, 0.5
        %v3147 = vmul.f32 %v3130, 0.5
        %v3148 = vmul.f32 %v3134, 0.5
        %v3149 = vmul.f32 %v3136, 0.5
        %v3150 = vmul.f32 %v3114, 0.70710677
        %v3151 = vmul.f32 %v3116, 0.70710677
        %v3152 = vmul.f32 %v3118, 0.70710677
        %v3153 = vmul.f32 %v3120, 0.70710677
        %v3154 = vmul.f32 %v3124, 0.70710677
        %v3155 = vmul.f32 %v3126, 0.70710677
        %v3156 = vmul.f32 %v3128, 0.70710677
        %v3157 = vmul.f32 %v3130, 0.70710677
        %v3158 = vmul.f32 %v3134, 0.70710677
        %v3159 = vmul.f32 %v3136, 0.70710677
        %v3160 = verf.f32.pop %v3150
        %v3161 = verf.f32.pop %v3151
        %v3162 = verf.f32.pop %v3152
        %v3163 = verf.f32.pop %v3153
        %v3164 = verf.f32.pop %v3154
        %v3165 = verf.f32.pop %v3155
        %v3166 = verf.f32.pop %v3156
        %v3167 = verf.f32.pop %v3157
        %v3168 = verf.f32.pop %v3158
        %v3169 = verf.f32.pop %v3159
        %v3170 = vadd.f32 %v3160, 1.0
        %v3171 = vadd.f32 %v3161, 1.0
        %v3172 = vadd.f32 %v3162, 1.0
        %v3173 = vadd.f32 %v3163, 1.0
        %v3174 = vadd.f32 %v3164, 1.0
        %v3175 = vadd.f32 %v3165, 1.0
        %v3176 = vadd.f32 %v3166, 1.0
        %v3177 = vadd.f32 %v3167, 1.0
        %v3178 = vadd.f32 %v3168, 1.0
        %v3179 = vadd.f32 %v3169, 1.0
        %v3180 = vmul.f32 %v3140, %v3170
        %v3181 = vmul.f32 %v3141, %v3171
        %v3182 = vmul.f32 %v3142, %v3172
        %v3183 = vmul.f32 %v3143, %v3173
        %v3184 = vmul.f32 %v3144, %v3174
        %v3185 = vmul.f32 %v3145, %v3175
        %v3186 = vmul.f32 %v3146, %v3176
        %v3187 = vmul.f32 %v3147, %v3177
        %v3188 = vmul.f32 %v3148, %v3178
        %v3189 = vmul.f32 %v3149, %v3179
        %v3190 = vpack.c.bf16 %v3182, %v3180
        %v3191 = vpack.c.bf16 %v3183, %v3181
        %v3192 = vpack.c.bf16 %v3186, %v3184
        %v3193 = vpack.c.bf16 %v3187, %v3185
        %v3194 = vpack.c.bf16 %v3188, %v3188
        %v3195 = vpack.c.bf16 %v3189, %v3189
        %v3196 = vld [vmem:[%s665] sm:$0xf]
        %v3197 = vld [vmem:[%s665 + $0x4] sm:$0xf]
        %v3198 = vld [vmem:[%s665 + $0x8] sm:$0xf]
        %v3199 = vld [vmem:[%s665 + $0xc] sm:$0xf]
        %v3200 = vld [vmem:[%s665 + $0x10] sm:$0xf]
        %v3201 = vld [vmem:[%s665 + $0x14] sm:$0xf]
        %v3202 = vld [vmem:[%s665 + $0x18] sm:$0xf]
        %v3203 = vld [vmem:[%s665 + $0x1c] sm:$0xf]
        %v3204 = vld [vmem:[%s665 + $0x20] sm:$0xf]
        %v3205 = vld [vmem:[%s665 + $0x24] sm:$0xf]
        %v3206 = vld [vmem:[%s665 + $0x28] sm:$0xf]
        %v3207 = vld [vmem:[%s665 + $0x2c] sm:$0xf]
        %v3208 = vld [vmem:[%s665 + $0x30] sm:$0xf]
        %v3209 = vld [vmem:[%s665 + $0x34] sm:$0xf]
        %v3210 = vld [vmem:[%s665 + $0x38] sm:$0xf]
        %v3211 = vld [vmem:[%s665 + $0x3c] sm:$0xf]
        %v3212 = vld [vmem:[%s665 + $0x40] sm:$0xf]
        %v3213 = vld [vmem:[%s665 + $0x44] sm:$0xf]
        %v3214 = vld [vmem:[%s665 + $0x48] sm:$0xf]
        %v3215 = vld [vmem:[%s665 + $0x4c] sm:$0xf]
        %v3216 = vld [vmem:[%s665 + $0x50] sm:$0xf]
        %v3217 = vld [vmem:[%s665 + $0x54] sm:$0xf]
        %v3218 = vld [vmem:[%s665 + $0x58] sm:$0xf]
        %v3219 = vld [vmem:[%s665 + $0x5c] sm:$0xf]
        %v3220 = vld [vmem:[%s665 + $0x60] sm:$0xf]
        %v3221 = vld [vmem:[%s665 + $0x64] sm:$0xf]
        %v3222 = vld [vmem:[%s665 + $0x68] sm:$0xf]
        %v3223 = vld [vmem:[%s665 + $0x6c] sm:$0xf]
        %v3224 = vld [vmem:[%s665 + $0x70] sm:$0xf]
        %v3225 = vld [vmem:[%s665 + $0x74] sm:$0xf]
        %v3226 = vld [vmem:[%s665 + $0x78] sm:$0xf]
        %v3227 = vld [vmem:[%s665 + $0x7c] sm:$0xf]
        %v3228 = vld [vmem:[%s668] sm:$0x1]
        %v3230 = vlaneseq
        %v3231 = vshrl.u32 %v3230, 7
        %v3232 = vsub.s32 0, %v3231
        %v3233 = vrot.slane %v3228, %v3232
        %v3267 = vunpack.c.l.b16 %v3196
        %v3268 = vunpack.c.l.b16 %v3197
        %v3269 = vunpack.c.l.b16 %v3198
        %v3270 = vunpack.c.l.b16 %v3199
        %v3271 = vunpack.c.l.b16 %v3200
        %v3272 = vunpack.c.l.b16 %v3201
        %v3273 = vunpack.c.l.b16 %v3202
        %v3274 = vunpack.c.l.b16 %v3203
        %v3275 = vunpack.c.l.b16 %v3204
        %v3276 = vunpack.c.l.b16 %v3205
        %v3277 = vunpack.c.l.b16 %v3206
        %v3278 = vunpack.c.l.b16 %v3207
        %v3279 = vunpack.c.l.b16 %v3208
        %v3280 = vunpack.c.l.b16 %v3209
        %v3281 = vunpack.c.l.b16 %v3210
        %v3282 = vunpack.c.l.b16 %v3211
        %v3283 = vunpack.c.l.b16 %v3212
        %v3284 = vunpack.c.l.b16 %v3213
        %v3285 = vunpack.c.l.b16 %v3214
        %v3286 = vunpack.c.l.b16 %v3215
        %v3287 = vunpack.c.l.b16 %v3216
        %v3288 = vunpack.c.l.b16 %v3217
        %v3289 = vunpack.c.l.b16 %v3218
        %v3290 = vunpack.c.l.b16 %v3219
        %v3291 = vunpack.c.l.b16 %v3220
        %v3292 = vunpack.c.l.b16 %v3221
        %v3293 = vunpack.c.l.b16 %v3222
        %v3294 = vunpack.c.l.b16 %v3223
        %v3295 = vunpack.c.l.b16 %v3224
        %v3296 = vunpack.c.l.b16 %v3225
        %v3297 = vunpack.c.l.b16 %v3226
        %v3298 = vunpack.c.l.b16 %v3227
        %v3299 = vpack.c.b16 %v3268, %v3267
        %v3300 = vpack.c.b16 %v3270, %v3269
        %v3301 = vpack.c.b16 %v3272, %v3271
        %v3302 = vpack.c.b16 %v3274, %v3273
        %v3303 = vpack.c.b16 %v3276, %v3275
        %v3304 = vpack.c.b16 %v3278, %v3277
        %v3305 = vpack.c.b16 %v3280, %v3279
        %v3306 = vpack.c.b16 %v3282, %v3281
        %v3307 = vpack.c.b16 %v3284, %v3283
        %v3308 = vpack.c.b16 %v3286, %v3285
        %v3309 = vpack.c.b16 %v3288, %v3287
        %v3310 = vpack.c.b16 %v3290, %v3289
        %v3311 = vpack.c.b16 %v3292, %v3291
        %v3312 = vpack.c.b16 %v3294, %v3293
        %v3313 = vpack.c.b16 %v3296, %v3295
        %v3314 = vpack.c.b16 %v3298, %v3297
        %3331 = vmatprep.subr.bf16.mxu0 0
        %3332 = vmatpush1.bf16.msra.mxu0 %v3299
        %3333 = vmatprep.subr.bf16.mxu0 0
        %3334 = vmatpush1.bf16.msra.mxu0 %v3300
        %3335 = vmatprep.subr.bf16.mxu0 0
        %3336 = vmatpush1.bf16.msra.mxu0 %v3301
        %3337 = vmatprep.subr.bf16.mxu0 0
        %3338 = vmatpush1.bf16.msra.mxu0 %v3302
        %3339 = vmatprep.subr.bf16.mxu0 0
        %3340 = vmatpush1.bf16.msra.mxu0 %v3303
        %3341 = vmatprep.subr.bf16.mxu0 0
        %3342 = vmatpush1.bf16.msra.mxu0 %v3304
        %3343 = vmatprep.subr.bf16.mxu0 0
        %3344 = vmatpush1.bf16.msra.mxu0 %v3305
        %3345 = vmatprep.subr.bf16.mxu0 0
        %3346 = vmatpush1.bf16.msra.mxu0 %v3306
        %3347 = vmatprep.subr.bf16.mxu0 0
        %3348 = vmatpush1.bf16.msra.mxu0 %v3307
        %3349 = vmatprep.subr.bf16.mxu0 0
        %3350 = vmatpush1.bf16.msra.mxu0 %v3308
        %3351 = vmatprep.subr.bf16.mxu0 0
        %3352 = vmatpush1.bf16.msra.mxu0 %v3309
        %3353 = vmatprep.subr.bf16.mxu0 0
        %3354 = vmatpush1.bf16.msra.mxu0 %v3310
        %3355 = vmatprep.subr.bf16.mxu0 0
        %3356 = vmatpush1.bf16.msra.mxu0 %v3311
        %3357 = vmatprep.subr.bf16.mxu0 0
        %3358 = vmatpush1.bf16.msra.mxu0 %v3312
        %3359 = vmatprep.subr.bf16.mxu0 0
        %3360 = vmatpush1.bf16.msra.mxu0 %v3313
        %3361 = vmatprep.subr.bf16.mxu0 0
        %3362 = vmatpush1.bf16.msra.mxu0 %v3314
        %3363 = vmatprep.mubr.bf16.mxu0 %v3191
        %3364 = vmatmul.mubr.bf16.gmra.mrb[0].mxu0 %v3190
        %v3365 = vpop.f32.mrb[0].mxu0
        %v3366 = vadd.f32 %v3233, %v3365
        %v3367 = vpop.f32.mrb[0].mxu0
        %v3368 = vpop.f32.mrb[0].mxu0
        %v3369 = vadd.f32 %v3233, %v3368
        %v3370 = vpop.f32.mrb[0].mxu0
        %3371 = vmatprep.mubr.bf16.mxu0 %v3193
        %3372 = vmatmul.mubr.bf16.gmra.mrb[0].mxu0 %v3192
        %v3373 = vpop.f32.mrb[0].mxu0
        %v3374 = vadd.f32 %v3233, %v3373
        %v3375 = vpop.f32.mrb[0].mxu0
        %v3376 = vpop.f32.mrb[0].mxu0
        %v3377 = vadd.f32 %v3233, %v3376
        %v3378 = vpop.f32.mrb[0].mxu0
        %3379 = vmatprep.mubr.bf16.mxu0 %v3195
        %3380 = vmatmul.mubr.bf16.gmra.mrb[0].mxu0 %v3194
        %v3381 = vpop.f32.mrb[0].mxu0
        %v3382 = vadd.f32 %v3233, %v3381
        %v3383 = vpop.f32.mrb[0].mxu0
        %v3384 = vpop.f32.mrb[0].mxu0
        %v3385 = vpop.f32.mrb[0].mxu0
        %3386 = vdwg.mxu0
        %v3387 = vadd.f32 %v2913, %v3366
        %v3388 = vadd.f32 %v2914, %v3369
        %v3389 = vadd.f32 %v2915, %v3374
        %v3390 = vadd.f32 %v2916, %v3377
        %v3391 = vadd.f32 %v2917, %v3382
        %3392 = vst.msk [vmem:[#allocation2] sm:$0xff] %vm791, %v3387
        %3393 = vst.msk [vmem:[#allocation2 + $0x8] sm:$0xff] %vm791, %v3388
        %3394 = vst.msk [vmem:[#allocation2 + $0x10] sm:$0xff] %vm791, %v3389
        %3395 = vst.msk [vmem:[#allocation2 + $0x18] sm:$0xff] %vm791, %v3390
        %3396 = vst.msk [vmem:[#allocation2 + $0x20] sm:$0x3] %vm804, %v3391
        %p3397 = scmp.eq.s32.totalorder %s28, 1
        // Predicated region
        $region89: #{vit_forward.1} parent=83 // pred_check
          %p3398 = pneg %p3397
        $region90: #{vit_forward.1} parent=83 // pred_check_branch
          %3400 = sbr.rel (%p3398) target = $region92
        $region91: #{vit_forward.1} parent=83 // pred_region
          %3401 = vst.msk [vmem:[#allocation3] sm:$0x1] %vm1956, %v3387
          %vm3402 = vcmask 517121
          %3403 = vst.msk [vmem:[#allocation3] sm:$0x2] %vm3402, %v3389
        $region92: #{vit_forward.1} parent=83 // pred_fallthru
          _
        // Predicated region
        $region93: #{vit_forward.1} parent=83 // pred_check
          %p3404 = pneg %p432
        $region94: #{vit_forward.1} parent=83 // pred_check_branch
          %3406 = sbr.rel (%p3404) target = $region96
        $region95: #{vit_forward.1} parent=83 // pred_region
          %s3408 = ssub.s32 32, 32
          %3409 = vsyncadd [#allocation4], %s3408
          %s3411 = sshll.u32 [#allocation3], 4
          %s3412 = int_to_ptr.vmem [resolvable:$true] %s3411
          %3414 = dma.vmem_to_hbm [thread:$0]  %s3412, 32, %s16, [#allocation4]
        $region96: #{vit_forward.1} parent=83 // pred_fallthru
          _
        // Predicated region
        $region97: #{vit_forward.1} parent=83 // pred_check
          %p3415 = pneg %p432
        $region98: #{vit_forward.1} parent=83 // pred_check_branch
          %3417 = sbr.rel (%p3415) target = $region100
        $region99: #{vit_forward.1} parent=83 // pred_region
          %3418 = dma.done [#allocation4], 32
        $region100: #{vit_forward.1} parent=83 // pred_fallthru
          _
      $region84: #{vit_forward.1} parent=5 // pred_fallthru
        _
      %p3419 = scmp.le.s32.totalorder 2, %s23
      // Predicated region
      $region101: #{vit_forward.1} parent=5 // pred_check
        %p3420 = pneg %p3419
      $region102: #{vit_forward.1} parent=5 // pred_check_branch
        %3422 = sbr.rel (%p3420) target = $region104
      $region103: #{vit_forward.1} parent=5 // pred_region
        %s3423 = ssub.s32 %s23, 2
      $region104: #{vit_forward.1} parent=5 // pred_fallthru
        _
    $region6: #{vit_forward.1} parent=1 // loop_footer
      %s27 = sadd.s32 1, %s23
    $region7: #{vit_forward.1} parent=1 // loop_footer_branch
      %22 = sbr.rel target = $region3
    $region8: #{vit_forward.1} parent=1 // loop_exit
      _
    %3424 = vsyncpa [#allocation4], 1
    %s3425 = scalar_lea.sflag [#allocation4], 1
    %3426 = vsyncpa %s3425, 1

</llo_original>
